<compile_context>
chip_gen: v6e
topology: v6e:2x2x1
jax: 0.10.0
libtpu: 0.0.40
codegen_flags: <defaults>
</compile_context>

<pallas_src>
import numpy as np

import jax
import jax.numpy as jnp
from jax.experimental import pallas as pl
from jax.experimental.pallas import tpu as pltpu

# ---------------------------------------------------------------------------
# Fixed geometry for this module (input 1x3x56x56)
# ---------------------------------------------------------------------------
OH1 = OW1 = 27                 # conv1 output spatial (k=7, s=2, p=2)
OH2 = OW2 = 29                 # conv2 output spatial (k=3, s=1, p=2)
GW = 31                        # common flattened row stride (= conv2 padded width)
L1 = (OH1 - 1) * GW + OW1      # 833: valid conv1 lanes (flattened, 31-wide rows)
L1P = 896                      # conv1 lane length padded to a multiple of 128
L2 = OH2 * GW                  # 899: valid conv2 lanes (reshapes to 29x31)
L2P = 1024                     # conv2 lane length padded to a multiple of 128
PAD_OFF = 2 * GW + 2           # 64: offset of conv1 data inside padded conv2 grid
V3P_LEN = PAD_OFF + L2P        # 1088: padded conv2-input buffer length
PHLEN = 1024                   # flattened (padded) length of each stride-2 phase
K1 = 49 * 8                    # 392: stacked contraction depth for conv1 (8-ch padded taps)
K2 = 9 * 16                    # 144: stacked contraction depth for conv2 (16-ch padded taps)

# packed-parameter buffer lane layout (single (16, P_LANES) f32 input)
W1_OFF = 0
W2_OFF = W1_OFF + K1           # 392
B1_OFF = W2_OFF + K2           # 536
B2_OFF = B1_OFF + 1            # 537
M_OFF = B2_OFF + 1             # 538
P_LANES = M_OFF + L1P          # 1434


# ---------------------------------------------------------------------------
# One fused kernel: conv1 -> (+b1-0.1, relu) -> conv2 -> (+b2-0.5, relu)
# ---------------------------------------------------------------------------
def _fused_conv_kernel(xph_ref, prm_ref, o_ref, x1s_ref, v3p_ref, x2s_ref):
    # ---- stage conv1 taps: stacked RHS (392, 896), all stores sublane-aligned ----
    for kh in range(7):
        for kw in range(7):
            p = (kh % 2) * 2 + (kw % 2)            # stride-2 phase of this tap
            s = (kh // 2) * GW + (kw // 2)         # lane offset within that phase
            t = kh * 7 + kw
            x1s_ref[t * 8:(t + 1) * 8, :] = xph_ref[p, :, s:s + L1P]

    # ---- conv1 as a single MXU matmul: (16, 392) @ (392, 896) ----
    w1 = prm_ref[:, W1_OFF:W1_OFF + K1]            # (16, 392), rows 10..15 zero
    v1 = jnp.dot(w1, x1s_ref[...], preferred_element_type=jnp.float32)   # (16, 896)
    b1 = prm_ref[:, B1_OFF:B1_OFF + 1]             # (16, 1), -0.1 folded in
    m1 = prm_ref[0:1, M_OFF:M_OFF + L1P]           # (1, 896) valid-lane mask
    v3 = jnp.maximum(v1 + b1, 0.0) * m1            # junk/wrap lanes forced to zero

    # ---- place into padded conv2 grid; zero only the pad regions ----
    v3p_ref[:, 0:PAD_OFF] = jnp.zeros((16, PAD_OFF), jnp.float32)
    v3p_ref[:, PAD_OFF + L1P:V3P_LEN] = jnp.zeros(
        (16, V3P_LEN - PAD_OFF - L1P), jnp.float32)
    v3p_ref[:, PAD_OFF:PAD_OFF + L1P] = v3          # interior zeros come from the mask

    # ---- stage conv2 taps: stacked RHS (144, 1024), aligned copies ----
    for kh in range(3):
        for kw in range(3):
            s = kh * GW + kw
            t = kh * 3 + kw
            x2s_ref[t * 16:(t + 1) * 16, :] = v3p_ref[:, s:s + L2P]

    # ---- conv2 as a single MXU matmul: (16, 144) @ (144, 1024) + epilogue ----
    w2 = prm_ref[:, W2_OFF:W2_OFF + K2]            # (16, 144)
    b2 = prm_ref[:, B2_OFF:B2_OFF + 1]             # (16, 1), -0.5 folded in
    v4 = jnp.dot(w2, x2s_ref[...], preferred_element_type=jnp.float32)   # (16, 1024)
    o_ref[...] = jnp.maximum(v4 + b2, 0.0)         # single full-width, unmasked store


# ---------------------------------------------------------------------------
# Host-side packing (x-independent part hoisted out of the per-call path)
# ---------------------------------------------------------------------------
def pack_params(w1, b1, w2, b2):
    # conv1 weights -> (16, 392): [o, (kh*7+kw)*8 + c], channels padded 3->8, out 10->16
    w1t = jnp.transpose(w1, (2, 3, 1, 0))                      # (7, 7, 3, 10)
    w1t = jnp.pad(w1t, ((0, 0), (0, 0), (0, 5), (0, 6)))       # (7, 7, 8, 16)
    w1s = w1t.reshape(K1, 16).T                                 # (16, 392)
    # conv2 weights -> (16, 144): [o, (kh*3+kw)*16 + c], channels padded 10->16
    w2t = jnp.transpose(w2, (2, 3, 1, 0))                      # (3, 3, 10, 16)
    w2t = jnp.pad(w2t, ((0, 0), (0, 0), (0, 6), (0, 0)))       # (3, 3, 16, 16)
    w2s = w2t.reshape(K2, 16).T                                 # (16, 144)
    # biases with the constant subtractions folded in
    b1f = jnp.pad(b1 - 0.1, (0, 6)).reshape(16, 1)
    b2f = (b2 - 0.5).reshape(16, 1)
    # valid-lane mask for the conv1 result (kills per-row wrap lanes and the >=833 tail)
    q = np.arange(L1P)
    m = (((q % GW) < OW1) & (q < L1)).astype(np.float32)
    mrow = np.zeros((16, L1P), np.float32)
    mrow[0] = m
    return jnp.concatenate([w1s, w2s, b1f, b2f, jnp.asarray(mrow)], axis=1)  # (16, 1434)


def pack_input(x):
    # x: (1, 3, 56, 56) NCHW -> stride-2 phase decomposition on a 31-wide row grid,
    # channels zero-padded to 8, lanes zero-padded to 1024.
    x0 = x[0]                                                   # (3, 56, 56)
    xp = jnp.pad(x0, ((0, 5), (2, 2), (2, 2)))                  # (8, 60, 60)
    ph = xp.reshape(8, 30, 2, 30, 2).transpose(2, 4, 0, 1, 3)   # (ph, pw, c, i, j)
    ph = jnp.pad(ph, ((0, 0), (0, 0), (0, 0), (0, 0), (0, 1)))  # (2, 2, 8, 30, 31)
    ph = ph.reshape(2, 2, 8, 30 * GW)                           # (2, 2, 8, 930)
    ph = jnp.pad(ph, ((0, 0), (0, 0), (0, 0), (0, PHLEN - 30 * GW)))
    return ph.reshape(4, 8, PHLEN)                              # (4, 8, 1024)


# ---------------------------------------------------------------------------
# Forward pass wrapper (one pallas_call, no grid)
# ---------------------------------------------------------------------------
def model_forward(x, params):
    xph = pack_input(x)

    res = pl.pallas_call(
        _fused_conv_kernel,
        out_shape=jax.ShapeDtypeStruct((16, L2P), jnp.float32),
        in_specs=[
            pl.BlockSpec((4, 8, PHLEN), lambda: (0, 0, 0)),
            pl.BlockSpec((16, P_LANES), lambda: (0, 0)),
        ],
        out_specs=pl.BlockSpec((16, L2P), lambda: (0, 0)),
        scratch_shapes=[
            pltpu.VMEM((K1, L1P), jnp.float32),     # stacked conv1 RHS (1.37 MB)
            pltpu.VMEM((16, V3P_LEN), jnp.float32),  # zero-padded conv2 input grid
            pltpu.VMEM((K2, L2P), jnp.float32),      # stacked conv2 RHS (0.56 MB)
        ],
    )(xph, params)

    # (16, 1024) channel-major -> keep 29x31 rows -> drop wrap columns -> (16, 29, 29)
    return res[:, :L2].reshape(16, OH2, GW)[:, :, :OW2]


# ---------------------------------------------------------------------------
# Pure-JAX reference (for sanity checking the kernel path)
# ---------------------------------------------------------------------------
def reference_forward(x, w1, b1, w2, b2):
    dn = ("NCHW", "OIHW", "NCHW")
    v1 = jax.lax.conv_general_dilated(
        x, w1, (2, 2), ((2, 2), (2, 2)), dimension_numbers=dn,
        precision=jax.lax.Precision.HIGHEST) + b1[None, :, None, None]
    v3 = jnp.maximum(v1 - 0.1, 0.0)
    v4 = jax.lax.conv_general_dilated(
        v3, w2, (1, 1), ((2, 2), (2, 2)), dimension_numbers=dn,
        precision=jax.lax.Precision.HIGHEST) + b2[None, :, None, None]
    v6 = jnp.maximum(v4 - 0.5, 0.0)
    return v6[0]


if __name__ == "__main__":
    key = jax.random.PRNGKey(0)
    kx, kw1, kb1, kw2, kb2 = jax.random.split(key, 5)

    # Input consistent with the module's own example input.
    x = jax.random.normal(kx, (1, 3, 56, 56), dtype=jnp.float32)

    # Deterministic synthetic parameters (PyTorch Conv2d weight layout O,Cin,KH,KW).
    w1 = 0.05 * jax.random.normal(kw1, (10, 3, 7, 7), dtype=jnp.float32)
    b1 = 0.05 * jax.random.normal(kb1, (10,), dtype=jnp.float32)
    w2 = 0.05 * jax.random.normal(kw2, (16, 10, 3, 3), dtype=jnp.float32)
    b2 = 0.05 * jax.random.normal(kb2, (16,), dtype=jnp.float32)

    # Parameter packing done ONCE (x-independent), outside the per-call path.
    params = jax.block_until_ready(pack_params(w1, b1, w2, b2))

    fwd = jax.jit(model_forward)
    out = jax.block_until_ready(fwd(x, params))
    assert out.shape == (16, 29, 29), out.shape

    ref = jax.block_until_ready(jax.jit(reference_forward)(x, w1, b1, w2, b2))
    max_err = float(jnp.max(jnp.abs(out - ref)))
    assert jnp.allclose(out, ref, rtol=1e-2, atol=1e-2), max_err

    print("KERNEL_OK")
</pallas_src>

<mosaic_0001>
module attributes {stable_mosaic.version = 11 : i64} {
  func.func @_fused_conv_kernel(%arg0: memref<4x8x1024xf32, #tpu.memory_space<vmem>>, %arg1: memref<16x1434xf32, #tpu.memory_space<vmem>>, %arg2: memref<16x1024xf32, #tpu.memory_space<vmem>>, %arg3: memref<392x896xf32, #tpu.memory_space<vmem>>, %arg4: memref<16x1088xf32, #tpu.memory_space<vmem>>, %arg5: memref<144x1024xf32, #tpu.memory_space<vmem>>) attributes {dimension_semantics = [], scalar_prefetch = 0 : i64, scratch_operands = 3 : i64, tpu.core_type = #tpu.core_type<tc>} {
    %c0 = arith.constant 0 : index
    %c0_0 = arith.constant 0 : index
    %c0_1 = arith.constant 0 : index
    %0 = vector.load %arg0[%c0, %c0_0, %c0_1] : memref<4x8x1024xf32, #tpu.memory_space<vmem>>, vector<1x8x896xf32>
    %1 = vector.shape_cast %0 : vector<1x8x896xf32> to vector<8x896xf32>
    %c0_2 = arith.constant 0 : index
    %c0_3 = arith.constant 0 : index
    %2 = vector.load %arg3[%c0_2, %c0_3] : memref<392x896xf32, #tpu.memory_space<vmem>>, vector<8x896xf32>
    tpu.vector_store %arg3[%c0_2, %c0_3], %1 {strides = array<i32>} : memref<392x896xf32, #tpu.memory_space<vmem>>, vector<8x896xf32>,
    %c1 = arith.constant 1 : index
    %c0_4 = arith.constant 0 : index
    %c0_5 = arith.constant 0 : index
    %3 = vector.load %arg0[%c1, %c0_4, %c0_5] : memref<4x8x1024xf32, #tpu.memory_space<vmem>>, vector<1x8x896xf32>
    %4 = vector.shape_cast %3 : vector<1x8x896xf32> to vector<8x896xf32>
    %c8 = arith.constant 8 : index
    %c0_6 = arith.constant 0 : index
    %5 = vector.load %arg3[%c8, %c0_6] : memref<392x896xf32, #tpu.memory_space<vmem>>, vector<8x896xf32>
    tpu.vector_store %arg3[%c8, %c0_6], %4 {strides = array<i32>} : memref<392x896xf32, #tpu.memory_space<vmem>>, vector<8x896xf32>,
    %c0_7 = arith.constant 0 : index
    %c0_8 = arith.constant 0 : index
    %c1_9 = arith.constant 1 : index
    %6 = vector.load %arg0[%c0_7, %c0_8, %c1_9] : memref<4x8x1024xf32, #tpu.memory_space<vmem>>, vector<1x8x896xf32>
    %7 = vector.shape_cast %6 : vector<1x8x896xf32> to vector<8x896xf32>
    %c16 = arith.constant 16 : index
    %c0_10 = arith.constant 0 : index
    %8 = vector.load %arg3[%c16, %c0_10] : memref<392x896xf32, #tpu.memory_space<vmem>>, vector<8x896xf32>
    tpu.vector_store %arg3[%c16, %c0_10], %7 {strides = array<i32>} : memref<392x896xf32, #tpu.memory_space<vmem>>, vector<8x896xf32>,
    %c1_11 = arith.constant 1 : index
    %c0_12 = arith.constant 0 : index
    %c1_13 = arith.constant 1 : index
    %9 = vector.load %arg0[%c1_11, %c0_12, %c1_13] : memref<4x8x1024xf32, #tpu.memory_space<vmem>>, vector<1x8x896xf32>
    %10 = vector.shape_cast %9 : vector<1x8x896xf32> to vector<8x896xf32>
    %c24 = arith.constant 24 : index
    %c0_14 = arith.constant 0 : index
    %11 = vector.load %arg3[%c24, %c0_14] : memref<392x896xf32, #tpu.memory_space<vmem>>, vector<8x896xf32>
    tpu.vector_store %arg3[%c24, %c0_14], %10 {strides = array<i32>} : memref<392x896xf32, #tpu.memory_space<vmem>>, vector<8x896xf32>,
    %c0_15 = arith.constant 0 : index
    %c0_16 = arith.constant 0 : index
    %c2 = arith.constant 2 : index
    %12 = vector.load %arg0[%c0_15, %c0_16, %c2] : memref<4x8x1024xf32, #tpu.memory_space<vmem>>, vector<1x8x896xf32>
    %13 = vector.shape_cast %12 : vector<1x8x896xf32> to vector<8x896xf32>
    %c32 = arith.constant 32 : index
    %c0_17 = arith.constant 0 : index
    %14 = vector.load %arg3[%c32, %c0_17] : memref<392x896xf32, #tpu.memory_space<vmem>>, vector<8x896xf32>
    tpu.vector_store %arg3[%c32, %c0_17], %13 {strides = array<i32>} : memref<392x896xf32, #tpu.memory_space<vmem>>, vector<8x896xf32>,
    %c1_18 = arith.constant 1 : index
    %c0_19 = arith.constant 0 : index
    %c2_20 = arith.constant 2 : index
    %15 = vector.load %arg0[%c1_18, %c0_19, %c2_20] : memref<4x8x1024xf32, #tpu.memory_space<vmem>>, vector<1x8x896xf32>
    %16 = vector.shape_cast %15 : vector<1x8x896xf32> to vector<8x896xf32>
    %c40 = arith.constant 40 : index
    %c0_21 = arith.constant 0 : index
    %17 = vector.load %arg3[%c40, %c0_21] : memref<392x896xf32, #tpu.memory_space<vmem>>, vector<8x896xf32>
    tpu.vector_store %arg3[%c40, %c0_21], %16 {strides = array<i32>} : memref<392x896xf32, #tpu.memory_space<vmem>>, vector<8x896xf32>,
    %c0_22 = arith.constant 0 : index
    %c0_23 = arith.constant 0 : index
    %c3 = arith.constant 3 : index
    %18 = vector.load %arg0[%c0_22, %c0_23, %c3] : memref<4x8x1024xf32, #tpu.memory_space<vmem>>, vector<1x8x896xf32>
    %19 = vector.shape_cast %18 : vector<1x8x896xf32> to vector<8x896xf32>
    %c48 = arith.constant 48 : index
    %c0_24 = arith.constant 0 : index
    %20 = vector.load %arg3[%c48, %c0_24] : memref<392x896xf32, #tpu.memory_space<vmem>>, vector<8x896xf32>
    tpu.vector_store %arg3[%c48, %c0_24], %19 {strides = array<i32>} : memref<392x896xf32, #tpu.memory_space<vmem>>, vector<8x896xf32>,
    %c2_25 = arith.constant 2 : index
    %c0_26 = arith.constant 0 : index
    %c0_27 = arith.constant 0 : index
    %21 = vector.load %arg0[%c2_25, %c0_26, %c0_27] : memref<4x8x1024xf32, #tpu.memory_space<vmem>>, vector<1x8x896xf32>
    %22 = vector.shape_cast %21 : vector<1x8x896xf32> to vector<8x896xf32>
    %c56 = arith.constant 56 : index
    %c0_28 = arith.constant 0 : index
    %23 = vector.load %arg3[%c56, %c0_28] : memref<392x896xf32, #tpu.memory_space<vmem>>, vector<8x896xf32>
    tpu.vector_store %arg3[%c56, %c0_28], %22 {strides = array<i32>} : memref<392x896xf32, #tpu.memory_space<vmem>>, vector<8x896xf32>,
    %c3_29 = arith.constant 3 : index
    %c0_30 = arith.constant 0 : index
    %c0_31 = arith.constant 0 : index
    %24 = vector.load %arg0[%c3_29, %c0_30, %c0_31] : memref<4x8x1024xf32, #tpu.memory_space<vmem>>, vector<1x8x896xf32>
    %25 = vector.shape_cast %24 : vector<1x8x896xf32> to vector<8x896xf32>
    %c64 = arith.constant 64 : index
    %c0_32 = arith.constant 0 : index
    %26 = vector.load %arg3[%c64, %c0_32] : memref<392x896xf32, #tpu.memory_space<vmem>>, vector<8x896xf32>
    tpu.vector_store %arg3[%c64, %c0_32], %25 {strides = array<i32>} : memref<392x896xf32, #tpu.memory_space<vmem>>, vector<8x896xf32>,
    %c2_33 = arith.constant 2 : index
    %c0_34 = arith.constant 0 : index
    %c1_35 = arith.constant 1 : index
    %27 = vector.load %arg0[%c2_33, %c0_34, %c1_35] : memref<4x8x1024xf32, #tpu.memory_space<vmem>>, vector<1x8x896xf32>
    %28 = vector.shape_cast %27 : vector<1x8x896xf32> to vector<8x896xf32>
    %c72 = arith.constant 72 : index
    %c0_36 = arith.constant 0 : index
    %29 = vector.load %arg3[%c72, %c0_36] : memref<392x896xf32, #tpu.memory_space<vmem>>, vector<8x896xf32>
    tpu.vector_store %arg3[%c72, %c0_36], %28 {strides = array<i32>} : memref<392x896xf32, #tpu.memory_space<vmem>>, vector<8x896xf32>,
    %c3_37 = arith.constant 3 : index
    %c0_38 = arith.constant 0 : index
    %c1_39 = arith.constant 1 : index
    %30 = vector.load %arg0[%c3_37, %c0_38, %c1_39] : memref<4x8x1024xf32, #tpu.memory_space<vmem>>, vector<1x8x896xf32>
    %31 = vector.shape_cast %30 : vector<1x8x896xf32> to vector<8x896xf32>
    %c80 = arith.constant 80 : index
    %c0_40 = arith.constant 0 : index
    %32 = vector.load %arg3[%c80, %c0_40] : memref<392x896xf32, #tpu.memory_space<vmem>>, vector<8x896xf32>
    tpu.vector_store %arg3[%c80, %c0_40], %31 {strides = array<i32>} : memref<392x896xf32, #tpu.memory_space<vmem>>, vector<8x896xf32>,
    %c2_41 = arith.constant 2 : index
    %c0_42 = arith.constant 0 : index
    %c2_43 = arith.constant 2 : index
    %33 = vector.load %arg0[%c2_41, %c0_42, %c2_43] : memref<4x8x1024xf32, #tpu.memory_space<vmem>>, vector<1x8x896xf32>
    %34 = vector.shape_cast %33 : vector<1x8x896xf32> to vector<8x896xf32>
    %c88 = arith.constant 88 : index
    %c0_44 = arith.constant 0 : index
    %35 = vector.load %arg3[%c88, %c0_44] : memref<392x896xf32, #tpu.memory_space<vmem>>, vector<8x896xf32>
    tpu.vector_store %arg3[%c88, %c0_44], %34 {strides = array<i32>} : memref<392x896xf32, #tpu.memory_space<vmem>>, vector<8x896xf32>,
    %c3_45 = arith.constant 3 : index
    %c0_46 = arith.constant 0 : index
    %c2_47 = arith.constant 2 : index
    %36 = vector.load %arg0[%c3_45, %c0_46, %c2_47] : memref<4x8x1024xf32, #tpu.memory_space<vmem>>, vector<1x8x896xf32>
    %37 = vector.shape_cast %36 : vector<1x8x896xf32> to vector<8x896xf32>
    %c96 = arith.constant 96 : index
    %c0_48 = arith.constant 0 : index
    %38 = vector.load %arg3[%c96, %c0_48] : memref<392x896xf32, #tpu.memory_space<vmem>>, vector<8x896xf32>
    tpu.vector_store %arg3[%c96, %c0_48], %37 {strides = array<i32>} : memref<392x896xf32, #tpu.memory_space<vmem>>, vector<8x896xf32>,
    %c2_49 = arith.constant 2 : index
    %c0_50 = arith.constant 0 : index
    %c3_51 = arith.constant 3 : index
    %39 = vector.load %arg0[%c2_49, %c0_50, %c3_51] : memref<4x8x1024xf32, #tpu.memory_space<vmem>>, vector<1x8x896xf32>
    %40 = vector.shape_cast %39 : vector<1x8x896xf32> to vector<8x896xf32>
    %c104 = arith.constant 104 : index
    %c0_52 = arith.constant 0 : index
    %41 = vector.load %arg3[%c104, %c0_52] : memref<392x896xf32, #tpu.memory_space<vmem>>, vector<8x896xf32>
    tpu.vector_store %arg3[%c104, %c0_52], %40 {strides = array<i32>} : memref<392x896xf32, #tpu.memory_space<vmem>>, vector<8x896xf32>,
    %c0_53 = arith.constant 0 : index
    %c0_54 = arith.constant 0 : index
    %c31 = arith.constant 31 : index
    %42 = vector.load %arg0[%c0_53, %c0_54, %c31] : memref<4x8x1024xf32, #tpu.memory_space<vmem>>, vector<1x8x896xf32>
    %43 = vector.shape_cast %42 : vector<1x8x896xf32> to vector<8x896xf32>
    %c112 = arith.constant 112 : index
    %c0_55 = arith.constant 0 : index
    %44 = vector.load %arg3[%c112, %c0_55] : memref<392x896xf32, #tpu.memory_space<vmem>>, vector<8x896xf32>
    tpu.vector_store %arg3[%c112, %c0_55], %43 {strides = array<i32>} : memref<392x896xf32, #tpu.memory_space<vmem>>, vector<8x896xf32>,
    %c1_56 = arith.constant 1 : index
    %c0_57 = arith.constant 0 : index
    %c31_58 = arith.constant 31 : index
    %45 = vector.load %arg0[%c1_56, %c0_57, %c31_58] : memref<4x8x1024xf32, #tpu.memory_space<vmem>>, vector<1x8x896xf32>
    %46 = vector.shape_cast %45 : vector<1x8x896xf32> to vector<8x896xf32>
    %c120 = arith.constant 120 : index
    %c0_59 = arith.constant 0 : index
    %47 = vector.load %arg3[%c120, %c0_59] : memref<392x896xf32, #tpu.memory_space<vmem>>, vector<8x896xf32>
    tpu.vector_store %arg3[%c120, %c0_59], %46 {strides = array<i32>} : memref<392x896xf32, #tpu.memory_space<vmem>>, vector<8x896xf32>,
    %c0_60 = arith.constant 0 : index
    %c0_61 = arith.constant 0 : index
    %c32_62 = arith.constant 32 : index
    %48 = vector.load %arg0[%c0_60, %c0_61, %c32_62] : memref<4x8x1024xf32, #tpu.memory_space<vmem>>, vector<1x8x896xf32>
    %49 = vector.shape_cast %48 : vector<1x8x896xf32> to vector<8x896xf32>
    %c128 = arith.constant 128 : index
    %c0_63 = arith.constant 0 : index
    %50 = vector.load %arg3[%c128, %c0_63] : memref<392x896xf32, #tpu.memory_space<vmem>>, vector<8x896xf32>
    tpu.vector_store %arg3[%c128, %c0_63], %49 {strides = array<i32>} : memref<392x896xf32, #tpu.memory_space<vmem>>, vector<8x896xf32>,
    %c1_64 = arith.constant 1 : index
    %c0_65 = arith.constant 0 : index
    %c32_66 = arith.constant 32 : index
    %51 = vector.load %arg0[%c1_64, %c0_65, %c32_66] : memref<4x8x1024xf32, #tpu.memory_space<vmem>>, vector<1x8x896xf32>
    %52 = vector.shape_cast %51 : vector<1x8x896xf32> to vector<8x896xf32>
    %c136 = arith.constant 136 : index
    %c0_67 = arith.constant 0 : index
    %53 = vector.load %arg3[%c136, %c0_67] : memref<392x896xf32, #tpu.memory_space<vmem>>, vector<8x896xf32>
    tpu.vector_store %arg3[%c136, %c0_67], %52 {strides = array<i32>} : memref<392x896xf32, #tpu.memory_space<vmem>>, vector<8x896xf32>,
    %c0_68 = arith.constant 0 : index
    %c0_69 = arith.constant 0 : index
    %c33 = arith.constant 33 : index
    %54 = vector.load %arg0[%c0_68, %c0_69, %c33] : memref<4x8x1024xf32, #tpu.memory_space<vmem>>, vector<1x8x896xf32>
    %55 = vector.shape_cast %54 : vector<1x8x896xf32> to vector<8x896xf32>
    %c144 = arith.constant 144 : index
    %c0_70 = arith.constant 0 : index
    %56 = vector.load %arg3[%c144, %c0_70] : memref<392x896xf32, #tpu.memory_space<vmem>>, vector<8x896xf32>
    tpu.vector_store %arg3[%c144, %c0_70], %55 {strides = array<i32>} : memref<392x896xf32, #tpu.memory_space<vmem>>, vector<8x896xf32>,
    %c1_71 = arith.constant 1 : index
    %c0_72 = arith.constant 0 : index
    %c33_73 = arith.constant 33 : index
    %57 = vector.load %arg0[%c1_71, %c0_72, %c33_73] : memref<4x8x1024xf32, #tpu.memory_space<vmem>>, vector<1x8x896xf32>
    %58 = vector.shape_cast %57 : vector<1x8x896xf32> to vector<8x896xf32>
    %c152 = arith.constant 152 : index
    %c0_74 = arith.constant 0 : index
    %59 = vector.load %arg3[%c152, %c0_74] : memref<392x896xf32, #tpu.memory_space<vmem>>, vector<8x896xf32>
    tpu.vector_store %arg3[%c152, %c0_74], %58 {strides = array<i32>} : memref<392x896xf32, #tpu.memory_space<vmem>>, vector<8x896xf32>,
    %c0_75 = arith.constant 0 : index
    %c0_76 = arith.constant 0 : index
    %c34 = arith.constant 34 : index
    %60 = vector.load %arg0[%c0_75, %c0_76, %c34] : memref<4x8x1024xf32, #tpu.memory_space<vmem>>, vector<1x8x896xf32>
    %61 = vector.shape_cast %60 : vector<1x8x896xf32> to vector<8x896xf32>
    %c160 = arith.constant 160 : index
    %c0_77 = arith.constant 0 : index
    %62 = vector.load %arg3[%c160, %c0_77] : memref<392x896xf32, #tpu.memory_space<vmem>>, vector<8x896xf32>
    tpu.vector_store %arg3[%c160, %c0_77], %61 {strides = array<i32>} : memref<392x896xf32, #tpu.memory_space<vmem>>, vector<8x896xf32>,
    %c2_78 = arith.constant 2 : index
    %c0_79 = arith.constant 0 : index
    %c31_80 = arith.constant 31 : index
    %63 = vector.load %arg0[%c2_78, %c0_79, %c31_80] : memref<4x8x1024xf32, #tpu.memory_space<vmem>>, vector<1x8x896xf32>
    %64 = vector.shape_cast %63 : vector<1x8x896xf32> to vector<8x896xf32>
    %c168 = arith.constant 168 : index
    %c0_81 = arith.constant 0 : index
    %65 = vector.load %arg3[%c168, %c0_81] : memref<392x896xf32, #tpu.memory_space<vmem>>, vector<8x896xf32>
    tpu.vector_store %arg3[%c168, %c0_81], %64 {strides = array<i32>} : memref<392x896xf32, #tpu.memory_space<vmem>>, vector<8x896xf32>,
    %c3_82 = arith.constant 3 : index
    %c0_83 = arith.constant 0 : index
    %c31_84 = arith.constant 31 : index
    %66 = vector.load %arg0[%c3_82, %c0_83, %c31_84] : memref<4x8x1024xf32, #tpu.memory_space<vmem>>, vector<1x8x896xf32>
    %67 = vector.shape_cast %66 : vector<1x8x896xf32> to vector<8x896xf32>
    %c176 = arith.constant 176 : index
    %c0_85 = arith.constant 0 : index
    %68 = vector.load %arg3[%c176, %c0_85] : memref<392x896xf32, #tpu.memory_space<vmem>>, vector<8x896xf32>
    tpu.vector_store %arg3[%c176, %c0_85], %67 {strides = array<i32>} : memref<392x896xf32, #tpu.memory_space<vmem>>, vector<8x896xf32>,
    %c2_86 = arith.constant 2 : index
    %c0_87 = arith.constant 0 : index
    %c32_88 = arith.constant 32 : index
    %69 = vector.load %arg0[%c2_86, %c0_87, %c32_88] : memref<4x8x1024xf32, #tpu.memory_space<vmem>>, vector<1x8x896xf32>
    %70 = vector.shape_cast %69 : vector<1x8x896xf32> to vector<8x896xf32>
    %c184 = arith.constant 184 : index
    %c0_89 = arith.constant 0 : index
    %71 = vector.load %arg3[%c184, %c0_89] : memref<392x896xf32, #tpu.memory_space<vmem>>, vector<8x896xf32>
    tpu.vector_store %arg3[%c184, %c0_89], %70 {strides = array<i32>} : memref<392x896xf32, #tpu.memory_space<vmem>>, vector<8x896xf32>,
    %c3_90 = arith.constant 3 : index
    %c0_91 = arith.constant 0 : index
    %c32_92 = arith.constant 32 : index
    %72 = vector.load %arg0[%c3_90, %c0_91, %c32_92] : memref<4x8x1024xf32, #tpu.memory_space<vmem>>, vector<1x8x896xf32>
    %73 = vector.shape_cast %72 : vector<1x8x896xf32> to vector<8x896xf32>
    %c192 = arith.constant 192 : index
    %c0_93 = arith.constant 0 : index
    %74 = vector.load %arg3[%c192, %c0_93] : memref<392x896xf32, #tpu.memory_space<vmem>>, vector<8x896xf32>
    tpu.vector_store %arg3[%c192, %c0_93], %73 {strides = array<i32>} : memref<392x896xf32, #tpu.memory_space<vmem>>, vector<8x896xf32>,
    %c2_94 = arith.constant 2 : index
    %c0_95 = arith.constant 0 : index
    %c33_96 = arith.constant 33 : index
    %75 = vector.load %arg0[%c2_94, %c0_95, %c33_96] : memref<4x8x1024xf32, #tpu.memory_space<vmem>>, vector<1x8x896xf32>
    %76 = vector.shape_cast %75 : vector<1x8x896xf32> to vector<8x896xf32>
    %c200 = arith.constant 200 : index
    %c0_97 = arith.constant 0 : index
    %77 = vector.load %arg3[%c200, %c0_97] : memref<392x896xf32, #tpu.memory_space<vmem>>, vector<8x896xf32>
    tpu.vector_store %arg3[%c200, %c0_97], %76 {strides = array<i32>} : memref<392x896xf32, #tpu.memory_space<vmem>>, vector<8x896xf32>,
    %c3_98 = arith.constant 3 : index
    %c0_99 = arith.constant 0 : index
    %c33_100 = arith.constant 33 : index
    %78 = vector.load %arg0[%c3_98, %c0_99, %c33_100] : memref<4x8x1024xf32, #tpu.memory_space<vmem>>, vector<1x8x896xf32>
    %79 = vector.shape_cast %78 : vector<1x8x896xf32> to vector<8x896xf32>
    %c208 = arith.constant 208 : index
    %c0_101 = arith.constant 0 : index
    %80 = vector.load %arg3[%c208, %c0_101] : memref<392x896xf32, #tpu.memory_space<vmem>>, vector<8x896xf32>
    tpu.vector_store %arg3[%c208, %c0_101], %79 {strides = array<i32>} : memref<392x896xf32, #tpu.memory_space<vmem>>, vector<8x896xf32>,
    %c2_102 = arith.constant 2 : index
    %c0_103 = arith.constant 0 : index
    %c34_104 = arith.constant 34 : index
    %81 = vector.load %arg0[%c2_102, %c0_103, %c34_104] : memref<4x8x1024xf32, #tpu.memory_space<vmem>>, vector<1x8x896xf32>
    %82 = vector.shape_cast %81 : vector<1x8x896xf32> to vector<8x896xf32>
    %c216 = arith.constant 216 : index
    %c0_105 = arith.constant 0 : index
    %83 = vector.load %arg3[%c216, %c0_105] : memref<392x896xf32, #tpu.memory_space<vmem>>, vector<8x896xf32>
    tpu.vector_store %arg3[%c216, %c0_105], %82 {strides = array<i32>} : memref<392x896xf32, #tpu.memory_space<vmem>>, vector<8x896xf32>,
    %c0_106 = arith.constant 0 : index
    %c0_107 = arith.constant 0 : index
    %c62 = arith.constant 62 : index
    %84 = vector.load %arg0[%c0_106, %c0_107, %c62] : memref<4x8x1024xf32, #tpu.memory_space<vmem>>, vector<1x8x896xf32>
    %85 = vector.shape_cast %84 : vector<1x8x896xf32> to vector<8x896xf32>
    %c224 = arith.constant 224 : index
    %c0_108 = arith.constant 0 : index
    %86 = vector.load %arg3[%c224, %c0_108] : memref<392x896xf32, #tpu.memory_space<vmem>>, vector<8x896xf32>
    tpu.vector_store %arg3[%c224, %c0_108], %85 {strides = array<i32>} : memref<392x896xf32, #tpu.memory_space<vmem>>, vector<8x896xf32>,
    %c1_109 = arith.constant 1 : index
    %c0_110 = arith.constant 0 : index
    %c62_111 = arith.constant 62 : index
    %87 = vector.load %arg0[%c1_109, %c0_110, %c62_111] : memref<4x8x1024xf32, #tpu.memory_space<vmem>>, vector<1x8x896xf32>
    %88 = vector.shape_cast %87 : vector<1x8x896xf32> to vector<8x896xf32>
    %c232 = arith.constant 232 : index
    %c0_112 = arith.constant 0 : index
    %89 = vector.load %arg3[%c232, %c0_112] : memref<392x896xf32, #tpu.memory_space<vmem>>, vector<8x896xf32>
    tpu.vector_store %arg3[%c232, %c0_112], %88 {strides = array<i32>} : memref<392x896xf32, #tpu.memory_space<vmem>>, vector<8x896xf32>,
    %c0_113 = arith.constant 0 : index
    %c0_114 = arith.constant 0 : index
    %c63 = arith.constant 63 : index
    %90 = vector.load %arg0[%c0_113, %c0_114, %c63] : memref<4x8x1024xf32, #tpu.memory_space<vmem>>, vector<1x8x896xf32>
    %91 = vector.shape_cast %90 : vector<1x8x896xf32> to vector<8x896xf32>
    %c240 = arith.constant 240 : index
    %c0_115 = arith.constant 0 : index
    %92 = vector.load %arg3[%c240, %c0_115] : memref<392x896xf32, #tpu.memory_space<vmem>>, vector<8x896xf32>
    tpu.vector_store %arg3[%c240, %c0_115], %91 {strides = array<i32>} : memref<392x896xf32, #tpu.memory_space<vmem>>, vector<8x896xf32>,
    %c1_116 = arith.constant 1 : index
    %c0_117 = arith.constant 0 : index
    %c63_118 = arith.constant 63 : index
    %93 = vector.load %arg0[%c1_116, %c0_117, %c63_118] : memref<4x8x1024xf32, #tpu.memory_space<vmem>>, vector<1x8x896xf32>
    %94 = vector.shape_cast %93 : vector<1x8x896xf32> to vector<8x896xf32>
    %c248 = arith.constant 248 : index
    %c0_119 = arith.constant 0 : index
    %95 = vector.load %arg3[%c248, %c0_119] : memref<392x896xf32, #tpu.memory_space<vmem>>, vector<8x896xf32>
    tpu.vector_store %arg3[%c248, %c0_119], %94 {strides = array<i32>} : memref<392x896xf32, #tpu.memory_space<vmem>>, vector<8x896xf32>,
    %c0_120 = arith.constant 0 : index
    %c0_121 = arith.constant 0 : index
    %c64_122 = arith.constant 64 : index
    %96 = vector.load %arg0[%c0_120, %c0_121, %c64_122] : memref<4x8x1024xf32, #tpu.memory_space<vmem>>, vector<1x8x896xf32>
    %97 = vector.shape_cast %96 : vector<1x8x896xf32> to vector<8x896xf32>
    %c256 = arith.constant 256 : index
    %c0_123 = arith.constant 0 : index
    %98 = vector.load %arg3[%c256, %c0_123] : memref<392x896xf32, #tpu.memory_space<vmem>>, vector<8x896xf32>
    tpu.vector_store %arg3[%c256, %c0_123], %97 {strides = array<i32>} : memref<392x896xf32, #tpu.memory_space<vmem>>, vector<8x896xf32>,
    %c1_124 = arith.constant 1 : index
    %c0_125 = arith.constant 0 : index
    %c64_126 = arith.constant 64 : index
    %99 = vector.load %arg0[%c1_124, %c0_125, %c64_126] : memref<4x8x1024xf32, #tpu.memory_space<vmem>>, vector<1x8x896xf32>
    %100 = vector.shape_cast %99 : vector<1x8x896xf32> to vector<8x896xf32>
    %c264 = arith.constant 264 : index
    %c0_127 = arith.constant 0 : index
    %101 = vector.load %arg3[%c264, %c0_127] : memref<392x896xf32, #tpu.memory_space<vmem>>, vector<8x896xf32>
    tpu.vector_store %arg3[%c264, %c0_127], %100 {strides = array<i32>} : memref<392x896xf32, #tpu.memory_space<vmem>>, vector<8x896xf32>,
    %c0_128 = arith.constant 0 : index
    %c0_129 = arith.constant 0 : index
    %c65 = arith.constant 65 : index
    %102 = vector.load %arg0[%c0_128, %c0_129, %c65] : memref<4x8x1024xf32, #tpu.memory_space<vmem>>, vector<1x8x896xf32>
    %103 = vector.shape_cast %102 : vector<1x8x896xf32> to vector<8x896xf32>
    %c272 = arith.constant 272 : index
    %c0_130 = arith.constant 0 : index
    %104 = vector.load %arg3[%c272, %c0_130] : memref<392x896xf32, #tpu.memory_space<vmem>>, vector<8x896xf32>
    tpu.vector_store %arg3[%c272, %c0_130], %103 {strides = array<i32>} : memref<392x896xf32, #tpu.memory_space<vmem>>, vector<8x896xf32>,
    %c2_131 = arith.constant 2 : index
    %c0_132 = arith.constant 0 : index
    %c62_133 = arith.constant 62 : index
    %105 = vector.load %arg0[%c2_131, %c0_132, %c62_133] : memref<4x8x1024xf32, #tpu.memory_space<vmem>>, vector<1x8x896xf32>
    %106 = vector.shape_cast %105 : vector<1x8x896xf32> to vector<8x896xf32>
    %c280 = arith.constant 280 : index
    %c0_134 = arith.constant 0 : index
    %107 = vector.load %arg3[%c280, %c0_134] : memref<392x896xf32, #tpu.memory_space<vmem>>, vector<8x896xf32>
    tpu.vector_store %arg3[%c280, %c0_134], %106 {strides = array<i32>} : memref<392x896xf32, #tpu.memory_space<vmem>>, vector<8x896xf32>,
    %c3_135 = arith.constant 3 : index
    %c0_136 = arith.constant 0 : index
    %c62_137 = arith.constant 62 : index
    %108 = vector.load %arg0[%c3_135, %c0_136, %c62_137] : memref<4x8x1024xf32, #tpu.memory_space<vmem>>, vector<1x8x896xf32>
    %109 = vector.shape_cast %108 : vector<1x8x896xf32> to vector<8x896xf32>
    %c288 = arith.constant 288 : index
    %c0_138 = arith.constant 0 : index
    %110 = vector.load %arg3[%c288, %c0_138] : memref<392x896xf32, #tpu.memory_space<vmem>>, vector<8x896xf32>
    tpu.vector_store %arg3[%c288, %c0_138], %109 {strides = array<i32>} : memref<392x896xf32, #tpu.memory_space<vmem>>, vector<8x896xf32>,
    %c2_139 = arith.constant 2 : index
    %c0_140 = arith.constant 0 : index
    %c63_141 = arith.constant 63 : index
    %111 = vector.load %arg0[%c2_139, %c0_140, %c63_141] : memref<4x8x1024xf32, #tpu.memory_space<vmem>>, vector<1x8x896xf32>
    %112 = vector.shape_cast %111 : vector<1x8x896xf32> to vector<8x896xf32>
    %c296 = arith.constant 296 : index
    %c0_142 = arith.constant 0 : index
    %113 = vector.load %arg3[%c296, %c0_142] : memref<392x896xf32, #tpu.memory_space<vmem>>, vector<8x896xf32>
    tpu.vector_store %arg3[%c296, %c0_142], %112 {strides = array<i32>} : memref<392x896xf32, #tpu.memory_space<vmem>>, vector<8x896xf32>,
    %c3_143 = arith.constant 3 : index
    %c0_144 = arith.constant 0 : index
    %c63_145 = arith.constant 63 : index
    %114 = vector.load %arg0[%c3_143, %c0_144, %c63_145] : memref<4x8x1024xf32, #tpu.memory_space<vmem>>, vector<1x8x896xf32>
    %115 = vector.shape_cast %114 : vector<1x8x896xf32> to vector<8x896xf32>
    %c304 = arith.constant 304 : index
    %c0_146 = arith.constant 0 : index
    %116 = vector.load %arg3[%c304, %c0_146] : memref<392x896xf32, #tpu.memory_space<vmem>>, vector<8x896xf32>
    tpu.vector_store %arg3[%c304, %c0_146], %115 {strides = array<i32>} : memref<392x896xf32, #tpu.memory_space<vmem>>, vector<8x896xf32>,
    %c2_147 = arith.constant 2 : index
    %c0_148 = arith.constant 0 : index
    %c64_149 = arith.constant 64 : index
    %117 = vector.load %arg0[%c2_147, %c0_148, %c64_149] : memref<4x8x1024xf32, #tpu.memory_space<vmem>>, vector<1x8x896xf32>
    %118 = vector.shape_cast %117 : vector<1x8x896xf32> to vector<8x896xf32>
    %c312 = arith.constant 312 : index
    %c0_150 = arith.constant 0 : index
    %119 = vector.load %arg3[%c312, %c0_150] : memref<392x896xf32, #tpu.memory_space<vmem>>, vector<8x896xf32>
    tpu.vector_store %arg3[%c312, %c0_150], %118 {strides = array<i32>} : memref<392x896xf32, #tpu.memory_space<vmem>>, vector<8x896xf32>,
    %c3_151 = arith.constant 3 : index
    %c0_152 = arith.constant 0 : index
    %c64_153 = arith.constant 64 : index
    %120 = vector.load %arg0[%c3_151, %c0_152, %c64_153] : memref<4x8x1024xf32, #tpu.memory_space<vmem>>, vector<1x8x896xf32>
    %121 = vector.shape_cast %120 : vector<1x8x896xf32> to vector<8x896xf32>
    %c320 = arith.constant 320 : index
    %c0_154 = arith.constant 0 : index
    %122 = vector.load %arg3[%c320, %c0_154] : memref<392x896xf32, #tpu.memory_space<vmem>>, vector<8x896xf32>
    tpu.vector_store %arg3[%c320, %c0_154], %121 {strides = array<i32>} : memref<392x896xf32, #tpu.memory_space<vmem>>, vector<8x896xf32>,
    %c2_155 = arith.constant 2 : index
    %c0_156 = arith.constant 0 : index
    %c65_157 = arith.constant 65 : index
    %123 = vector.load %arg0[%c2_155, %c0_156, %c65_157] : memref<4x8x1024xf32, #tpu.memory_space<vmem>>, vector<1x8x896xf32>
    %124 = vector.shape_cast %123 : vector<1x8x896xf32> to vector<8x896xf32>
    %c328 = arith.constant 328 : index
    %c0_158 = arith.constant 0 : index
    %125 = vector.load %arg3[%c328, %c0_158] : memref<392x896xf32, #tpu.memory_space<vmem>>, vector<8x896xf32>
    tpu.vector_store %arg3[%c328, %c0_158], %124 {strides = array<i32>} : memref<392x896xf32, #tpu.memory_space<vmem>>, vector<8x896xf32>,
    %c0_159 = arith.constant 0 : index
    %c0_160 = arith.constant 0 : index
    %c93 = arith.constant 93 : index
    %126 = vector.load %arg0[%c0_159, %c0_160, %c93] : memref<4x8x1024xf32, #tpu.memory_space<vmem>>, vector<1x8x896xf32>
    %127 = vector.shape_cast %126 : vector<1x8x896xf32> to vector<8x896xf32>
    %c336 = arith.constant 336 : index
    %c0_161 = arith.constant 0 : index
    %128 = vector.load %arg3[%c336, %c0_161] : memref<392x896xf32, #tpu.memory_space<vmem>>, vector<8x896xf32>
    tpu.vector_store %arg3[%c336, %c0_161], %127 {strides = array<i32>} : memref<392x896xf32, #tpu.memory_space<vmem>>, vector<8x896xf32>,
    %c1_162 = arith.constant 1 : index
    %c0_163 = arith.constant 0 : index
    %c93_164 = arith.constant 93 : index
    %129 = vector.load %arg0[%c1_162, %c0_163, %c93_164] : memref<4x8x1024xf32, #tpu.memory_space<vmem>>, vector<1x8x896xf32>
    %130 = vector.shape_cast %129 : vector<1x8x896xf32> to vector<8x896xf32>
    %c344 = arith.constant 344 : index
    %c0_165 = arith.constant 0 : index
    %131 = vector.load %arg3[%c344, %c0_165] : memref<392x896xf32, #tpu.memory_space<vmem>>, vector<8x896xf32>
    tpu.vector_store %arg3[%c344, %c0_165], %130 {strides = array<i32>} : memref<392x896xf32, #tpu.memory_space<vmem>>, vector<8x896xf32>,
    %c0_166 = arith.constant 0 : index
    %c0_167 = arith.constant 0 : index
    %c94 = arith.constant 94 : index
    %132 = vector.load %arg0[%c0_166, %c0_167, %c94] : memref<4x8x1024xf32, #tpu.memory_space<vmem>>, vector<1x8x896xf32>
    %133 = vector.shape_cast %132 : vector<1x8x896xf32> to vector<8x896xf32>
    %c352 = arith.constant 352 : index
    %c0_168 = arith.constant 0 : index
    %134 = vector.load %arg3[%c352, %c0_168] : memref<392x896xf32, #tpu.memory_space<vmem>>, vector<8x896xf32>
    tpu.vector_store %arg3[%c352, %c0_168], %133 {strides = array<i32>} : memref<392x896xf32, #tpu.memory_space<vmem>>, vector<8x896xf32>,
    %c1_169 = arith.constant 1 : index
    %c0_170 = arith.constant 0 : index
    %c94_171 = arith.constant 94 : index
    %135 = vector.load %arg0[%c1_169, %c0_170, %c94_171] : memref<4x8x1024xf32, #tpu.memory_space<vmem>>, vector<1x8x896xf32>
    %136 = vector.shape_cast %135 : vector<1x8x896xf32> to vector<8x896xf32>
    %c360 = arith.constant 360 : index
    %c0_172 = arith.constant 0 : index
    %137 = vector.load %arg3[%c360, %c0_172] : memref<392x896xf32, #tpu.memory_space<vmem>>, vector<8x896xf32>
    tpu.vector_store %arg3[%c360, %c0_172], %136 {strides = array<i32>} : memref<392x896xf32, #tpu.memory_space<vmem>>, vector<8x896xf32>,
    %c0_173 = arith.constant 0 : index
    %c0_174 = arith.constant 0 : index
    %c95 = arith.constant 95 : index
    %138 = vector.load %arg0[%c0_173, %c0_174, %c95] : memref<4x8x1024xf32, #tpu.memory_space<vmem>>, vector<1x8x896xf32>
    %139 = vector.shape_cast %138 : vector<1x8x896xf32> to vector<8x896xf32>
    %c368 = arith.constant 368 : index
    %c0_175 = arith.constant 0 : index
    %140 = vector.load %arg3[%c368, %c0_175] : memref<392x896xf32, #tpu.memory_space<vmem>>, vector<8x896xf32>
    tpu.vector_store %arg3[%c368, %c0_175], %139 {strides = array<i32>} : memref<392x896xf32, #tpu.memory_space<vmem>>, vector<8x896xf32>,
    %c1_176 = arith.constant 1 : index
    %c0_177 = arith.constant 0 : index
    %c95_178 = arith.constant 95 : index
    %141 = vector.load %arg0[%c1_176, %c0_177, %c95_178] : memref<4x8x1024xf32, #tpu.memory_space<vmem>>, vector<1x8x896xf32>
    %142 = vector.shape_cast %141 : vector<1x8x896xf32> to vector<8x896xf32>
    %c376 = arith.constant 376 : index
    %c0_179 = arith.constant 0 : index
    %143 = vector.load %arg3[%c376, %c0_179] : memref<392x896xf32, #tpu.memory_space<vmem>>, vector<8x896xf32>
    tpu.vector_store %arg3[%c376, %c0_179], %142 {strides = array<i32>} : memref<392x896xf32, #tpu.memory_space<vmem>>, vector<8x896xf32>,
    %c0_180 = arith.constant 0 : index
    %c0_181 = arith.constant 0 : index
    %c96_182 = arith.constant 96 : index
    %144 = vector.load %arg0[%c0_180, %c0_181, %c96_182] : memref<4x8x1024xf32, #tpu.memory_space<vmem>>, vector<1x8x896xf32>
    %145 = vector.shape_cast %144 : vector<1x8x896xf32> to vector<8x896xf32>
    %c384 = arith.constant 384 : index
    %c0_183 = arith.constant 0 : index
    %146 = vector.load %arg3[%c384, %c0_183] : memref<392x896xf32, #tpu.memory_space<vmem>>, vector<8x896xf32>
    tpu.vector_store %arg3[%c384, %c0_183], %145 {strides = array<i32>} : memref<392x896xf32, #tpu.memory_space<vmem>>, vector<8x896xf32>,
    %c0_184 = arith.constant 0 : index
    %c0_185 = arith.constant 0 : index
    %147 = vector.load %arg1[%c0_184, %c0_185] : memref<16x1434xf32, #tpu.memory_space<vmem>>, vector<16x392xf32>
    %c0_186 = arith.constant 0 : index
    %c0_187 = arith.constant 0 : index
    %148 = vector.load %arg3[%c0_186, %c0_187] : memref<392x896xf32, #tpu.memory_space<vmem>>, vector<392x896xf32>
    %cst = arith.constant dense<0.000000e+00> : vector<16x896xf32>
    %149 = tpu.matmul %147, %148, %cst {dimension_numbers = #tpu.dot_dimension_numbers<[1], [0], [0], [1], [0, 0, 1, 1], [], []>} : vector<16x392xf32>, vector<392x896xf32>, vector<16x896xf32> -> vector<16x896xf32>
    %c0_188 = arith.constant 0 : index
    %c536 = arith.constant 536 : index
    %150 = vector.load %arg1[%c0_188, %c536] : memref<16x1434xf32, #tpu.memory_space<vmem>>, vector<16x1xf32>
    %c0_189 = arith.constant 0 : index
    %c538 = arith.constant 538 : index
    %151 = vector.load %arg1[%c0_189, %c538] : memref<16x1434xf32, #tpu.memory_space<vmem>>, vector<1x896xf32>
    %152 = vector.broadcast %150 : vector<16x1xf32> to vector<16x896xf32>
    %153 = arith.addf %149, %152 : vector<16x896xf32>
    %cst_190 = arith.constant 0.000000e+00 : f32
    %154 = vector.broadcast %cst_190 : f32 to vector<16x896xf32>
    %155 = arith.maximumf %153, %154 : vector<16x896xf32>
    %156 = vector.broadcast %151 : vector<1x896xf32> to vector<16x896xf32>
    %157 = arith.mulf %155, %156 : vector<16x896xf32>
    %cst_191 = arith.constant 0.000000e+00 : f32
    %158 = vector.broadcast %cst_191 : f32 to vector<16x64xf32>
    %c0_192 = arith.constant 0 : index
    %c0_193 = arith.constant 0 : index
    %159 = vector.load %arg4[%c0_192, %c0_193] : memref<16x1088xf32, #tpu.memory_space<vmem>>, vector<16x64xf32>
    tpu.vector_store %arg4[%c0_192, %c0_193], %158 {strides = array<i32>} : memref<16x1088xf32, #tpu.memory_space<vmem>>, vector<16x64xf32>,
    %cst_194 = arith.constant 0.000000e+00 : f32
    %160 = vector.broadcast %cst_194 : f32 to vector<16x128xf32>
    %c0_195 = arith.constant 0 : index
    %c960 = arith.constant 960 : index
    %161 = vector.load %arg4[%c0_195, %c960] : memref<16x1088xf32, #tpu.memory_space<vmem>>, vector<16x128xf32>
    tpu.vector_store %arg4[%c0_195, %c960], %160 {strides = array<i32>} : memref<16x1088xf32, #tpu.memory_space<vmem>>, vector<16x128xf32>,
    %c0_196 = arith.constant 0 : index
    %c64_197 = arith.constant 64 : index
    %162 = vector.load %arg4[%c0_196, %c64_197] : memref<16x1088xf32, #tpu.memory_space<vmem>>, vector<16x896xf32>
    tpu.vector_store %arg4[%c0_196, %c64_197], %157 {strides = array<i32>} : memref<16x1088xf32, #tpu.memory_space<vmem>>, vector<16x896xf32>,
    %c0_198 = arith.constant 0 : index
    %c0_199 = arith.constant 0 : index
    %163 = vector.load %arg4[%c0_198, %c0_199] : memref<16x1088xf32, #tpu.memory_space<vmem>>, vector<16x1024xf32>
    %c0_200 = arith.constant 0 : index
    %c0_201 = arith.constant 0 : index
    %164 = vector.load %arg5[%c0_200, %c0_201] : memref<144x1024xf32, #tpu.memory_space<vmem>>, vector<16x1024xf32>
    tpu.vector_store %arg5[%c0_200, %c0_201], %163 {strides = array<i32>} : memref<144x1024xf32, #tpu.memory_space<vmem>>, vector<16x1024xf32>,
    %c0_202 = arith.constant 0 : index
    %c1_203 = arith.constant 1 : index
    %165 = vector.load %arg4[%c0_202, %c1_203] : memref<16x1088xf32, #tpu.memory_space<vmem>>, vector<16x1024xf32>
    %c16_204 = arith.constant 16 : index
    %c0_205 = arith.constant 0 : index
    %166 = vector.load %arg5[%c16_204, %c0_205] : memref<144x1024xf32, #tpu.memory_space<vmem>>, vector<16x1024xf32>
    tpu.vector_store %arg5[%c16_204, %c0_205], %165 {strides = array<i32>} : memref<144x1024xf32, #tpu.memory_space<vmem>>, vector<16x1024xf32>,
    %c0_206 = arith.constant 0 : index
    %c2_207 = arith.constant 2 : index
    %167 = vector.load %arg4[%c0_206, %c2_207] : memref<16x1088xf32, #tpu.memory_space<vmem>>, vector<16x1024xf32>
    %c32_208 = arith.constant 32 : index
    %c0_209 = arith.constant 0 : index
    %168 = vector.load %arg5[%c32_208, %c0_209] : memref<144x1024xf32, #tpu.memory_space<vmem>>, vector<16x1024xf32>
    tpu.vector_store %arg5[%c32_208, %c0_209], %167 {strides = array<i32>} : memref<144x1024xf32, #tpu.memory_space<vmem>>, vector<16x1024xf32>,
    %c0_210 = arith.constant 0 : index
    %c31_211 = arith.constant 31 : index
    %169 = vector.load %arg4[%c0_210, %c31_211] : memref<16x1088xf32, #tpu.memory_space<vmem>>, vector<16x1024xf32>
    %c48_212 = arith.constant 48 : index
    %c0_213 = arith.constant 0 : index
    %170 = vector.load %arg5[%c48_212, %c0_213] : memref<144x1024xf32, #tpu.memory_space<vmem>>, vector<16x1024xf32>
    tpu.vector_store %arg5[%c48_212, %c0_213], %169 {strides = array<i32>} : memref<144x1024xf32, #tpu.memory_space<vmem>>, vector<16x1024xf32>,
    %c0_214 = arith.constant 0 : index
    %c32_215 = arith.constant 32 : index
    %171 = vector.load %arg4[%c0_214, %c32_215] : memref<16x1088xf32, #tpu.memory_space<vmem>>, vector<16x1024xf32>
    %c64_216 = arith.constant 64 : index
    %c0_217 = arith.constant 0 : index
    %172 = vector.load %arg5[%c64_216, %c0_217] : memref<144x1024xf32, #tpu.memory_space<vmem>>, vector<16x1024xf32>
    tpu.vector_store %arg5[%c64_216, %c0_217], %171 {strides = array<i32>} : memref<144x1024xf32, #tpu.memory_space<vmem>>, vector<16x1024xf32>,
    %c0_218 = arith.constant 0 : index
    %c33_219 = arith.constant 33 : index
    %173 = vector.load %arg4[%c0_218, %c33_219] : memref<16x1088xf32, #tpu.memory_space<vmem>>, vector<16x1024xf32>
    %c80_220 = arith.constant 80 : index
    %c0_221 = arith.constant 0 : index
    %174 = vector.load %arg5[%c80_220, %c0_221] : memref<144x1024xf32, #tpu.memory_space<vmem>>, vector<16x1024xf32>
    tpu.vector_store %arg5[%c80_220, %c0_221], %173 {strides = array<i32>} : memref<144x1024xf32, #tpu.memory_space<vmem>>, vector<16x1024xf32>,
    %c0_222 = arith.constant 0 : index
    %c62_223 = arith.constant 62 : index
    %175 = vector.load %arg4[%c0_222, %c62_223] : memref<16x1088xf32, #tpu.memory_space<vmem>>, vector<16x1024xf32>
    %c96_224 = arith.constant 96 : index
    %c0_225 = arith.constant 0 : index
    %176 = vector.load %arg5[%c96_224, %c0_225] : memref<144x1024xf32, #tpu.memory_space<vmem>>, vector<16x1024xf32>
    tpu.vector_store %arg5[%c96_224, %c0_225], %175 {strides = array<i32>} : memref<144x1024xf32, #tpu.memory_space<vmem>>, vector<16x1024xf32>,
    %c0_226 = arith.constant 0 : index
    %c63_227 = arith.constant 63 : index
    %177 = vector.load %arg4[%c0_226, %c63_227] : memref<16x1088xf32, #tpu.memory_space<vmem>>, vector<16x1024xf32>
    %c112_228 = arith.constant 112 : index
    %c0_229 = arith.constant 0 : index
    %178 = vector.load %arg5[%c112_228, %c0_229] : memref<144x1024xf32, #tpu.memory_space<vmem>>, vector<16x1024xf32>
    tpu.vector_store %arg5[%c112_228, %c0_229], %177 {strides = array<i32>} : memref<144x1024xf32, #tpu.memory_space<vmem>>, vector<16x1024xf32>,
    %c0_230 = arith.constant 0 : index
    %c64_231 = arith.constant 64 : index
    %179 = vector.load %arg4[%c0_230, %c64_231] : memref<16x1088xf32, #tpu.memory_space<vmem>>, vector<16x1024xf32>
    %c128_232 = arith.constant 128 : index
    %c0_233 = arith.constant 0 : index
    %180 = vector.load %arg5[%c128_232, %c0_233] : memref<144x1024xf32, #tpu.memory_space<vmem>>, vector<16x1024xf32>
    tpu.vector_store %arg5[%c128_232, %c0_233], %179 {strides = array<i32>} : memref<144x1024xf32, #tpu.memory_space<vmem>>, vector<16x1024xf32>,
    %c0_234 = arith.constant 0 : index
    %c392 = arith.constant 392 : index
    %181 = vector.load %arg1[%c0_234, %c392] : memref<16x1434xf32, #tpu.memory_space<vmem>>, vector<16x144xf32>
    %c0_235 = arith.constant 0 : index
    %c537 = arith.constant 537 : index
    %182 = vector.load %arg1[%c0_235, %c537] : memref<16x1434xf32, #tpu.memory_space<vmem>>, vector<16x1xf32>
    %c0_236 = arith.constant 0 : index
    %c0_237 = arith.constant 0 : index
    %183 = vector.load %arg5[%c0_236, %c0_237] : memref<144x1024xf32, #tpu.memory_space<vmem>>, vector<144x1024xf32>
    %cst_238 = arith.constant dense<0.000000e+00> : vector<16x1024xf32>
    %184 = tpu.matmul %181, %183, %cst_238 {dimension_numbers = #tpu.dot_dimension_numbers<[1], [0], [0], [1], [0, 0, 1, 1], [], []>} : vector<16x144xf32>, vector<144x1024xf32>, vector<16x1024xf32> -> vector<16x1024xf32>
    %185 = vector.broadcast %182 : vector<16x1xf32> to vector<16x1024xf32>
    %186 = arith.addf %184, %185 : vector<16x1024xf32>
    %cst_239 = arith.constant 0.000000e+00 : f32
    %187 = vector.broadcast %cst_239 : f32 to vector<16x1024xf32>
    %188 = arith.maximumf %186, %187 : vector<16x1024xf32>
    %c0_240 = arith.constant 0 : index
    %c0_241 = arith.constant 0 : index
    %189 = vector.load %arg2[%c0_240, %c0_241] : memref<16x1024xf32, #tpu.memory_space<vmem>>, vector<16x1024xf32>
    tpu.vector_store %arg2[%c0_240, %c0_241], %188 {strides = array<i32>} : memref<16x1024xf32, #tpu.memory_space<vmem>>, vector<16x1024xf32>,
    return
  }
}

</mosaic_0001>

<llo_original>
// kernel: model_forward.1
$region0: #{model_forward.1}
  #allocation0 [shape = 'u32[]', space=smem, size = 0x4, offset = 0x4, fixed_abs, tag = 'smem constant byte address 0x4 - core index']
  #allocation1 [shape = 'u32[144,128]{1,0:T(1,128)}', space=vmem, size = 0x12000, scoped, tag = 'internal scratch']
  #allocation2 [shape = 'f32[392,896]{1,0:T(8,128)}', space=vmem, size = 0x157000, scoped, tag = 'scratch operand']
  #allocation3 [shape = 'f32[16,1088]{1,0:T(8,128)}', space=vmem, size = 0x12000, scoped, tag = 'scratch operand']
  #allocation4 [shape = 'f32[144,1024]{1,0:T(8,128)}', space=vmem, size = 0x90000, scoped, tag = 'scratch operand']
  %s0 = inlined_call_operand.vmem [shape: f32[4,8,1024], index: 0, kind: input, shape index: {}]
  %s1 = inlined_call_operand.vmem [shape: f32[16,1434], index: 1, kind: input, shape index: {}]
  %s2 = inlined_call_operand.vmem [shape: f32[16,1024], index: 2, kind: output, shape index: {}]
  %s3 = sld [smem:[#allocation0]]
  $region18: #{model_forward.1} parent=0
    _
  %s5 = ssub.s32 1, %s3
  %s6 = scalar_select 0, %s5, %s3
  // Predicated region
  $region2: #{model_forward.1} parent=0 // pred_check
    _
  $region3: #{model_forward.1} parent=0 // pred_check_branch
    %8 = sbr.rel (0) target = $region5
  $region4: #{model_forward.1} parent=0 // pred_region
    _
  $region5: #{model_forward.1} parent=0 // pred_fallthru
    _
  // Predicated region
  $region6: #{model_forward.1} parent=0 // pred_check
    _
  $region7: #{model_forward.1} parent=0 // pred_check_branch
    %10 = sbr.rel (0) target = $region9
  $region8: #{model_forward.1} parent=0 // pred_region
    _
  $region9: #{model_forward.1} parent=0 // pred_fallthru
    _
  %v11 = vld [vmem:[%s0] sm:$0xff]
  %v12 = vld [vmem:[%s0 + $0x8] sm:$0xff]
  %v13 = vld [vmem:[%s0 + $0x10] sm:$0xff]
  %v14 = vld [vmem:[%s0 + $0x18] sm:$0xff]
  %v15 = vld [vmem:[%s0 + $0x20] sm:$0xff]
  %v16 = vld [vmem:[%s0 + $0x28] sm:$0xff]
  %v17 = vld [vmem:[%s0 + $0x30] sm:$0xff]
  %18 = vst [vmem:[#allocation2] sm:$0xff] %v11
  %19 = vst [vmem:[#allocation2 + $0x8] sm:$0xff] %v12
  %20 = vst [vmem:[#allocation2 + $0x10] sm:$0xff] %v13
  %21 = vst [vmem:[#allocation2 + $0x18] sm:$0xff] %v14
  %22 = vst [vmem:[#allocation2 + $0x20] sm:$0xff] %v15
  %23 = vst [vmem:[#allocation2 + $0x28] sm:$0xff] %v16
  %24 = vst [vmem:[#allocation2 + $0x30] sm:$0xff] %v17
  %s25 = scalar_lea.vmem %s0, 64
  %v26 = vld [vmem:[%s25] sm:$0xff]
  %v27 = vld [vmem:[%s25 + $0x8] sm:$0xff]
  %v28 = vld [vmem:[%s25 + $0x10] sm:$0xff]
  %v29 = vld [vmem:[%s25 + $0x18] sm:$0xff]
  %v30 = vld [vmem:[%s25 + $0x20] sm:$0xff]
  %v31 = vld [vmem:[%s25 + $0x28] sm:$0xff]
  %v32 = vld [vmem:[%s25 + $0x30] sm:$0xff]
  %33 = vst [vmem:[#allocation2 + $0x38] sm:$0xff] %v26
  %34 = vst [vmem:[#allocation2 + $0x40] sm:$0xff] %v27
  %35 = vst [vmem:[#allocation2 + $0x48] sm:$0xff] %v28
  %36 = vst [vmem:[#allocation2 + $0x50] sm:$0xff] %v29
  %37 = vst [vmem:[#allocation2 + $0x58] sm:$0xff] %v30
  %38 = vst [vmem:[#allocation2 + $0x60] sm:$0xff] %v31
  %39 = vst [vmem:[#allocation2 + $0x68] sm:$0xff] %v32
  %v40 = vld [vmem:[%s0] sm:$0xff]
  %v41 = vld [vmem:[%s0 + $0x8] sm:$0xff]
  %v42 = vld [vmem:[%s0 + $0x10] sm:$0xff]
  %v43 = vld [vmem:[%s0 + $0x18] sm:$0xff]
  %v44 = vld [vmem:[%s0 + $0x20] sm:$0xff]
  %v45 = vld [vmem:[%s0 + $0x28] sm:$0xff]
  %v46 = vld [vmem:[%s0 + $0x30] sm:$0xff]
  %v47 = vld [vmem:[%s0 + $0x38] sm:$0xff]
  %56 = vrot.lane.b32.xlu0 %v40, 127
  %v57 = vpop.permute.xlu0 %56
  %58 = vrot.lane.b32.xlu0 %v41, 127
  %v59 = vpop.permute.xlu0 %58
  %60 = vrot.lane.b32.xlu0 %v42, 127
  %v61 = vpop.permute.xlu0 %60
  %62 = vrot.lane.b32.xlu0 %v43, 127
  %v63 = vpop.permute.xlu0 %62
  %64 = vrot.lane.b32.xlu0 %v44, 127
  %v65 = vpop.permute.xlu0 %64
  %66 = vrot.lane.b32.xlu0 %v45, 127
  %v67 = vpop.permute.xlu0 %66
  %68 = vrot.lane.b32.xlu0 %v46, 127
  %v69 = vpop.permute.xlu0 %68
  %70 = vrot.lane.b32.xlu0 %v47, 127
  %v71 = vpop.permute.xlu0 %70
  %vm72 = vcmask 1039360
  %v73 = vsel %vm72, %v57, %v59
  %v74 = vsel %vm72, %v59, %v61
  %v75 = vsel %vm72, %v61, %v63
  %v76 = vsel %vm72, %v63, %v65
  %v77 = vsel %vm72, %v65, %v67
  %v78 = vsel %vm72, %v67, %v69
  %v79 = vsel %vm72, %v69, %v71
  %87 = vst [vmem:[#allocation2 + $0x70] sm:$0xff] %v73
  %88 = vst [vmem:[#allocation2 + $0x78] sm:$0xff] %v74
  %89 = vst [vmem:[#allocation2 + $0x80] sm:$0xff] %v75
  %90 = vst [vmem:[#allocation2 + $0x88] sm:$0xff] %v76
  %91 = vst [vmem:[#allocation2 + $0x90] sm:$0xff] %v77
  %92 = vst [vmem:[#allocation2 + $0x98] sm:$0xff] %v78
  %93 = vst [vmem:[#allocation2 + $0xa0] sm:$0xff] %v79
  %v94 = vld [vmem:[%s25] sm:$0xff]
  %v95 = vld [vmem:[%s25 + $0x8] sm:$0xff]
  %v96 = vld [vmem:[%s25 + $0x10] sm:$0xff]
  %v97 = vld [vmem:[%s25 + $0x18] sm:$0xff]
  %v98 = vld [vmem:[%s25 + $0x20] sm:$0xff]
  %v99 = vld [vmem:[%s25 + $0x28] sm:$0xff]
  %v100 = vld [vmem:[%s25 + $0x30] sm:$0xff]
  %v101 = vld [vmem:[%s25 + $0x38] sm:$0xff]
  %110 = vrot.lane.b32.xlu0 %v94, 127
  %v111 = vpop.permute.xlu0 %110
  %112 = vrot.lane.b32.xlu0 %v95, 127
  %v113 = vpop.permute.xlu0 %112
  %114 = vrot.lane.b32.xlu0 %v96, 127
  %v115 = vpop.permute.xlu0 %114
  %116 = vrot.lane.b32.xlu0 %v97, 127
  %v117 = vpop.permute.xlu0 %116
  %118 = vrot.lane.b32.xlu0 %v98, 127
  %v119 = vpop.permute.xlu0 %118
  %120 = vrot.lane.b32.xlu0 %v99, 127
  %v121 = vpop.permute.xlu0 %120
  %122 = vrot.lane.b32.xlu0 %v100, 127
  %v123 = vpop.permute.xlu0 %122
  %124 = vrot.lane.b32.xlu0 %v101, 127
  %v125 = vpop.permute.xlu0 %124
  %v126 = vsel %vm72, %v111, %v113
  %v127 = vsel %vm72, %v113, %v115
  %v128 = vsel %vm72, %v115, %v117
  %v129 = vsel %vm72, %v117, %v119
  %v130 = vsel %vm72, %v119, %v121
  %v131 = vsel %vm72, %v121, %v123
  %v132 = vsel %vm72, %v123, %v125
  %140 = vst [vmem:[#allocation2 + $0xa8] sm:$0xff] %v126
  %141 = vst [vmem:[#allocation2 + $0xb0] sm:$0xff] %v127
  %142 = vst [vmem:[#allocation2 + $0xb8] sm:$0xff] %v128
  %143 = vst [vmem:[#allocation2 + $0xc0] sm:$0xff] %v129
  %144 = vst [vmem:[#allocation2 + $0xc8] sm:$0xff] %v130
  %145 = vst [vmem:[#allocation2 + $0xd0] sm:$0xff] %v131
  %146 = vst [vmem:[#allocation2 + $0xd8] sm:$0xff] %v132
  %v147 = vld [vmem:[%s0] sm:$0xff]
  %v148 = vld [vmem:[%s0 + $0x8] sm:$0xff]
  %v149 = vld [vmem:[%s0 + $0x10] sm:$0xff]
  %v150 = vld [vmem:[%s0 + $0x18] sm:$0xff]
  %v151 = vld [vmem:[%s0 + $0x20] sm:$0xff]
  %v152 = vld [vmem:[%s0 + $0x28] sm:$0xff]
  %v153 = vld [vmem:[%s0 + $0x30] sm:$0xff]
  %v154 = vld [vmem:[%s0 + $0x38] sm:$0xff]
  %163 = vrot.lane.b32.xlu0 %v147, 126
  %v164 = vpop.permute.xlu0 %163
  %165 = vrot.lane.b32.xlu0 %v148, 126
  %v166 = vpop.permute.xlu0 %165
  %167 = vrot.lane.b32.xlu0 %v149, 126
  %v168 = vpop.permute.xlu0 %167
  %169 = vrot.lane.b32.xlu0 %v150, 126
  %v170 = vpop.permute.xlu0 %169
  %171 = vrot.lane.b32.xlu0 %v151, 126
  %v172 = vpop.permute.xlu0 %171
  %173 = vrot.lane.b32.xlu0 %v152, 126
  %v174 = vpop.permute.xlu0 %173
  %175 = vrot.lane.b32.xlu0 %v153, 126
  %v176 = vpop.permute.xlu0 %175
  %177 = vrot.lane.b32.xlu0 %v154, 126
  %v178 = vpop.permute.xlu0 %177
  %vm179 = vcmask 1031168
  %v180 = vsel %vm179, %v164, %v166
  %v181 = vsel %vm179, %v166, %v168
  %v182 = vsel %vm179, %v168, %v170
  %v183 = vsel %vm179, %v170, %v172
  %v184 = vsel %vm179, %v172, %v174
  %v185 = vsel %vm179, %v174, %v176
  %v186 = vsel %vm179, %v176, %v178
  %194 = vst [vmem:[#allocation2 + $0xe0] sm:$0xff] %v180
  %195 = vst [vmem:[#allocation2 + $0xe8] sm:$0xff] %v181
  %196 = vst [vmem:[#allocation2 + $0xf0] sm:$0xff] %v182
  %197 = vst [vmem:[#allocation2 + $0xf8] sm:$0xff] %v183
  %198 = vst [vmem:[#allocation2 + $0x100] sm:$0xff] %v184
  %199 = vst [vmem:[#allocation2 + $0x108] sm:$0xff] %v185
  %200 = vst [vmem:[#allocation2 + $0x110] sm:$0xff] %v186
  %v201 = vld [vmem:[%s25] sm:$0xff]
  %v202 = vld [vmem:[%s25 + $0x8] sm:$0xff]
  %v203 = vld [vmem:[%s25 + $0x10] sm:$0xff]
  %v204 = vld [vmem:[%s25 + $0x18] sm:$0xff]
  %v205 = vld [vmem:[%s25 + $0x20] sm:$0xff]
  %v206 = vld [vmem:[%s25 + $0x28] sm:$0xff]
  %v207 = vld [vmem:[%s25 + $0x30] sm:$0xff]
  %v208 = vld [vmem:[%s25 + $0x38] sm:$0xff]
  %217 = vrot.lane.b32.xlu0 %v201, 126
  %v218 = vpop.permute.xlu0 %217
  %219 = vrot.lane.b32.xlu0 %v202, 126
  %v220 = vpop.permute.xlu0 %219
  %221 = vrot.lane.b32.xlu0 %v203, 126
  %v222 = vpop.permute.xlu0 %221
  %223 = vrot.lane.b32.xlu0 %v204, 126
  %v224 = vpop.permute.xlu0 %223
  %225 = vrot.lane.b32.xlu0 %v205, 126
  %v226 = vpop.permute.xlu0 %225
  %227 = vrot.lane.b32.xlu0 %v206, 126
  %v228 = vpop.permute.xlu0 %227
  %229 = vrot.lane.b32.xlu0 %v207, 126
  %v230 = vpop.permute.xlu0 %229
  %231 = vrot.lane.b32.xlu0 %v208, 126
  %v232 = vpop.permute.xlu0 %231
  %v233 = vsel %vm179, %v218, %v220
  %v234 = vsel %vm179, %v220, %v222
  %v235 = vsel %vm179, %v222, %v224
  %v236 = vsel %vm179, %v224, %v226
  %v237 = vsel %vm179, %v226, %v228
  %v238 = vsel %vm179, %v228, %v230
  %v239 = vsel %vm179, %v230, %v232
  %247 = vst [vmem:[#allocation2 + $0x118] sm:$0xff] %v233
  %248 = vst [vmem:[#allocation2 + $0x120] sm:$0xff] %v234
  %249 = vst [vmem:[#allocation2 + $0x128] sm:$0xff] %v235
  %250 = vst [vmem:[#allocation2 + $0x130] sm:$0xff] %v236
  %251 = vst [vmem:[#allocation2 + $0x138] sm:$0xff] %v237
  %252 = vst [vmem:[#allocation2 + $0x140] sm:$0xff] %v238
  %253 = vst [vmem:[#allocation2 + $0x148] sm:$0xff] %v239
  %v254 = vld [vmem:[%s0] sm:$0xff]
  %v255 = vld [vmem:[%s0 + $0x8] sm:$0xff]
  %v256 = vld [vmem:[%s0 + $0x10] sm:$0xff]
  %v257 = vld [vmem:[%s0 + $0x18] sm:$0xff]
  %v258 = vld [vmem:[%s0 + $0x20] sm:$0xff]
  %v259 = vld [vmem:[%s0 + $0x28] sm:$0xff]
  %v260 = vld [vmem:[%s0 + $0x30] sm:$0xff]
  %v261 = vld [vmem:[%s0 + $0x38] sm:$0xff]
  %270 = vrot.lane.b32.xlu0 %v254, 125
  %v271 = vpop.permute.xlu0 %270
  %272 = vrot.lane.b32.xlu0 %v255, 125
  %v273 = vpop.permute.xlu0 %272
  %274 = vrot.lane.b32.xlu0 %v256, 125
  %v275 = vpop.permute.xlu0 %274
  %276 = vrot.lane.b32.xlu0 %v257, 125
  %v277 = vpop.permute.xlu0 %276
  %278 = vrot.lane.b32.xlu0 %v258, 125
  %v279 = vpop.permute.xlu0 %278
  %280 = vrot.lane.b32.xlu0 %v259, 125
  %v281 = vpop.permute.xlu0 %280
  %282 = vrot.lane.b32.xlu0 %v260, 125
  %v283 = vpop.permute.xlu0 %282
  %284 = vrot.lane.b32.xlu0 %v261, 125
  %v285 = vpop.permute.xlu0 %284
  %vm286 = vcmask 1022976
  %v287 = vsel %vm286, %v271, %v273
  %v288 = vsel %vm286, %v273, %v275
  %v289 = vsel %vm286, %v275, %v277
  %v290 = vsel %vm286, %v277, %v279
  %v291 = vsel %vm286, %v279, %v281
  %v292 = vsel %vm286, %v281, %v283
  %v293 = vsel %vm286, %v283, %v285
  %301 = vst [vmem:[#allocation2 + $0x150] sm:$0xff] %v287
  %302 = vst [vmem:[#allocation2 + $0x158] sm:$0xff] %v288
  %303 = vst [vmem:[#allocation2 + $0x160] sm:$0xff] %v289
  %304 = vst [vmem:[#allocation2 + $0x168] sm:$0xff] %v290
  %305 = vst [vmem:[#allocation2 + $0x170] sm:$0xff] %v291
  %306 = vst [vmem:[#allocation2 + $0x178] sm:$0xff] %v292
  %307 = vst [vmem:[#allocation2 + $0x180] sm:$0xff] %v293
  %s308 = scalar_lea.vmem %s0, 128
  %v309 = vld [vmem:[%s308] sm:$0xff]
  %v310 = vld [vmem:[%s308 + $0x8] sm:$0xff]
  %v311 = vld [vmem:[%s308 + $0x10] sm:$0xff]
  %v312 = vld [vmem:[%s308 + $0x18] sm:$0xff]
  %v313 = vld [vmem:[%s308 + $0x20] sm:$0xff]
  %v314 = vld [vmem:[%s308 + $0x28] sm:$0xff]
  %v315 = vld [vmem:[%s308 + $0x30] sm:$0xff]
  %316 = vst [vmem:[#allocation2 + $0x188] sm:$0xff] %v309
  %317 = vst [vmem:[#allocation2 + $0x190] sm:$0xff] %v310
  %318 = vst [vmem:[#allocation2 + $0x198] sm:$0xff] %v311
  %319 = vst [vmem:[#allocation2 + $0x1a0] sm:$0xff] %v312
  %320 = vst [vmem:[#allocation2 + $0x1a8] sm:$0xff] %v313
  %321 = vst [vmem:[#allocation2 + $0x1b0] sm:$0xff] %v314
  %322 = vst [vmem:[#allocation2 + $0x1b8] sm:$0xff] %v315
  %s323 = scalar_lea.vmem %s0, 192
  %v324 = vld [vmem:[%s323] sm:$0xff]
  %v325 = vld [vmem:[%s323 + $0x8] sm:$0xff]
  %v326 = vld [vmem:[%s323 + $0x10] sm:$0xff]
  %v327 = vld [vmem:[%s323 + $0x18] sm:$0xff]
  %v328 = vld [vmem:[%s323 + $0x20] sm:$0xff]
  %v329 = vld [vmem:[%s323 + $0x28] sm:$0xff]
  %v330 = vld [vmem:[%s323 + $0x30] sm:$0xff]
  %331 = vst [vmem:[#allocation2 + $0x1c0] sm:$0xff] %v324
  %332 = vst [vmem:[#allocation2 + $0x1c8] sm:$0xff] %v325
  %333 = vst [vmem:[#allocation2 + $0x1d0] sm:$0xff] %v326
  %334 = vst [vmem:[#allocation2 + $0x1d8] sm:$0xff] %v327
  %335 = vst [vmem:[#allocation2 + $0x1e0] sm:$0xff] %v328
  %336 = vst [vmem:[#allocation2 + $0x1e8] sm:$0xff] %v329
  %337 = vst [vmem:[#allocation2 + $0x1f0] sm:$0xff] %v330
  %v338 = vld [vmem:[%s308] sm:$0xff]
  %v339 = vld [vmem:[%s308 + $0x8] sm:$0xff]
  %v340 = vld [vmem:[%s308 + $0x10] sm:$0xff]
  %v341 = vld [vmem:[%s308 + $0x18] sm:$0xff]
  %v342 = vld [vmem:[%s308 + $0x20] sm:$0xff]
  %v343 = vld [vmem:[%s308 + $0x28] sm:$0xff]
  %v344 = vld [vmem:[%s308 + $0x30] sm:$0xff]
  %v345 = vld [vmem:[%s308 + $0x38] sm:$0xff]
  %354 = vrot.lane.b32.xlu0 %v338, 127
  %v355 = vpop.permute.xlu0 %354
  %356 = vrot.lane.b32.xlu0 %v339, 127
  %v357 = vpop.permute.xlu0 %356
  %358 = vrot.lane.b32.xlu0 %v340, 127
  %v359 = vpop.permute.xlu0 %358
  %360 = vrot.lane.b32.xlu0 %v341, 127
  %v361 = vpop.permute.xlu0 %360
  %362 = vrot.lane.b32.xlu0 %v342, 127
  %v363 = vpop.permute.xlu0 %362
  %364 = vrot.lane.b32.xlu0 %v343, 127
  %v365 = vpop.permute.xlu0 %364
  %366 = vrot.lane.b32.xlu0 %v344, 127
  %v367 = vpop.permute.xlu0 %366
  %368 = vrot.lane.b32.xlu0 %v345, 127
  %v369 = vpop.permute.xlu0 %368
  %v370 = vsel %vm72, %v355, %v357
  %v371 = vsel %vm72, %v357, %v359
  %v372 = vsel %vm72, %v359, %v361
  %v373 = vsel %vm72, %v361, %v363
  %v374 = vsel %vm72, %v363, %v365
  %v375 = vsel %vm72, %v365, %v367
  %v376 = vsel %vm72, %v367, %v369
  %384 = vst [vmem:[#allocation2 + $0x1f8] sm:$0xff] %v370
  %385 = vst [vmem:[#allocation2 + $0x200] sm:$0xff] %v371
  %386 = vst [vmem:[#allocation2 + $0x208] sm:$0xff] %v372
  %387 = vst [vmem:[#allocation2 + $0x210] sm:$0xff] %v373
  %388 = vst [vmem:[#allocation2 + $0x218] sm:$0xff] %v374
  %389 = vst [vmem:[#allocation2 + $0x220] sm:$0xff] %v375
  %390 = vst [vmem:[#allocation2 + $0x228] sm:$0xff] %v376
  %v391 = vld [vmem:[%s323] sm:$0xff]
  %v392 = vld [vmem:[%s323 + $0x8] sm:$0xff]
  %v393 = vld [vmem:[%s323 + $0x10] sm:$0xff]
  %v394 = vld [vmem:[%s323 + $0x18] sm:$0xff]
  %v395 = vld [vmem:[%s323 + $0x20] sm:$0xff]
  %v396 = vld [vmem:[%s323 + $0x28] sm:$0xff]
  %v397 = vld [vmem:[%s323 + $0x30] sm:$0xff]
  %v398 = vld [vmem:[%s323 + $0x38] sm:$0xff]
  %407 = vrot.lane.b32.xlu0 %v391, 127
  %v408 = vpop.permute.xlu0 %407
  %409 = vrot.lane.b32.xlu0 %v392, 127
  %v410 = vpop.permute.xlu0 %409
  %411 = vrot.lane.b32.xlu0 %v393, 127
  %v412 = vpop.permute.xlu0 %411
  %413 = vrot.lane.b32.xlu0 %v394, 127
  %v414 = vpop.permute.xlu0 %413
  %415 = vrot.lane.b32.xlu0 %v395, 127
  %v416 = vpop.permute.xlu0 %415
  %417 = vrot.lane.b32.xlu0 %v396, 127
  %v418 = vpop.permute.xlu0 %417
  %419 = vrot.lane.b32.xlu0 %v397, 127
  %v420 = vpop.permute.xlu0 %419
  %421 = vrot.lane.b32.xlu0 %v398, 127
  %v422 = vpop.permute.xlu0 %421
  %v423 = vsel %vm72, %v408, %v410
  %v424 = vsel %vm72, %v410, %v412
  %v425 = vsel %vm72, %v412, %v414
  %v426 = vsel %vm72, %v414, %v416
  %v427 = vsel %vm72, %v416, %v418
  %v428 = vsel %vm72, %v418, %v420
  %v429 = vsel %vm72, %v420, %v422
  %437 = vst [vmem:[#allocation2 + $0x230] sm:$0xff] %v423
  %438 = vst [vmem:[#allocation2 + $0x238] sm:$0xff] %v424
  %439 = vst [vmem:[#allocation2 + $0x240] sm:$0xff] %v425
  %440 = vst [vmem:[#allocation2 + $0x248] sm:$0xff] %v426
  %441 = vst [vmem:[#allocation2 + $0x250] sm:$0xff] %v427
  %442 = vst [vmem:[#allocation2 + $0x258] sm:$0xff] %v428
  %443 = vst [vmem:[#allocation2 + $0x260] sm:$0xff] %v429
  %v444 = vld [vmem:[%s308] sm:$0xff]
  %v445 = vld [vmem:[%s308 + $0x8] sm:$0xff]
  %v446 = vld [vmem:[%s308 + $0x10] sm:$0xff]
  %v447 = vld [vmem:[%s308 + $0x18] sm:$0xff]
  %v448 = vld [vmem:[%s308 + $0x20] sm:$0xff]
  %v449 = vld [vmem:[%s308 + $0x28] sm:$0xff]
  %v450 = vld [vmem:[%s308 + $0x30] sm:$0xff]
  %v451 = vld [vmem:[%s308 + $0x38] sm:$0xff]
  %460 = vrot.lane.b32.xlu0 %v444, 126
  %v461 = vpop.permute.xlu0 %460
  %462 = vrot.lane.b32.xlu0 %v445, 126
  %v463 = vpop.permute.xlu0 %462
  %464 = vrot.lane.b32.xlu0 %v446, 126
  %v465 = vpop.permute.xlu0 %464
  %466 = vrot.lane.b32.xlu0 %v447, 126
  %v467 = vpop.permute.xlu0 %466
  %468 = vrot.lane.b32.xlu0 %v448, 126
  %v469 = vpop.permute.xlu0 %468
  %470 = vrot.lane.b32.xlu0 %v449, 126
  %v471 = vpop.permute.xlu0 %470
  %472 = vrot.lane.b32.xlu0 %v450, 126
  %v473 = vpop.permute.xlu0 %472
  %474 = vrot.lane.b32.xlu0 %v451, 126
  %v475 = vpop.permute.xlu0 %474
  %v476 = vsel %vm179, %v461, %v463
  %v477 = vsel %vm179, %v463, %v465
  %v478 = vsel %vm179, %v465, %v467
  %v479 = vsel %vm179, %v467, %v469
  %v480 = vsel %vm179, %v469, %v471
  %v481 = vsel %vm179, %v471, %v473
  %v482 = vsel %vm179, %v473, %v475
  %490 = vst [vmem:[#allocation2 + $0x268] sm:$0xff] %v476
  %491 = vst [vmem:[#allocation2 + $0x270] sm:$0xff] %v477
  %492 = vst [vmem:[#allocation2 + $0x278] sm:$0xff] %v478
  %493 = vst [vmem:[#allocation2 + $0x280] sm:$0xff] %v479
  %494 = vst [vmem:[#allocation2 + $0x288] sm:$0xff] %v480
  %495 = vst [vmem:[#allocation2 + $0x290] sm:$0xff] %v481
  %496 = vst [vmem:[#allocation2 + $0x298] sm:$0xff] %v482
  %v497 = vld [vmem:[%s323] sm:$0xff]
  %v498 = vld [vmem:[%s323 + $0x8] sm:$0xff]
  %v499 = vld [vmem:[%s323 + $0x10] sm:$0xff]
  %v500 = vld [vmem:[%s323 + $0x18] sm:$0xff]
  %v501 = vld [vmem:[%s323 + $0x20] sm:$0xff]
  %v502 = vld [vmem:[%s323 + $0x28] sm:$0xff]
  %v503 = vld [vmem:[%s323 + $0x30] sm:$0xff]
  %v504 = vld [vmem:[%s323 + $0x38] sm:$0xff]
  %513 = vrot.lane.b32.xlu0 %v497, 126
  %v514 = vpop.permute.xlu0 %513
  %515 = vrot.lane.b32.xlu0 %v498, 126
  %v516 = vpop.permute.xlu0 %515
  %517 = vrot.lane.b32.xlu0 %v499, 126
  %v518 = vpop.permute.xlu0 %517
  %519 = vrot.lane.b32.xlu0 %v500, 126
  %v520 = vpop.permute.xlu0 %519
  %521 = vrot.lane.b32.xlu0 %v501, 126
  %v522 = vpop.permute.xlu0 %521
  %523 = vrot.lane.b32.xlu0 %v502, 126
  %v524 = vpop.permute.xlu0 %523
  %525 = vrot.lane.b32.xlu0 %v503, 126
  %v526 = vpop.permute.xlu0 %525
  %527 = vrot.lane.b32.xlu0 %v504, 126
  %v528 = vpop.permute.xlu0 %527
  %v529 = vsel %vm179, %v514, %v516
  %v530 = vsel %vm179, %v516, %v518
  %v531 = vsel %vm179, %v518, %v520
  %v532 = vsel %vm179, %v520, %v522
  %v533 = vsel %vm179, %v522, %v524
  %v534 = vsel %vm179, %v524, %v526
  %v535 = vsel %vm179, %v526, %v528
  %543 = vst [vmem:[#allocation2 + $0x2a0] sm:$0xff] %v529
  %544 = vst [vmem:[#allocation2 + $0x2a8] sm:$0xff] %v530
  %545 = vst [vmem:[#allocation2 + $0x2b0] sm:$0xff] %v531
  %546 = vst [vmem:[#allocation2 + $0x2b8] sm:$0xff] %v532
  %547 = vst [vmem:[#allocation2 + $0x2c0] sm:$0xff] %v533
  %548 = vst [vmem:[#allocation2 + $0x2c8] sm:$0xff] %v534
  %549 = vst [vmem:[#allocation2 + $0x2d0] sm:$0xff] %v535
  %v550 = vld [vmem:[%s308] sm:$0xff]
  %v551 = vld [vmem:[%s308 + $0x8] sm:$0xff]
  %v552 = vld [vmem:[%s308 + $0x10] sm:$0xff]
  %v553 = vld [vmem:[%s308 + $0x18] sm:$0xff]
  %v554 = vld [vmem:[%s308 + $0x20] sm:$0xff]
  %v555 = vld [vmem:[%s308 + $0x28] sm:$0xff]
  %v556 = vld [vmem:[%s308 + $0x30] sm:$0xff]
  %v557 = vld [vmem:[%s308 + $0x38] sm:$0xff]
  %566 = vrot.lane.b32.xlu0 %v550, 125
  %v567 = vpop.permute.xlu0 %566
  %568 = vrot.lane.b32.xlu0 %v551, 125
  %v569 = vpop.permute.xlu0 %568
  %570 = vrot.lane.b32.xlu0 %v552, 125
  %v571 = vpop.permute.xlu0 %570
  %572 = vrot.lane.b32.xlu0 %v553, 125
  %v573 = vpop.permute.xlu0 %572
  %574 = vrot.lane.b32.xlu0 %v554, 125
  %v575 = vpop.permute.xlu0 %574
  %576 = vrot.lane.b32.xlu0 %v555, 125
  %v577 = vpop.permute.xlu0 %576
  %578 = vrot.lane.b32.xlu0 %v556, 125
  %v579 = vpop.permute.xlu0 %578
  %580 = vrot.lane.b32.xlu0 %v557, 125
  %v581 = vpop.permute.xlu0 %580
  %v582 = vsel %vm286, %v567, %v569
  %v583 = vsel %vm286, %v569, %v571
  %v584 = vsel %vm286, %v571, %v573
  %v585 = vsel %vm286, %v573, %v575
  %v586 = vsel %vm286, %v575, %v577
  %v587 = vsel %vm286, %v577, %v579
  %v588 = vsel %vm286, %v579, %v581
  %596 = vst [vmem:[#allocation2 + $0x2d8] sm:$0xff] %v582
  %597 = vst [vmem:[#allocation2 + $0x2e0] sm:$0xff] %v583
  %598 = vst [vmem:[#allocation2 + $0x2e8] sm:$0xff] %v584
  %599 = vst [vmem:[#allocation2 + $0x2f0] sm:$0xff] %v585
  %600 = vst [vmem:[#allocation2 + $0x2f8] sm:$0xff] %v586
  %601 = vst [vmem:[#allocation2 + $0x300] sm:$0xff] %v587
  %602 = vst [vmem:[#allocation2 + $0x308] sm:$0xff] %v588
  %v603 = vld [vmem:[%s0] sm:$0xff]
  %v604 = vld [vmem:[%s0 + $0x8] sm:$0xff]
  %v605 = vld [vmem:[%s0 + $0x10] sm:$0xff]
  %v606 = vld [vmem:[%s0 + $0x18] sm:$0xff]
  %v607 = vld [vmem:[%s0 + $0x20] sm:$0xff]
  %v608 = vld [vmem:[%s0 + $0x28] sm:$0xff]
  %v609 = vld [vmem:[%s0 + $0x30] sm:$0xff]
  %v610 = vld [vmem:[%s0 + $0x38] sm:$0xff]
  %619 = vrot.lane.b32.xlu0 %v603, 97
  %v620 = vpop.permute.xlu0 %619
  %621 = vrot.lane.b32.xlu0 %v604, 97
  %v622 = vpop.permute.xlu0 %621
  %623 = vrot.lane.b32.xlu0 %v605, 97
  %v624 = vpop.permute.xlu0 %623
  %625 = vrot.lane.b32.xlu0 %v606, 97
  %v626 = vpop.permute.xlu0 %625
  %627 = vrot.lane.b32.xlu0 %v607, 97
  %v628 = vpop.permute.xlu0 %627
  %629 = vrot.lane.b32.xlu0 %v608, 97
  %v630 = vpop.permute.xlu0 %629
  %631 = vrot.lane.b32.xlu0 %v609, 97
  %v632 = vpop.permute.xlu0 %631
  %633 = vrot.lane.b32.xlu0 %v610, 97
  %v634 = vpop.permute.xlu0 %633
  %vm635 = vcmask 793600
  %v636 = vsel %vm635, %v620, %v622
  %v637 = vsel %vm635, %v622, %v624
  %v638 = vsel %vm635, %v624, %v626
  %v639 = vsel %vm635, %v626, %v628
  %v640 = vsel %vm635, %v628, %v630
  %v641 = vsel %vm635, %v630, %v632
  %v642 = vsel %vm635, %v632, %v634
  %650 = vst [vmem:[#allocation2 + $0x310] sm:$0xff] %v636
  %651 = vst [vmem:[#allocation2 + $0x318] sm:$0xff] %v637
  %652 = vst [vmem:[#allocation2 + $0x320] sm:$0xff] %v638
  %653 = vst [vmem:[#allocation2 + $0x328] sm:$0xff] %v639
  %654 = vst [vmem:[#allocation2 + $0x330] sm:$0xff] %v640
  %655 = vst [vmem:[#allocation2 + $0x338] sm:$0xff] %v641
  %656 = vst [vmem:[#allocation2 + $0x340] sm:$0xff] %v642
  %v657 = vld [vmem:[%s25] sm:$0xff]
  %v658 = vld [vmem:[%s25 + $0x8] sm:$0xff]
  %v659 = vld [vmem:[%s25 + $0x10] sm:$0xff]
  %v660 = vld [vmem:[%s25 + $0x18] sm:$0xff]
  %v661 = vld [vmem:[%s25 + $0x20] sm:$0xff]
  %v662 = vld [vmem:[%s25 + $0x28] sm:$0xff]
  %v663 = vld [vmem:[%s25 + $0x30] sm:$0xff]
  %v664 = vld [vmem:[%s25 + $0x38] sm:$0xff]
  %673 = vrot.lane.b32.xlu0 %v657, 97
  %v674 = vpop.permute.xlu0 %673
  %675 = vrot.lane.b32.xlu0 %v658, 97
  %v676 = vpop.permute.xlu0 %675
  %677 = vrot.lane.b32.xlu0 %v659, 97
  %v678 = vpop.permute.xlu0 %677
  %679 = vrot.lane.b32.xlu0 %v660, 97
  %v680 = vpop.permute.xlu0 %679
  %681 = vrot.lane.b32.xlu0 %v661, 97
  %v682 = vpop.permute.xlu0 %681
  %683 = vrot.lane.b32.xlu0 %v662, 97
  %v684 = vpop.permute.xlu0 %683
  %685 = vrot.lane.b32.xlu0 %v663, 97
  %v686 = vpop.permute.xlu0 %685
  %687 = vrot.lane.b32.xlu0 %v664, 97
  %v688 = vpop.permute.xlu0 %687
  %v689 = vsel %vm635, %v674, %v676
  %v690 = vsel %vm635, %v676, %v678
  %v691 = vsel %vm635, %v678, %v680
  %v692 = vsel %vm635, %v680, %v682
  %v693 = vsel %vm635, %v682, %v684
  %v694 = vsel %vm635, %v684, %v686
  %v695 = vsel %vm635, %v686, %v688
  %703 = vst [vmem:[#allocation2 + $0x348] sm:$0xff] %v689
  %704 = vst [vmem:[#allocation2 + $0x350] sm:$0xff] %v690
  %705 = vst [vmem:[#allocation2 + $0x358] sm:$0xff] %v691
  %706 = vst [vmem:[#allocation2 + $0x360] sm:$0xff] %v692
  %707 = vst [vmem:[#allocation2 + $0x368] sm:$0xff] %v693
  %708 = vst [vmem:[#allocation2 + $0x370] sm:$0xff] %v694
  %709 = vst [vmem:[#allocation2 + $0x378] sm:$0xff] %v695
  %v710 = vld [vmem:[%s0] sm:$0xff]
  %v711 = vld [vmem:[%s0 + $0x8] sm:$0xff]
  %v712 = vld [vmem:[%s0 + $0x10] sm:$0xff]
  %v713 = vld [vmem:[%s0 + $0x18] sm:$0xff]
  %v714 = vld [vmem:[%s0 + $0x20] sm:$0xff]
  %v715 = vld [vmem:[%s0 + $0x28] sm:$0xff]
  %v716 = vld [vmem:[%s0 + $0x30] sm:$0xff]
  %v717 = vld [vmem:[%s0 + $0x38] sm:$0xff]
  %726 = vrot.lane.b32.xlu0 %v710, 96
  %v727 = vpop.permute.xlu0 %726
  %728 = vrot.lane.b32.xlu0 %v711, 96
  %v729 = vpop.permute.xlu0 %728
  %730 = vrot.lane.b32.xlu0 %v712, 96
  %v731 = vpop.permute.xlu0 %730
  %732 = vrot.lane.b32.xlu0 %v713, 96
  %v733 = vpop.permute.xlu0 %732
  %734 = vrot.lane.b32.xlu0 %v714, 96
  %v735 = vpop.permute.xlu0 %734
  %736 = vrot.lane.b32.xlu0 %v715, 96
  %v737 = vpop.permute.xlu0 %736
  %738 = vrot.lane.b32.xlu0 %v716, 96
  %v739 = vpop.permute.xlu0 %738
  %740 = vrot.lane.b32.xlu0 %v717, 96
  %v741 = vpop.permute.xlu0 %740
  %vm742 = vcmask 785408
  %v743 = vsel %vm742, %v727, %v729
  %v744 = vsel %vm742, %v729, %v731
  %v745 = vsel %vm742, %v731, %v733
  %v746 = vsel %vm742, %v733, %v735
  %v747 = vsel %vm742, %v735, %v737
  %v748 = vsel %vm742, %v737, %v739
  %v749 = vsel %vm742, %v739, %v741
  %757 = vst [vmem:[#allocation2 + $0x380] sm:$0xff] %v743
  %758 = vst [vmem:[#allocation2 + $0x388] sm:$0xff] %v744
  %759 = vst [vmem:[#allocation2 + $0x390] sm:$0xff] %v745
  %760 = vst [vmem:[#allocation2 + $0x398] sm:$0xff] %v746
  %761 = vst [vmem:[#allocation2 + $0x3a0] sm:$0xff] %v747
  %762 = vst [vmem:[#allocation2 + $0x3a8] sm:$0xff] %v748
  %763 = vst [vmem:[#allocation2 + $0x3b0] sm:$0xff] %v749
  %v764 = vld [vmem:[%s25] sm:$0xff]
  %v765 = vld [vmem:[%s25 + $0x8] sm:$0xff]
  %v766 = vld [vmem:[%s25 + $0x10] sm:$0xff]
  %v767 = vld [vmem:[%s25 + $0x18] sm:$0xff]
  %v768 = vld [vmem:[%s25 + $0x20] sm:$0xff]
  %v769 = vld [vmem:[%s25 + $0x28] sm:$0xff]
  %v770 = vld [vmem:[%s25 + $0x30] sm:$0xff]
  %v771 = vld [vmem:[%s25 + $0x38] sm:$0xff]
  %780 = vrot.lane.b32.xlu0 %v764, 96
  %v781 = vpop.permute.xlu0 %780
  %782 = vrot.lane.b32.xlu0 %v765, 96
  %v783 = vpop.permute.xlu0 %782
  %784 = vrot.lane.b32.xlu0 %v766, 96
  %v785 = vpop.permute.xlu0 %784
  %786 = vrot.lane.b32.xlu0 %v767, 96
  %v787 = vpop.permute.xlu0 %786
  %788 = vrot.lane.b32.xlu0 %v768, 96
  %v789 = vpop.permute.xlu0 %788
  %790 = vrot.lane.b32.xlu0 %v769, 96
  %v791 = vpop.permute.xlu0 %790
  %792 = vrot.lane.b32.xlu0 %v770, 96
  %v793 = vpop.permute.xlu0 %792
  %794 = vrot.lane.b32.xlu0 %v771, 96
  %v795 = vpop.permute.xlu0 %794
  %v796 = vsel %vm742, %v781, %v783
  %v797 = vsel %vm742, %v783, %v785
  %v798 = vsel %vm742, %v785, %v787
  %v799 = vsel %vm742, %v787, %v789
  %v800 = vsel %vm742, %v789, %v791
  %v801 = vsel %vm742, %v791, %v793
  %v802 = vsel %vm742, %v793, %v795
  %810 = vst [vmem:[#allocation2 + $0x3b8] sm:$0xff] %v796
  %811 = vst [vmem:[#allocation2 + $0x3c0] sm:$0xff] %v797
  %812 = vst [vmem:[#allocation2 + $0x3c8] sm:$0xff] %v798
  %813 = vst [vmem:[#allocation2 + $0x3d0] sm:$0xff] %v799
  %814 = vst [vmem:[#allocation2 + $0x3d8] sm:$0xff] %v800
  %815 = vst [vmem:[#allocation2 + $0x3e0] sm:$0xff] %v801
  %816 = vst [vmem:[#allocation2 + $0x3e8] sm:$0xff] %v802
  %v817 = vld [vmem:[%s0] sm:$0xff]
  %v818 = vld [vmem:[%s0 + $0x8] sm:$0xff]
  %v819 = vld [vmem:[%s0 + $0x10] sm:$0xff]
  %v820 = vld [vmem:[%s0 + $0x18] sm:$0xff]
  %v821 = vld [vmem:[%s0 + $0x20] sm:$0xff]
  %v822 = vld [vmem:[%s0 + $0x28] sm:$0xff]
  %v823 = vld [vmem:[%s0 + $0x30] sm:$0xff]
  %v824 = vld [vmem:[%s0 + $0x38] sm:$0xff]
  %833 = vrot.lane.b32.xlu0 %v817, 95
  %v834 = vpop.permute.xlu0 %833
  %835 = vrot.lane.b32.xlu0 %v818, 95
  %v836 = vpop.permute.xlu0 %835
  %837 = vrot.lane.b32.xlu0 %v819, 95
  %v838 = vpop.permute.xlu0 %837
  %839 = vrot.lane.b32.xlu0 %v820, 95
  %v840 = vpop.permute.xlu0 %839
  %841 = vrot.lane.b32.xlu0 %v821, 95
  %v842 = vpop.permute.xlu0 %841
  %843 = vrot.lane.b32.xlu0 %v822, 95
  %v844 = vpop.permute.xlu0 %843
  %845 = vrot.lane.b32.xlu0 %v823, 95
  %v846 = vpop.permute.xlu0 %845
  %847 = vrot.lane.b32.xlu0 %v824, 95
  %v848 = vpop.permute.xlu0 %847
  %vm849 = vcmask 777216
  %v850 = vsel %vm849, %v834, %v836
  %v851 = vsel %vm849, %v836, %v838
  %v852 = vsel %vm849, %v838, %v840
  %v853 = vsel %vm849, %v840, %v842
  %v854 = vsel %vm849, %v842, %v844
  %v855 = vsel %vm849, %v844, %v846
  %v856 = vsel %vm849, %v846, %v848
  %864 = vst [vmem:[#allocation2 + $0x3f0] sm:$0xff] %v850
  %865 = vst [vmem:[#allocation2 + $0x3f8] sm:$0xff] %v851
  %866 = vst [vmem:[#allocation2 + $0x400] sm:$0xff] %v852
  %867 = vst [vmem:[#allocation2 + $0x408] sm:$0xff] %v853
  %868 = vst [vmem:[#allocation2 + $0x410] sm:$0xff] %v854
  %869 = vst [vmem:[#allocation2 + $0x418] sm:$0xff] %v855
  %870 = vst [vmem:[#allocation2 + $0x420] sm:$0xff] %v856
  %v871 = vld [vmem:[%s25] sm:$0xff]
  %v872 = vld [vmem:[%s25 + $0x8] sm:$0xff]
  %v873 = vld [vmem:[%s25 + $0x10] sm:$0xff]
  %v874 = vld [vmem:[%s25 + $0x18] sm:$0xff]
  %v875 = vld [vmem:[%s25 + $0x20] sm:$0xff]
  %v876 = vld [vmem:[%s25 + $0x28] sm:$0xff]
  %v877 = vld [vmem:[%s25 + $0x30] sm:$0xff]
  %v878 = vld [vmem:[%s25 + $0x38] sm:$0xff]
  %887 = vrot.lane.b32.xlu0 %v871, 95
  %v888 = vpop.permute.xlu0 %887
  %889 = vrot.lane.b32.xlu0 %v872, 95
  %v890 = vpop.permute.xlu0 %889
  %891 = vrot.lane.b32.xlu0 %v873, 95
  %v892 = vpop.permute.xlu0 %891
  %893 = vrot.lane.b32.xlu0 %v874, 95
  %v894 = vpop.permute.xlu0 %893
  %895 = vrot.lane.b32.xlu0 %v875, 95
  %v896 = vpop.permute.xlu0 %895
  %897 = vrot.lane.b32.xlu0 %v876, 95
  %v898 = vpop.permute.xlu0 %897
  %899 = vrot.lane.b32.xlu0 %v877, 95
  %v900 = vpop.permute.xlu0 %899
  %901 = vrot.lane.b32.xlu0 %v878, 95
  %v902 = vpop.permute.xlu0 %901
  %v903 = vsel %vm849, %v888, %v890
  %v904 = vsel %vm849, %v890, %v892
  %v905 = vsel %vm849, %v892, %v894
  %v906 = vsel %vm849, %v894, %v896
  %v907 = vsel %vm849, %v896, %v898
  %v908 = vsel %vm849, %v898, %v900
  %v909 = vsel %vm849, %v900, %v902
  %917 = vst [vmem:[#allocation2 + $0x428] sm:$0xff] %v903
  %918 = vst [vmem:[#allocation2 + $0x430] sm:$0xff] %v904
  %919 = vst [vmem:[#allocation2 + $0x438] sm:$0xff] %v905
  %920 = vst [vmem:[#allocation2 + $0x440] sm:$0xff] %v906
  %921 = vst [vmem:[#allocation2 + $0x448] sm:$0xff] %v907
  %922 = vst [vmem:[#allocation2 + $0x450] sm:$0xff] %v908
  %923 = vst [vmem:[#allocation2 + $0x458] sm:$0xff] %v909
  %v924 = vld [vmem:[%s0] sm:$0xff]
  %v925 = vld [vmem:[%s0 + $0x8] sm:$0xff]
  %v926 = vld [vmem:[%s0 + $0x10] sm:$0xff]
  %v927 = vld [vmem:[%s0 + $0x18] sm:$0xff]
  %v928 = vld [vmem:[%s0 + $0x20] sm:$0xff]
  %v929 = vld [vmem:[%s0 + $0x28] sm:$0xff]
  %v930 = vld [vmem:[%s0 + $0x30] sm:$0xff]
  %v931 = vld [vmem:[%s0 + $0x38] sm:$0xff]
  %940 = vrot.lane.b32.xlu0 %v924, 94
  %v941 = vpop.permute.xlu0 %940
  %942 = vrot.lane.b32.xlu0 %v925, 94
  %v943 = vpop.permute.xlu0 %942
  %944 = vrot.lane.b32.xlu0 %v926, 94
  %v945 = vpop.permute.xlu0 %944
  %946 = vrot.lane.b32.xlu0 %v927, 94
  %v947 = vpop.permute.xlu0 %946
  %948 = vrot.lane.b32.xlu0 %v928, 94
  %v949 = vpop.permute.xlu0 %948
  %950 = vrot.lane.b32.xlu0 %v929, 94
  %v951 = vpop.permute.xlu0 %950
  %952 = vrot.lane.b32.xlu0 %v930, 94
  %v953 = vpop.permute.xlu0 %952
  %954 = vrot.lane.b32.xlu0 %v931, 94
  %v955 = vpop.permute.xlu0 %954
  %vm956 = vcmask 769024
  %v957 = vsel %vm956, %v941, %v943
  %v958 = vsel %vm956, %v943, %v945
  %v959 = vsel %vm956, %v945, %v947
  %v960 = vsel %vm956, %v947, %v949
  %v961 = vsel %vm956, %v949, %v951
  %v962 = vsel %vm956, %v951, %v953
  %v963 = vsel %vm956, %v953, %v955
  %971 = vst [vmem:[#allocation2 + $0x460] sm:$0xff] %v957
  %972 = vst [vmem:[#allocation2 + $0x468] sm:$0xff] %v958
  %973 = vst [vmem:[#allocation2 + $0x470] sm:$0xff] %v959
  %974 = vst [vmem:[#allocation2 + $0x478] sm:$0xff] %v960
  %975 = vst [vmem:[#allocation2 + $0x480] sm:$0xff] %v961
  %976 = vst [vmem:[#allocation2 + $0x488] sm:$0xff] %v962
  %977 = vst [vmem:[#allocation2 + $0x490] sm:$0xff] %v963
  %v978 = vld [vmem:[%s308] sm:$0xff]
  %v979 = vld [vmem:[%s308 + $0x8] sm:$0xff]
  %v980 = vld [vmem:[%s308 + $0x10] sm:$0xff]
  %v981 = vld [vmem:[%s308 + $0x18] sm:$0xff]
  %v982 = vld [vmem:[%s308 + $0x20] sm:$0xff]
  %v983 = vld [vmem:[%s308 + $0x28] sm:$0xff]
  %v984 = vld [vmem:[%s308 + $0x30] sm:$0xff]
  %v985 = vld [vmem:[%s308 + $0x38] sm:$0xff]
  %994 = vrot.lane.b32.xlu0 %v978, 97
  %v995 = vpop.permute.xlu0 %994
  %996 = vrot.lane.b32.xlu0 %v979, 97
  %v997 = vpop.permute.xlu0 %996
  %998 = vrot.lane.b32.xlu0 %v980, 97
  %v999 = vpop.permute.xlu0 %998
  %1000 = vrot.lane.b32.xlu0 %v981, 97
  %v1001 = vpop.permute.xlu0 %1000
  %1002 = vrot.lane.b32.xlu0 %v982, 97
  %v1003 = vpop.permute.xlu0 %1002
  %1004 = vrot.lane.b32.xlu0 %v983, 97
  %v1005 = vpop.permute.xlu0 %1004
  %1006 = vrot.lane.b32.xlu0 %v984, 97
  %v1007 = vpop.permute.xlu0 %1006
  %1008 = vrot.lane.b32.xlu0 %v985, 97
  %v1009 = vpop.permute.xlu0 %1008
  %v1010 = vsel %vm635, %v995, %v997
  %v1011 = vsel %vm635, %v997, %v999
  %v1012 = vsel %vm635, %v999, %v1001
  %v1013 = vsel %vm635, %v1001, %v1003
  %v1014 = vsel %vm635, %v1003, %v1005
  %v1015 = vsel %vm635, %v1005, %v1007
  %v1016 = vsel %vm635, %v1007, %v1009
  %1024 = vst [vmem:[#allocation2 + $0x498] sm:$0xff] %v1010
  %1025 = vst [vmem:[#allocation2 + $0x4a0] sm:$0xff] %v1011
  %1026 = vst [vmem:[#allocation2 + $0x4a8] sm:$0xff] %v1012
  %1027 = vst [vmem:[#allocation2 + $0x4b0] sm:$0xff] %v1013
  %1028 = vst [vmem:[#allocation2 + $0x4b8] sm:$0xff] %v1014
  %1029 = vst [vmem:[#allocation2 + $0x4c0] sm:$0xff] %v1015
  %1030 = vst [vmem:[#allocation2 + $0x4c8] sm:$0xff] %v1016
  %v1031 = vld [vmem:[%s323] sm:$0xff]
  %v1032 = vld [vmem:[%s323 + $0x8] sm:$0xff]
  %v1033 = vld [vmem:[%s323 + $0x10] sm:$0xff]
  %v1034 = vld [vmem:[%s323 + $0x18] sm:$0xff]
  %v1035 = vld [vmem:[%s323 + $0x20] sm:$0xff]
  %v1036 = vld [vmem:[%s323 + $0x28] sm:$0xff]
  %v1037 = vld [vmem:[%s323 + $0x30] sm:$0xff]
  %v1038 = vld [vmem:[%s323 + $0x38] sm:$0xff]
  %1047 = vrot.lane.b32.xlu0 %v1031, 97
  %v1048 = vpop.permute.xlu0 %1047
  %1049 = vrot.lane.b32.xlu0 %v1032, 97
  %v1050 = vpop.permute.xlu0 %1049
  %1051 = vrot.lane.b32.xlu0 %v1033, 97
  %v1052 = vpop.permute.xlu0 %1051
  %1053 = vrot.lane.b32.xlu0 %v1034, 97
  %v1054 = vpop.permute.xlu0 %1053
  %1055 = vrot.lane.b32.xlu0 %v1035, 97
  %v1056 = vpop.permute.xlu0 %1055
  %1057 = vrot.lane.b32.xlu0 %v1036, 97
  %v1058 = vpop.permute.xlu0 %1057
  %1059 = vrot.lane.b32.xlu0 %v1037, 97
  %v1060 = vpop.permute.xlu0 %1059
  %1061 = vrot.lane.b32.xlu0 %v1038, 97
  %v1062 = vpop.permute.xlu0 %1061
  %v1063 = vsel %vm635, %v1048, %v1050
  %v1064 = vsel %vm635, %v1050, %v1052
  %v1065 = vsel %vm635, %v1052, %v1054
  %v1066 = vsel %vm635, %v1054, %v1056
  %v1067 = vsel %vm635, %v1056, %v1058
  %v1068 = vsel %vm635, %v1058, %v1060
  %v1069 = vsel %vm635, %v1060, %v1062
  %1077 = vst [vmem:[#allocation2 + $0x4d0] sm:$0xff] %v1063
  %1078 = vst [vmem:[#allocation2 + $0x4d8] sm:$0xff] %v1064
  %1079 = vst [vmem:[#allocation2 + $0x4e0] sm:$0xff] %v1065
  %1080 = vst [vmem:[#allocation2 + $0x4e8] sm:$0xff] %v1066
  %1081 = vst [vmem:[#allocation2 + $0x4f0] sm:$0xff] %v1067
  %1082 = vst [vmem:[#allocation2 + $0x4f8] sm:$0xff] %v1068
  %1083 = vst [vmem:[#allocation2 + $0x500] sm:$0xff] %v1069
  %v1084 = vld [vmem:[%s308] sm:$0xff]
  %v1085 = vld [vmem:[%s308 + $0x8] sm:$0xff]
  %v1086 = vld [vmem:[%s308 + $0x10] sm:$0xff]
  %v1087 = vld [vmem:[%s308 + $0x18] sm:$0xff]
  %v1088 = vld [vmem:[%s308 + $0x20] sm:$0xff]
  %v1089 = vld [vmem:[%s308 + $0x28] sm:$0xff]
  %v1090 = vld [vmem:[%s308 + $0x30] sm:$0xff]
  %v1091 = vld [vmem:[%s308 + $0x38] sm:$0xff]
  %1100 = vrot.lane.b32.xlu0 %v1084, 96
  %v1101 = vpop.permute.xlu0 %1100
  %1102 = vrot.lane.b32.xlu0 %v1085, 96
  %v1103 = vpop.permute.xlu0 %1102
  %1104 = vrot.lane.b32.xlu0 %v1086, 96
  %v1105 = vpop.permute.xlu0 %1104
  %1106 = vrot.lane.b32.xlu0 %v1087, 96
  %v1107 = vpop.permute.xlu0 %1106
  %1108 = vrot.lane.b32.xlu0 %v1088, 96
  %v1109 = vpop.permute.xlu0 %1108
  %1110 = vrot.lane.b32.xlu0 %v1089, 96
  %v1111 = vpop.permute.xlu0 %1110
  %1112 = vrot.lane.b32.xlu0 %v1090, 96
  %v1113 = vpop.permute.xlu0 %1112
  %1114 = vrot.lane.b32.xlu0 %v1091, 96
  %v1115 = vpop.permute.xlu0 %1114
  %v1116 = vsel %vm742, %v1101, %v1103
  %v1117 = vsel %vm742, %v1103, %v1105
  %v1118 = vsel %vm742, %v1105, %v1107
  %v1119 = vsel %vm742, %v1107, %v1109
  %v1120 = vsel %vm742, %v1109, %v1111
  %v1121 = vsel %vm742, %v1111, %v1113
  %v1122 = vsel %vm742, %v1113, %v1115
  %1130 = vst [vmem:[#allocation2 + $0x508] sm:$0xff] %v1116
  %1131 = vst [vmem:[#allocation2 + $0x510] sm:$0xff] %v1117
  %1132 = vst [vmem:[#allocation2 + $0x518] sm:$0xff] %v1118
  %1133 = vst [vmem:[#allocation2 + $0x520] sm:$0xff] %v1119
  %1134 = vst [vmem:[#allocation2 + $0x528] sm:$0xff] %v1120
  %1135 = vst [vmem:[#allocation2 + $0x530] sm:$0xff] %v1121
  %1136 = vst [vmem:[#allocation2 + $0x538] sm:$0xff] %v1122
  %v1137 = vld [vmem:[%s323] sm:$0xff]
  %v1138 = vld [vmem:[%s323 + $0x8] sm:$0xff]
  %v1139 = vld [vmem:[%s323 + $0x10] sm:$0xff]
  %v1140 = vld [vmem:[%s323 + $0x18] sm:$0xff]
  %v1141 = vld [vmem:[%s323 + $0x20] sm:$0xff]
  %v1142 = vld [vmem:[%s323 + $0x28] sm:$0xff]
  %v1143 = vld [vmem:[%s323 + $0x30] sm:$0xff]
  %v1144 = vld [vmem:[%s323 + $0x38] sm:$0xff]
  %1153 = vrot.lane.b32.xlu0 %v1137, 96
  %v1154 = vpop.permute.xlu0 %1153
  %1155 = vrot.lane.b32.xlu0 %v1138, 96
  %v1156 = vpop.permute.xlu0 %1155
  %1157 = vrot.lane.b32.xlu0 %v1139, 96
  %v1158 = vpop.permute.xlu0 %1157
  %1159 = vrot.lane.b32.xlu0 %v1140, 96
  %v1160 = vpop.permute.xlu0 %1159
  %1161 = vrot.lane.b32.xlu0 %v1141, 96
  %v1162 = vpop.permute.xlu0 %1161
  %1163 = vrot.lane.b32.xlu0 %v1142, 96
  %v1164 = vpop.permute.xlu0 %1163
  %1165 = vrot.lane.b32.xlu0 %v1143, 96
  %v1166 = vpop.permute.xlu0 %1165
  %1167 = vrot.lane.b32.xlu0 %v1144, 96
  %v1168 = vpop.permute.xlu0 %1167
  %v1169 = vsel %vm742, %v1154, %v1156
  %v1170 = vsel %vm742, %v1156, %v1158
  %v1171 = vsel %vm742, %v1158, %v1160
  %v1172 = vsel %vm742, %v1160, %v1162
  %v1173 = vsel %vm742, %v1162, %v1164
  %v1174 = vsel %vm742, %v1164, %v1166
  %v1175 = vsel %vm742, %v1166, %v1168
  %1183 = vst [vmem:[#allocation2 + $0x540] sm:$0xff] %v1169
  %1184 = vst [vmem:[#allocation2 + $0x548] sm:$0xff] %v1170
  %1185 = vst [vmem:[#allocation2 + $0x550] sm:$0xff] %v1171
  %1186 = vst [vmem:[#allocation2 + $0x558] sm:$0xff] %v1172
  %1187 = vst [vmem:[#allocation2 + $0x560] sm:$0xff] %v1173
  %1188 = vst [vmem:[#allocation2 + $0x568] sm:$0xff] %v1174
  %1189 = vst [vmem:[#allocation2 + $0x570] sm:$0xff] %v1175
  %v1190 = vld [vmem:[%s308] sm:$0xff]
  %v1191 = vld [vmem:[%s308 + $0x8] sm:$0xff]
  %v1192 = vld [vmem:[%s308 + $0x10] sm:$0xff]
  %v1193 = vld [vmem:[%s308 + $0x18] sm:$0xff]
  %v1194 = vld [vmem:[%s308 + $0x20] sm:$0xff]
  %v1195 = vld [vmem:[%s308 + $0x28] sm:$0xff]
  %v1196 = vld [vmem:[%s308 + $0x30] sm:$0xff]
  %v1197 = vld [vmem:[%s308 + $0x38] sm:$0xff]
  %1206 = vrot.lane.b32.xlu0 %v1190, 95
  %v1207 = vpop.permute.xlu0 %1206
  %1208 = vrot.lane.b32.xlu0 %v1191, 95
  %v1209 = vpop.permute.xlu0 %1208
  %1210 = vrot.lane.b32.xlu0 %v1192, 95
  %v1211 = vpop.permute.xlu0 %1210
  %1212 = vrot.lane.b32.xlu0 %v1193, 95
  %v1213 = vpop.permute.xlu0 %1212
  %1214 = vrot.lane.b32.xlu0 %v1194, 95
  %v1215 = vpop.permute.xlu0 %1214
  %1216 = vrot.lane.b32.xlu0 %v1195, 95
  %v1217 = vpop.permute.xlu0 %1216
  %1218 = vrot.lane.b32.xlu0 %v1196, 95
  %v1219 = vpop.permute.xlu0 %1218
  %1220 = vrot.lane.b32.xlu0 %v1197, 95
  %v1221 = vpop.permute.xlu0 %1220
  %v1222 = vsel %vm849, %v1207, %v1209
  %v1223 = vsel %vm849, %v1209, %v1211
  %v1224 = vsel %vm849, %v1211, %v1213
  %v1225 = vsel %vm849, %v1213, %v1215
  %v1226 = vsel %vm849, %v1215, %v1217
  %v1227 = vsel %vm849, %v1217, %v1219
  %v1228 = vsel %vm849, %v1219, %v1221
  %1236 = vst [vmem:[#allocation2 + $0x578] sm:$0xff] %v1222
  %1237 = vst [vmem:[#allocation2 + $0x580] sm:$0xff] %v1223
  %1238 = vst [vmem:[#allocation2 + $0x588] sm:$0xff] %v1224
  %1239 = vst [vmem:[#allocation2 + $0x590] sm:$0xff] %v1225
  %1240 = vst [vmem:[#allocation2 + $0x598] sm:$0xff] %v1226
  %1241 = vst [vmem:[#allocation2 + $0x5a0] sm:$0xff] %v1227
  %1242 = vst [vmem:[#allocation2 + $0x5a8] sm:$0xff] %v1228
  %v1243 = vld [vmem:[%s323] sm:$0xff]
  %v1244 = vld [vmem:[%s323 + $0x8] sm:$0xff]
  %v1245 = vld [vmem:[%s323 + $0x10] sm:$0xff]
  %v1246 = vld [vmem:[%s323 + $0x18] sm:$0xff]
  %v1247 = vld [vmem:[%s323 + $0x20] sm:$0xff]
  %v1248 = vld [vmem:[%s323 + $0x28] sm:$0xff]
  %v1249 = vld [vmem:[%s323 + $0x30] sm:$0xff]
  %v1250 = vld [vmem:[%s323 + $0x38] sm:$0xff]
  %1259 = vrot.lane.b32.xlu0 %v1243, 95
  %v1260 = vpop.permute.xlu0 %1259
  %1261 = vrot.lane.b32.xlu0 %v1244, 95
  %v1262 = vpop.permute.xlu0 %1261
  %1263 = vrot.lane.b32.xlu0 %v1245, 95
  %v1264 = vpop.permute.xlu0 %1263
  %1265 = vrot.lane.b32.xlu0 %v1246, 95
  %v1266 = vpop.permute.xlu0 %1265
  %1267 = vrot.lane.b32.xlu0 %v1247, 95
  %v1268 = vpop.permute.xlu0 %1267
  %1269 = vrot.lane.b32.xlu0 %v1248, 95
  %v1270 = vpop.permute.xlu0 %1269
  %1271 = vrot.lane.b32.xlu0 %v1249, 95
  %v1272 = vpop.permute.xlu0 %1271
  %1273 = vrot.lane.b32.xlu0 %v1250, 95
  %v1274 = vpop.permute.xlu0 %1273
  %v1275 = vsel %vm849, %v1260, %v1262
  %v1276 = vsel %vm849, %v1262, %v1264
  %v1277 = vsel %vm849, %v1264, %v1266
  %v1278 = vsel %vm849, %v1266, %v1268
  %v1279 = vsel %vm849, %v1268, %v1270
  %v1280 = vsel %vm849, %v1270, %v1272
  %v1281 = vsel %vm849, %v1272, %v1274
  %1289 = vst [vmem:[#allocation2 + $0x5b0] sm:$0xff] %v1275
  %1290 = vst [vmem:[#allocation2 + $0x5b8] sm:$0xff] %v1276
  %1291 = vst [vmem:[#allocation2 + $0x5c0] sm:$0xff] %v1277
  %1292 = vst [vmem:[#allocation2 + $0x5c8] sm:$0xff] %v1278
  %1293 = vst [vmem:[#allocation2 + $0x5d0] sm:$0xff] %v1279
  %1294 = vst [vmem:[#allocation2 + $0x5d8] sm:$0xff] %v1280
  %1295 = vst [vmem:[#allocation2 + $0x5e0] sm:$0xff] %v1281
  %v1296 = vld [vmem:[%s308] sm:$0xff]
  %v1297 = vld [vmem:[%s308 + $0x8] sm:$0xff]
  %v1298 = vld [vmem:[%s308 + $0x10] sm:$0xff]
  %v1299 = vld [vmem:[%s308 + $0x18] sm:$0xff]
  %v1300 = vld [vmem:[%s308 + $0x20] sm:$0xff]
  %v1301 = vld [vmem:[%s308 + $0x28] sm:$0xff]
  %v1302 = vld [vmem:[%s308 + $0x30] sm:$0xff]
  %v1303 = vld [vmem:[%s308 + $0x38] sm:$0xff]
  %1312 = vrot.lane.b32.xlu0 %v1296, 94
  %v1313 = vpop.permute.xlu0 %1312
  %1314 = vrot.lane.b32.xlu0 %v1297, 94
  %v1315 = vpop.permute.xlu0 %1314
  %1316 = vrot.lane.b32.xlu0 %v1298, 94
  %v1317 = vpop.permute.xlu0 %1316
  %1318 = vrot.lane.b32.xlu0 %v1299, 94
  %v1319 = vpop.permute.xlu0 %1318
  %1320 = vrot.lane.b32.xlu0 %v1300, 94
  %v1321 = vpop.permute.xlu0 %1320
  %1322 = vrot.lane.b32.xlu0 %v1301, 94
  %v1323 = vpop.permute.xlu0 %1322
  %1324 = vrot.lane.b32.xlu0 %v1302, 94
  %v1325 = vpop.permute.xlu0 %1324
  %1326 = vrot.lane.b32.xlu0 %v1303, 94
  %v1327 = vpop.permute.xlu0 %1326
  %v1328 = vsel %vm956, %v1313, %v1315
  %v1329 = vsel %vm956, %v1315, %v1317
  %v1330 = vsel %vm956, %v1317, %v1319
  %v1331 = vsel %vm956, %v1319, %v1321
  %v1332 = vsel %vm956, %v1321, %v1323
  %v1333 = vsel %vm956, %v1323, %v1325
  %v1334 = vsel %vm956, %v1325, %v1327
  %1342 = vst [vmem:[#allocation2 + $0x5e8] sm:$0xff] %v1328
  %1343 = vst [vmem:[#allocation2 + $0x5f0] sm:$0xff] %v1329
  %1344 = vst [vmem:[#allocation2 + $0x5f8] sm:$0xff] %v1330
  %1345 = vst [vmem:[#allocation2 + $0x600] sm:$0xff] %v1331
  %1346 = vst [vmem:[#allocation2 + $0x608] sm:$0xff] %v1332
  %1347 = vst [vmem:[#allocation2 + $0x610] sm:$0xff] %v1333
  %1348 = vst [vmem:[#allocation2 + $0x618] sm:$0xff] %v1334
  %v1349 = vld [vmem:[%s0] sm:$0xff]
  %v1350 = vld [vmem:[%s0 + $0x8] sm:$0xff]
  %v1351 = vld [vmem:[%s0 + $0x10] sm:$0xff]
  %v1352 = vld [vmem:[%s0 + $0x18] sm:$0xff]
  %v1353 = vld [vmem:[%s0 + $0x20] sm:$0xff]
  %v1354 = vld [vmem:[%s0 + $0x28] sm:$0xff]
  %v1355 = vld [vmem:[%s0 + $0x30] sm:$0xff]
  %v1356 = vld [vmem:[%s0 + $0x38] sm:$0xff]
  %1365 = vrot.lane.b32.xlu0 %v1349, 66
  %v1366 = vpop.permute.xlu0 %1365
  %1367 = vrot.lane.b32.xlu0 %v1350, 66
  %v1368 = vpop.permute.xlu0 %1367
  %1369 = vrot.lane.b32.xlu0 %v1351, 66
  %v1370 = vpop.permute.xlu0 %1369
  %1371 = vrot.lane.b32.xlu0 %v1352, 66
  %v1372 = vpop.permute.xlu0 %1371
  %1373 = vrot.lane.b32.xlu0 %v1353, 66
  %v1374 = vpop.permute.xlu0 %1373
  %1375 = vrot.lane.b32.xlu0 %v1354, 66
  %v1376 = vpop.permute.xlu0 %1375
  %1377 = vrot.lane.b32.xlu0 %v1355, 66
  %v1378 = vpop.permute.xlu0 %1377
  %1379 = vrot.lane.b32.xlu0 %v1356, 66
  %v1380 = vpop.permute.xlu0 %1379
  %vm1381 = vcmask 539648
  %v1382 = vsel %vm1381, %v1366, %v1368
  %v1383 = vsel %vm1381, %v1368, %v1370
  %v1384 = vsel %vm1381, %v1370, %v1372
  %v1385 = vsel %vm1381, %v1372, %v1374
  %v1386 = vsel %vm1381, %v1374, %v1376
  %v1387 = vsel %vm1381, %v1376, %v1378
  %v1388 = vsel %vm1381, %v1378, %v1380
  %1396 = vst [vmem:[#allocation2 + $0x620] sm:$0xff] %v1382
  %1397 = vst [vmem:[#allocation2 + $0x628] sm:$0xff] %v1383
  %1398 = vst [vmem:[#allocation2 + $0x630] sm:$0xff] %v1384
  %1399 = vst [vmem:[#allocation2 + $0x638] sm:$0xff] %v1385
  %1400 = vst [vmem:[#allocation2 + $0x640] sm:$0xff] %v1386
  %1401 = vst [vmem:[#allocation2 + $0x648] sm:$0xff] %v1387
  %1402 = vst [vmem:[#allocation2 + $0x650] sm:$0xff] %v1388
  %v1403 = vld [vmem:[%s25] sm:$0xff]
  %v1404 = vld [vmem:[%s25 + $0x8] sm:$0xff]
  %v1405 = vld [vmem:[%s25 + $0x10] sm:$0xff]
  %v1406 = vld [vmem:[%s25 + $0x18] sm:$0xff]
  %v1407 = vld [vmem:[%s25 + $0x20] sm:$0xff]
  %v1408 = vld [vmem:[%s25 + $0x28] sm:$0xff]
  %v1409 = vld [vmem:[%s25 + $0x30] sm:$0xff]
  %v1410 = vld [vmem:[%s25 + $0x38] sm:$0xff]
  %1419 = vrot.lane.b32.xlu0 %v1403, 66
  %v1420 = vpop.permute.xlu0 %1419
  %1421 = vrot.lane.b32.xlu0 %v1404, 66
  %v1422 = vpop.permute.xlu0 %1421
  %1423 = vrot.lane.b32.xlu0 %v1405, 66
  %v1424 = vpop.permute.xlu0 %1423
  %1425 = vrot.lane.b32.xlu0 %v1406, 66
  %v1426 = vpop.permute.xlu0 %1425
  %1427 = vrot.lane.b32.xlu0 %v1407, 66
  %v1428 = vpop.permute.xlu0 %1427
  %1429 = vrot.lane.b32.xlu0 %v1408, 66
  %v1430 = vpop.permute.xlu0 %1429
  %1431 = vrot.lane.b32.xlu0 %v1409, 66
  %v1432 = vpop.permute.xlu0 %1431
  %1433 = vrot.lane.b32.xlu0 %v1410, 66
  %v1434 = vpop.permute.xlu0 %1433
  %v1435 = vsel %vm1381, %v1420, %v1422
  %v1436 = vsel %vm1381, %v1422, %v1424
  %v1437 = vsel %vm1381, %v1424, %v1426
  %v1438 = vsel %vm1381, %v1426, %v1428
  %v1439 = vsel %vm1381, %v1428, %v1430
  %v1440 = vsel %vm1381, %v1430, %v1432
  %v1441 = vsel %vm1381, %v1432, %v1434
  %1449 = vst [vmem:[#allocation2 + $0x658] sm:$0xff] %v1435
  %1450 = vst [vmem:[#allocation2 + $0x660] sm:$0xff] %v1436
  %1451 = vst [vmem:[#allocation2 + $0x668] sm:$0xff] %v1437
  %1452 = vst [vmem:[#allocation2 + $0x670] sm:$0xff] %v1438
  %1453 = vst [vmem:[#allocation2 + $0x678] sm:$0xff] %v1439
  %1454 = vst [vmem:[#allocation2 + $0x680] sm:$0xff] %v1440
  %1455 = vst [vmem:[#allocation2 + $0x688] sm:$0xff] %v1441
  %v1456 = vld [vmem:[%s0] sm:$0xff]
  %v1457 = vld [vmem:[%s0 + $0x8] sm:$0xff]
  %v1458 = vld [vmem:[%s0 + $0x10] sm:$0xff]
  %v1459 = vld [vmem:[%s0 + $0x18] sm:$0xff]
  %v1460 = vld [vmem:[%s0 + $0x20] sm:$0xff]
  %v1461 = vld [vmem:[%s0 + $0x28] sm:$0xff]
  %v1462 = vld [vmem:[%s0 + $0x30] sm:$0xff]
  %v1463 = vld [vmem:[%s0 + $0x38] sm:$0xff]
  %1472 = vrot.lane.b32.xlu0 %v1456, 65
  %v1473 = vpop.permute.xlu0 %1472
  %1474 = vrot.lane.b32.xlu0 %v1457, 65
  %v1475 = vpop.permute.xlu0 %1474
  %1476 = vrot.lane.b32.xlu0 %v1458, 65
  %v1477 = vpop.permute.xlu0 %1476
  %1478 = vrot.lane.b32.xlu0 %v1459, 65
  %v1479 = vpop.permute.xlu0 %1478
  %1480 = vrot.lane.b32.xlu0 %v1460, 65
  %v1481 = vpop.permute.xlu0 %1480
  %1482 = vrot.lane.b32.xlu0 %v1461, 65
  %v1483 = vpop.permute.xlu0 %1482
  %1484 = vrot.lane.b32.xlu0 %v1462, 65
  %v1485 = vpop.permute.xlu0 %1484
  %1486 = vrot.lane.b32.xlu0 %v1463, 65
  %v1487 = vpop.permute.xlu0 %1486
  %vm1488 = vcmask 531456
  %v1489 = vsel %vm1488, %v1473, %v1475
  %v1490 = vsel %vm1488, %v1475, %v1477
  %v1491 = vsel %vm1488, %v1477, %v1479
  %v1492 = vsel %vm1488, %v1479, %v1481
  %v1493 = vsel %vm1488, %v1481, %v1483
  %v1494 = vsel %vm1488, %v1483, %v1485
  %v1495 = vsel %vm1488, %v1485, %v1487
  %1503 = vst [vmem:[#allocation2 + $0x690] sm:$0xff] %v1489
  %1504 = vst [vmem:[#allocation2 + $0x698] sm:$0xff] %v1490
  %1505 = vst [vmem:[#allocation2 + $0x6a0] sm:$0xff] %v1491
  %1506 = vst [vmem:[#allocation2 + $0x6a8] sm:$0xff] %v1492
  %1507 = vst [vmem:[#allocation2 + $0x6b0] sm:$0xff] %v1493
  %1508 = vst [vmem:[#allocation2 + $0x6b8] sm:$0xff] %v1494
  %1509 = vst [vmem:[#allocation2 + $0x6c0] sm:$0xff] %v1495
  %v1510 = vld [vmem:[%s25] sm:$0xff]
  %v1511 = vld [vmem:[%s25 + $0x8] sm:$0xff]
  %v1512 = vld [vmem:[%s25 + $0x10] sm:$0xff]
  %v1513 = vld [vmem:[%s25 + $0x18] sm:$0xff]
  %v1514 = vld [vmem:[%s25 + $0x20] sm:$0xff]
  %v1515 = vld [vmem:[%s25 + $0x28] sm:$0xff]
  %v1516 = vld [vmem:[%s25 + $0x30] sm:$0xff]
  %v1517 = vld [vmem:[%s25 + $0x38] sm:$0xff]
  %1526 = vrot.lane.b32.xlu0 %v1510, 65
  %v1527 = vpop.permute.xlu0 %1526
  %1528 = vrot.lane.b32.xlu0 %v1511, 65
  %v1529 = vpop.permute.xlu0 %1528
  %1530 = vrot.lane.b32.xlu0 %v1512, 65
  %v1531 = vpop.permute.xlu0 %1530
  %1532 = vrot.lane.b32.xlu0 %v1513, 65
  %v1533 = vpop.permute.xlu0 %1532
  %1534 = vrot.lane.b32.xlu0 %v1514, 65
  %v1535 = vpop.permute.xlu0 %1534
  %1536 = vrot.lane.b32.xlu0 %v1515, 65
  %v1537 = vpop.permute.xlu0 %1536
  %1538 = vrot.lane.b32.xlu0 %v1516, 65
  %v1539 = vpop.permute.xlu0 %1538
  %1540 = vrot.lane.b32.xlu0 %v1517, 65
  %v1541 = vpop.permute.xlu0 %1540
  %v1542 = vsel %vm1488, %v1527, %v1529
  %v1543 = vsel %vm1488, %v1529, %v1531
  %v1544 = vsel %vm1488, %v1531, %v1533
  %v1545 = vsel %vm1488, %v1533, %v1535
  %v1546 = vsel %vm1488, %v1535, %v1537
  %v1547 = vsel %vm1488, %v1537, %v1539
  %v1548 = vsel %vm1488, %v1539, %v1541
  %1556 = vst [vmem:[#allocation2 + $0x6c8] sm:$0xff] %v1542
  %1557 = vst [vmem:[#allocation2 + $0x6d0] sm:$0xff] %v1543
  %1558 = vst [vmem:[#allocation2 + $0x6d8] sm:$0xff] %v1544
  %1559 = vst [vmem:[#allocation2 + $0x6e0] sm:$0xff] %v1545
  %1560 = vst [vmem:[#allocation2 + $0x6e8] sm:$0xff] %v1546
  %1561 = vst [vmem:[#allocation2 + $0x6f0] sm:$0xff] %v1547
  %1562 = vst [vmem:[#allocation2 + $0x6f8] sm:$0xff] %v1548
  %v1563 = vld [vmem:[%s0] sm:$0xff]
  %v1564 = vld [vmem:[%s0 + $0x8] sm:$0xff]
  %v1565 = vld [vmem:[%s0 + $0x10] sm:$0xff]
  %v1566 = vld [vmem:[%s0 + $0x18] sm:$0xff]
  %v1567 = vld [vmem:[%s0 + $0x20] sm:$0xff]
  %v1568 = vld [vmem:[%s0 + $0x28] sm:$0xff]
  %v1569 = vld [vmem:[%s0 + $0x30] sm:$0xff]
  %v1570 = vld [vmem:[%s0 + $0x38] sm:$0xff]
  %1579 = vrot.lane.b32.xlu0 %v1563, 64
  %v1580 = vpop.permute.xlu0 %1579
  %1581 = vrot.lane.b32.xlu0 %v1564, 64
  %v1582 = vpop.permute.xlu0 %1581
  %1583 = vrot.lane.b32.xlu0 %v1565, 64
  %v1584 = vpop.permute.xlu0 %1583
  %1585 = vrot.lane.b32.xlu0 %v1566, 64
  %v1586 = vpop.permute.xlu0 %1585
  %1587 = vrot.lane.b32.xlu0 %v1567, 64
  %v1588 = vpop.permute.xlu0 %1587
  %1589 = vrot.lane.b32.xlu0 %v1568, 64
  %v1590 = vpop.permute.xlu0 %1589
  %1591 = vrot.lane.b32.xlu0 %v1569, 64
  %v1592 = vpop.permute.xlu0 %1591
  %1593 = vrot.lane.b32.xlu0 %v1570, 64
  %v1594 = vpop.permute.xlu0 %1593
  %vm1595 = vcmask 523264
  %v1596 = vsel %vm1595, %v1580, %v1582
  %v1597 = vsel %vm1595, %v1582, %v1584
  %v1598 = vsel %vm1595, %v1584, %v1586
  %v1599 = vsel %vm1595, %v1586, %v1588
  %v1600 = vsel %vm1595, %v1588, %v1590
  %v1601 = vsel %vm1595, %v1590, %v1592
  %v1602 = vsel %vm1595, %v1592, %v1594
  %1610 = vst [vmem:[#allocation2 + $0x700] sm:$0xff] %v1596
  %1611 = vst [vmem:[#allocation2 + $0x708] sm:$0xff] %v1597
  %1612 = vst [vmem:[#allocation2 + $0x710] sm:$0xff] %v1598
  %1613 = vst [vmem:[#allocation2 + $0x718] sm:$0xff] %v1599
  %1614 = vst [vmem:[#allocation2 + $0x720] sm:$0xff] %v1600
  %1615 = vst [vmem:[#allocation2 + $0x728] sm:$0xff] %v1601
  %1616 = vst [vmem:[#allocation2 + $0x730] sm:$0xff] %v1602
  %v1617 = vld [vmem:[%s25] sm:$0xff]
  %v1618 = vld [vmem:[%s25 + $0x8] sm:$0xff]
  %v1619 = vld [vmem:[%s25 + $0x10] sm:$0xff]
  %v1620 = vld [vmem:[%s25 + $0x18] sm:$0xff]
  %v1621 = vld [vmem:[%s25 + $0x20] sm:$0xff]
  %v1622 = vld [vmem:[%s25 + $0x28] sm:$0xff]
  %v1623 = vld [vmem:[%s25 + $0x30] sm:$0xff]
  %v1624 = vld [vmem:[%s25 + $0x38] sm:$0xff]
  %1633 = vrot.lane.b32.xlu0 %v1617, 64
  %v1634 = vpop.permute.xlu0 %1633
  %1635 = vrot.lane.b32.xlu0 %v1618, 64
  %v1636 = vpop.permute.xlu0 %1635
  %1637 = vrot.lane.b32.xlu0 %v1619, 64
  %v1638 = vpop.permute.xlu0 %1637
  %1639 = vrot.lane.b32.xlu0 %v1620, 64
  %v1640 = vpop.permute.xlu0 %1639
  %1641 = vrot.lane.b32.xlu0 %v1621, 64
  %v1642 = vpop.permute.xlu0 %1641
  %1643 = vrot.lane.b32.xlu0 %v1622, 64
  %v1644 = vpop.permute.xlu0 %1643
  %1645 = vrot.lane.b32.xlu0 %v1623, 64
  %v1646 = vpop.permute.xlu0 %1645
  %1647 = vrot.lane.b32.xlu0 %v1624, 64
  %v1648 = vpop.permute.xlu0 %1647
  %v1649 = vsel %vm1595, %v1634, %v1636
  %v1650 = vsel %vm1595, %v1636, %v1638
  %v1651 = vsel %vm1595, %v1638, %v1640
  %v1652 = vsel %vm1595, %v1640, %v1642
  %v1653 = vsel %vm1595, %v1642, %v1644
  %v1654 = vsel %vm1595, %v1644, %v1646
  %v1655 = vsel %vm1595, %v1646, %v1648
  %1663 = vst [vmem:[#allocation2 + $0x738] sm:$0xff] %v1649
  %1664 = vst [vmem:[#allocation2 + $0x740] sm:$0xff] %v1650
  %1665 = vst [vmem:[#allocation2 + $0x748] sm:$0xff] %v1651
  %1666 = vst [vmem:[#allocation2 + $0x750] sm:$0xff] %v1652
  %1667 = vst [vmem:[#allocation2 + $0x758] sm:$0xff] %v1653
  %1668 = vst [vmem:[#allocation2 + $0x760] sm:$0xff] %v1654
  %1669 = vst [vmem:[#allocation2 + $0x768] sm:$0xff] %v1655
  %v1670 = vld [vmem:[%s0] sm:$0xff]
  %v1671 = vld [vmem:[%s0 + $0x8] sm:$0xff]
  %v1672 = vld [vmem:[%s0 + $0x10] sm:$0xff]
  %v1673 = vld [vmem:[%s0 + $0x18] sm:$0xff]
  %v1674 = vld [vmem:[%s0 + $0x20] sm:$0xff]
  %v1675 = vld [vmem:[%s0 + $0x28] sm:$0xff]
  %v1676 = vld [vmem:[%s0 + $0x30] sm:$0xff]
  %v1677 = vld [vmem:[%s0 + $0x38] sm:$0xff]
  %1686 = vrot.lane.b32.xlu0 %v1670, 63
  %v1687 = vpop.permute.xlu0 %1686
  %1688 = vrot.lane.b32.xlu0 %v1671, 63
  %v1689 = vpop.permute.xlu0 %1688
  %1690 = vrot.lane.b32.xlu0 %v1672, 63
  %v1691 = vpop.permute.xlu0 %1690
  %1692 = vrot.lane.b32.xlu0 %v1673, 63
  %v1693 = vpop.permute.xlu0 %1692
  %1694 = vrot.lane.b32.xlu0 %v1674, 63
  %v1695 = vpop.permute.xlu0 %1694
  %1696 = vrot.lane.b32.xlu0 %v1675, 63
  %v1697 = vpop.permute.xlu0 %1696
  %1698 = vrot.lane.b32.xlu0 %v1676, 63
  %v1699 = vpop.permute.xlu0 %1698
  %1700 = vrot.lane.b32.xlu0 %v1677, 63
  %v1701 = vpop.permute.xlu0 %1700
  %vm1702 = vcmask 515072
  %v1703 = vsel %vm1702, %v1687, %v1689
  %v1704 = vsel %vm1702, %v1689, %v1691
  %v1705 = vsel %vm1702, %v1691, %v1693
  %v1706 = vsel %vm1702, %v1693, %v1695
  %v1707 = vsel %vm1702, %v1695, %v1697
  %v1708 = vsel %vm1702, %v1697, %v1699
  %v1709 = vsel %vm1702, %v1699, %v1701
  %1717 = vst [vmem:[#allocation2 + $0x770] sm:$0xff] %v1703
  %1718 = vst [vmem:[#allocation2 + $0x778] sm:$0xff] %v1704
  %1719 = vst [vmem:[#allocation2 + $0x780] sm:$0xff] %v1705
  %1720 = vst [vmem:[#allocation2 + $0x788] sm:$0xff] %v1706
  %1721 = vst [vmem:[#allocation2 + $0x790] sm:$0xff] %v1707
  %1722 = vst [vmem:[#allocation2 + $0x798] sm:$0xff] %v1708
  %1723 = vst [vmem:[#allocation2 + $0x7a0] sm:$0xff] %v1709
  %v1724 = vld [vmem:[%s308] sm:$0xff]
  %v1725 = vld [vmem:[%s308 + $0x8] sm:$0xff]
  %v1726 = vld [vmem:[%s308 + $0x10] sm:$0xff]
  %v1727 = vld [vmem:[%s308 + $0x18] sm:$0xff]
  %v1728 = vld [vmem:[%s308 + $0x20] sm:$0xff]
  %v1729 = vld [vmem:[%s308 + $0x28] sm:$0xff]
  %v1730 = vld [vmem:[%s308 + $0x30] sm:$0xff]
  %v1731 = vld [vmem:[%s308 + $0x38] sm:$0xff]
  %1740 = vrot.lane.b32.xlu0 %v1724, 66
  %v1741 = vpop.permute.xlu0 %1740
  %1742 = vrot.lane.b32.xlu0 %v1725, 66
  %v1743 = vpop.permute.xlu0 %1742
  %1744 = vrot.lane.b32.xlu0 %v1726, 66
  %v1745 = vpop.permute.xlu0 %1744
  %1746 = vrot.lane.b32.xlu0 %v1727, 66
  %v1747 = vpop.permute.xlu0 %1746
  %1748 = vrot.lane.b32.xlu0 %v1728, 66
  %v1749 = vpop.permute.xlu0 %1748
  %1750 = vrot.lane.b32.xlu0 %v1729, 66
  %v1751 = vpop.permute.xlu0 %1750
  %1752 = vrot.lane.b32.xlu0 %v1730, 66
  %v1753 = vpop.permute.xlu0 %1752
  %1754 = vrot.lane.b32.xlu0 %v1731, 66
  %v1755 = vpop.permute.xlu0 %1754
  %v1756 = vsel %vm1381, %v1741, %v1743
  %v1757 = vsel %vm1381, %v1743, %v1745
  %v1758 = vsel %vm1381, %v1745, %v1747
  %v1759 = vsel %vm1381, %v1747, %v1749
  %v1760 = vsel %vm1381, %v1749, %v1751
  %v1761 = vsel %vm1381, %v1751, %v1753
  %v1762 = vsel %vm1381, %v1753, %v1755
  %1770 = vst [vmem:[#allocation2 + $0x7a8] sm:$0xff] %v1756
  %1771 = vst [vmem:[#allocation2 + $0x7b0] sm:$0xff] %v1757
  %1772 = vst [vmem:[#allocation2 + $0x7b8] sm:$0xff] %v1758
  %1773 = vst [vmem:[#allocation2 + $0x7c0] sm:$0xff] %v1759
  %1774 = vst [vmem:[#allocation2 + $0x7c8] sm:$0xff] %v1760
  %1775 = vst [vmem:[#allocation2 + $0x7d0] sm:$0xff] %v1761
  %1776 = vst [vmem:[#allocation2 + $0x7d8] sm:$0xff] %v1762
  %v1777 = vld [vmem:[%s323] sm:$0xff]
  %v1778 = vld [vmem:[%s323 + $0x8] sm:$0xff]
  %v1779 = vld [vmem:[%s323 + $0x10] sm:$0xff]
  %v1780 = vld [vmem:[%s323 + $0x18] sm:$0xff]
  %v1781 = vld [vmem:[%s323 + $0x20] sm:$0xff]
  %v1782 = vld [vmem:[%s323 + $0x28] sm:$0xff]
  %v1783 = vld [vmem:[%s323 + $0x30] sm:$0xff]
  %v1784 = vld [vmem:[%s323 + $0x38] sm:$0xff]
  %1793 = vrot.lane.b32.xlu0 %v1777, 66
  %v1794 = vpop.permute.xlu0 %1793
  %1795 = vrot.lane.b32.xlu0 %v1778, 66
  %v1796 = vpop.permute.xlu0 %1795
  %1797 = vrot.lane.b32.xlu0 %v1779, 66
  %v1798 = vpop.permute.xlu0 %1797
  %1799 = vrot.lane.b32.xlu0 %v1780, 66
  %v1800 = vpop.permute.xlu0 %1799
  %1801 = vrot.lane.b32.xlu0 %v1781, 66
  %v1802 = vpop.permute.xlu0 %1801
  %1803 = vrot.lane.b32.xlu0 %v1782, 66
  %v1804 = vpop.permute.xlu0 %1803
  %1805 = vrot.lane.b32.xlu0 %v1783, 66
  %v1806 = vpop.permute.xlu0 %1805
  %1807 = vrot.lane.b32.xlu0 %v1784, 66
  %v1808 = vpop.permute.xlu0 %1807
  %v1809 = vsel %vm1381, %v1794, %v1796
  %v1810 = vsel %vm1381, %v1796, %v1798
  %v1811 = vsel %vm1381, %v1798, %v1800
  %v1812 = vsel %vm1381, %v1800, %v1802
  %v1813 = vsel %vm1381, %v1802, %v1804
  %v1814 = vsel %vm1381, %v1804, %v1806
  %v1815 = vsel %vm1381, %v1806, %v1808
  %1823 = vst [vmem:[#allocation2 + $0x7e0] sm:$0xff] %v1809
  %1824 = vst [vmem:[#allocation2 + $0x7e8] sm:$0xff] %v1810
  %1825 = vst [vmem:[#allocation2 + $0x7f0] sm:$0xff] %v1811
  %1826 = vst [vmem:[#allocation2 + $0x7f8] sm:$0xff] %v1812
  %1827 = vst [vmem:[#allocation2 + $0x800] sm:$0xff] %v1813
  %1828 = vst [vmem:[#allocation2 + $0x808] sm:$0xff] %v1814
  %1829 = vst [vmem:[#allocation2 + $0x810] sm:$0xff] %v1815
  %v1830 = vld [vmem:[%s308] sm:$0xff]
  %v1831 = vld [vmem:[%s308 + $0x8] sm:$0xff]
  %v1832 = vld [vmem:[%s308 + $0x10] sm:$0xff]
  %v1833 = vld [vmem:[%s308 + $0x18] sm:$0xff]
  %v1834 = vld [vmem:[%s308 + $0x20] sm:$0xff]
  %v1835 = vld [vmem:[%s308 + $0x28] sm:$0xff]
  %v1836 = vld [vmem:[%s308 + $0x30] sm:$0xff]
  %v1837 = vld [vmem:[%s308 + $0x38] sm:$0xff]
  %1846 = vrot.lane.b32.xlu0 %v1830, 65
  %v1847 = vpop.permute.xlu0 %1846
  %1848 = vrot.lane.b32.xlu0 %v1831, 65
  %v1849 = vpop.permute.xlu0 %1848
  %1850 = vrot.lane.b32.xlu0 %v1832, 65
  %v1851 = vpop.permute.xlu0 %1850
  %1852 = vrot.lane.b32.xlu0 %v1833, 65
  %v1853 = vpop.permute.xlu0 %1852
  %1854 = vrot.lane.b32.xlu0 %v1834, 65
  %v1855 = vpop.permute.xlu0 %1854
  %1856 = vrot.lane.b32.xlu0 %v1835, 65
  %v1857 = vpop.permute.xlu0 %1856
  %1858 = vrot.lane.b32.xlu0 %v1836, 65
  %v1859 = vpop.permute.xlu0 %1858
  %1860 = vrot.lane.b32.xlu0 %v1837, 65
  %v1861 = vpop.permute.xlu0 %1860
  %v1862 = vsel %vm1488, %v1847, %v1849
  %v1863 = vsel %vm1488, %v1849, %v1851
  %v1864 = vsel %vm1488, %v1851, %v1853
  %v1865 = vsel %vm1488, %v1853, %v1855
  %v1866 = vsel %vm1488, %v1855, %v1857
  %v1867 = vsel %vm1488, %v1857, %v1859
  %v1868 = vsel %vm1488, %v1859, %v1861
  %1876 = vst [vmem:[#allocation2 + $0x818] sm:$0xff] %v1862
  %1877 = vst [vmem:[#allocation2 + $0x820] sm:$0xff] %v1863
  %1878 = vst [vmem:[#allocation2 + $0x828] sm:$0xff] %v1864
  %1879 = vst [vmem:[#allocation2 + $0x830] sm:$0xff] %v1865
  %1880 = vst [vmem:[#allocation2 + $0x838] sm:$0xff] %v1866
  %1881 = vst [vmem:[#allocation2 + $0x840] sm:$0xff] %v1867
  %1882 = vst [vmem:[#allocation2 + $0x848] sm:$0xff] %v1868
  %v1883 = vld [vmem:[%s323] sm:$0xff]
  %v1884 = vld [vmem:[%s323 + $0x8] sm:$0xff]
  %v1885 = vld [vmem:[%s323 + $0x10] sm:$0xff]
  %v1886 = vld [vmem:[%s323 + $0x18] sm:$0xff]
  %v1887 = vld [vmem:[%s323 + $0x20] sm:$0xff]
  %v1888 = vld [vmem:[%s323 + $0x28] sm:$0xff]
  %v1889 = vld [vmem:[%s323 + $0x30] sm:$0xff]
  %v1890 = vld [vmem:[%s323 + $0x38] sm:$0xff]
  %1899 = vrot.lane.b32.xlu0 %v1883, 65
  %v1900 = vpop.permute.xlu0 %1899
  %1901 = vrot.lane.b32.xlu0 %v1884, 65
  %v1902 = vpop.permute.xlu0 %1901
  %1903 = vrot.lane.b32.xlu0 %v1885, 65
  %v1904 = vpop.permute.xlu0 %1903
  %1905 = vrot.lane.b32.xlu0 %v1886, 65
  %v1906 = vpop.permute.xlu0 %1905
  %1907 = vrot.lane.b32.xlu0 %v1887, 65
  %v1908 = vpop.permute.xlu0 %1907
  %1909 = vrot.lane.b32.xlu0 %v1888, 65
  %v1910 = vpop.permute.xlu0 %1909
  %1911 = vrot.lane.b32.xlu0 %v1889, 65
  %v1912 = vpop.permute.xlu0 %1911
  %1913 = vrot.lane.b32.xlu0 %v1890, 65
  %v1914 = vpop.permute.xlu0 %1913
  %v1915 = vsel %vm1488, %v1900, %v1902
  %v1916 = vsel %vm1488, %v1902, %v1904
  %v1917 = vsel %vm1488, %v1904, %v1906
  %v1918 = vsel %vm1488, %v1906, %v1908
  %v1919 = vsel %vm1488, %v1908, %v1910
  %v1920 = vsel %vm1488, %v1910, %v1912
  %v1921 = vsel %vm1488, %v1912, %v1914
  %1929 = vst [vmem:[#allocation2 + $0x850] sm:$0xff] %v1915
  %1930 = vst [vmem:[#allocation2 + $0x858] sm:$0xff] %v1916
  %1931 = vst [vmem:[#allocation2 + $0x860] sm:$0xff] %v1917
  %1932 = vst [vmem:[#allocation2 + $0x868] sm:$0xff] %v1918
  %1933 = vst [vmem:[#allocation2 + $0x870] sm:$0xff] %v1919
  %1934 = vst [vmem:[#allocation2 + $0x878] sm:$0xff] %v1920
  %1935 = vst [vmem:[#allocation2 + $0x880] sm:$0xff] %v1921
  %v1936 = vld [vmem:[%s308] sm:$0xff]
  %v1937 = vld [vmem:[%s308 + $0x8] sm:$0xff]
  %v1938 = vld [vmem:[%s308 + $0x10] sm:$0xff]
  %v1939 = vld [vmem:[%s308 + $0x18] sm:$0xff]
  %v1940 = vld [vmem:[%s308 + $0x20] sm:$0xff]
  %v1941 = vld [vmem:[%s308 + $0x28] sm:$0xff]
  %v1942 = vld [vmem:[%s308 + $0x30] sm:$0xff]
  %v1943 = vld [vmem:[%s308 + $0x38] sm:$0xff]
  %1952 = vrot.lane.b32.xlu0 %v1936, 64
  %v1953 = vpop.permute.xlu0 %1952
  %1954 = vrot.lane.b32.xlu0 %v1937, 64
  %v1955 = vpop.permute.xlu0 %1954
  %1956 = vrot.lane.b32.xlu0 %v1938, 64
  %v1957 = vpop.permute.xlu0 %1956
  %1958 = vrot.lane.b32.xlu0 %v1939, 64
  %v1959 = vpop.permute.xlu0 %1958
  %1960 = vrot.lane.b32.xlu0 %v1940, 64
  %v1961 = vpop.permute.xlu0 %1960
  %1962 = vrot.lane.b32.xlu0 %v1941, 64
  %v1963 = vpop.permute.xlu0 %1962
  %1964 = vrot.lane.b32.xlu0 %v1942, 64
  %v1965 = vpop.permute.xlu0 %1964
  %1966 = vrot.lane.b32.xlu0 %v1943, 64
  %v1967 = vpop.permute.xlu0 %1966
  %v1968 = vsel %vm1595, %v1953, %v1955
  %v1969 = vsel %vm1595, %v1955, %v1957
  %v1970 = vsel %vm1595, %v1957, %v1959
  %v1971 = vsel %vm1595, %v1959, %v1961
  %v1972 = vsel %vm1595, %v1961, %v1963
  %v1973 = vsel %vm1595, %v1963, %v1965
  %v1974 = vsel %vm1595, %v1965, %v1967
  %1982 = vst [vmem:[#allocation2 + $0x888] sm:$0xff] %v1968
  %1983 = vst [vmem:[#allocation2 + $0x890] sm:$0xff] %v1969
  %1984 = vst [vmem:[#allocation2 + $0x898] sm:$0xff] %v1970
  %1985 = vst [vmem:[#allocation2 + $0x8a0] sm:$0xff] %v1971
  %1986 = vst [vmem:[#allocation2 + $0x8a8] sm:$0xff] %v1972
  %1987 = vst [vmem:[#allocation2 + $0x8b0] sm:$0xff] %v1973
  %1988 = vst [vmem:[#allocation2 + $0x8b8] sm:$0xff] %v1974
  %v1989 = vld [vmem:[%s323] sm:$0xff]
  %v1990 = vld [vmem:[%s323 + $0x8] sm:$0xff]
  %v1991 = vld [vmem:[%s323 + $0x10] sm:$0xff]
  %v1992 = vld [vmem:[%s323 + $0x18] sm:$0xff]
  %v1993 = vld [vmem:[%s323 + $0x20] sm:$0xff]
  %v1994 = vld [vmem:[%s323 + $0x28] sm:$0xff]
  %v1995 = vld [vmem:[%s323 + $0x30] sm:$0xff]
  %v1996 = vld [vmem:[%s323 + $0x38] sm:$0xff]
  %2005 = vrot.lane.b32.xlu0 %v1989, 64
  %v2006 = vpop.permute.xlu0 %2005
  %2007 = vrot.lane.b32.xlu0 %v1990, 64
  %v2008 = vpop.permute.xlu0 %2007
  %2009 = vrot.lane.b32.xlu0 %v1991, 64
  %v2010 = vpop.permute.xlu0 %2009
  %2011 = vrot.lane.b32.xlu0 %v1992, 64
  %v2012 = vpop.permute.xlu0 %2011
  %2013 = vrot.lane.b32.xlu0 %v1993, 64
  %v2014 = vpop.permute.xlu0 %2013
  %2015 = vrot.lane.b32.xlu0 %v1994, 64
  %v2016 = vpop.permute.xlu0 %2015
  %2017 = vrot.lane.b32.xlu0 %v1995, 64
  %v2018 = vpop.permute.xlu0 %2017
  %2019 = vrot.lane.b32.xlu0 %v1996, 64
  %v2020 = vpop.permute.xlu0 %2019
  %v2021 = vsel %vm1595, %v2006, %v2008
  %v2022 = vsel %vm1595, %v2008, %v2010
  %v2023 = vsel %vm1595, %v2010, %v2012
  %v2024 = vsel %vm1595, %v2012, %v2014
  %v2025 = vsel %vm1595, %v2014, %v2016
  %v2026 = vsel %vm1595, %v2016, %v2018
  %v2027 = vsel %vm1595, %v2018, %v2020
  %2035 = vst [vmem:[#allocation2 + $0x8c0] sm:$0xff] %v2021
  %2036 = vst [vmem:[#allocation2 + $0x8c8] sm:$0xff] %v2022
  %2037 = vst [vmem:[#allocation2 + $0x8d0] sm:$0xff] %v2023
  %2038 = vst [vmem:[#allocation2 + $0x8d8] sm:$0xff] %v2024
  %2039 = vst [vmem:[#allocation2 + $0x8e0] sm:$0xff] %v2025
  %2040 = vst [vmem:[#allocation2 + $0x8e8] sm:$0xff] %v2026
  %2041 = vst [vmem:[#allocation2 + $0x8f0] sm:$0xff] %v2027
  %v2042 = vld [vmem:[%s308] sm:$0xff]
  %v2043 = vld [vmem:[%s308 + $0x8] sm:$0xff]
  %v2044 = vld [vmem:[%s308 + $0x10] sm:$0xff]
  %v2045 = vld [vmem:[%s308 + $0x18] sm:$0xff]
  %v2046 = vld [vmem:[%s308 + $0x20] sm:$0xff]
  %v2047 = vld [vmem:[%s308 + $0x28] sm:$0xff]
  %v2048 = vld [vmem:[%s308 + $0x30] sm:$0xff]
  %v2049 = vld [vmem:[%s308 + $0x38] sm:$0xff]
  %2058 = vrot.lane.b32.xlu0 %v2042, 63
  %v2059 = vpop.permute.xlu0 %2058
  %2060 = vrot.lane.b32.xlu0 %v2043, 63
  %v2061 = vpop.permute.xlu0 %2060
  %2062 = vrot.lane.b32.xlu0 %v2044, 63
  %v2063 = vpop.permute.xlu0 %2062
  %2064 = vrot.lane.b32.xlu0 %v2045, 63
  %v2065 = vpop.permute.xlu0 %2064
  %2066 = vrot.lane.b32.xlu0 %v2046, 63
  %v2067 = vpop.permute.xlu0 %2066
  %2068 = vrot.lane.b32.xlu0 %v2047, 63
  %v2069 = vpop.permute.xlu0 %2068
  %2070 = vrot.lane.b32.xlu0 %v2048, 63
  %v2071 = vpop.permute.xlu0 %2070
  %2072 = vrot.lane.b32.xlu0 %v2049, 63
  %v2073 = vpop.permute.xlu0 %2072
  %v2074 = vsel %vm1702, %v2059, %v2061
  %v2075 = vsel %vm1702, %v2061, %v2063
  %v2076 = vsel %vm1702, %v2063, %v2065
  %v2077 = vsel %vm1702, %v2065, %v2067
  %v2078 = vsel %vm1702, %v2067, %v2069
  %v2079 = vsel %vm1702, %v2069, %v2071
  %v2080 = vsel %vm1702, %v2071, %v2073
  %2088 = vst [vmem:[#allocation2 + $0x8f8] sm:$0xff] %v2074
  %2089 = vst [vmem:[#allocation2 + $0x900] sm:$0xff] %v2075
  %2090 = vst [vmem:[#allocation2 + $0x908] sm:$0xff] %v2076
  %2091 = vst [vmem:[#allocation2 + $0x910] sm:$0xff] %v2077
  %2092 = vst [vmem:[#allocation2 + $0x918] sm:$0xff] %v2078
  %2093 = vst [vmem:[#allocation2 + $0x920] sm:$0xff] %v2079
  %2094 = vst [vmem:[#allocation2 + $0x928] sm:$0xff] %v2080
  %v2095 = vld [vmem:[%s0] sm:$0xff]
  %v2096 = vld [vmem:[%s0 + $0x8] sm:$0xff]
  %v2097 = vld [vmem:[%s0 + $0x10] sm:$0xff]
  %v2098 = vld [vmem:[%s0 + $0x18] sm:$0xff]
  %v2099 = vld [vmem:[%s0 + $0x20] sm:$0xff]
  %v2100 = vld [vmem:[%s0 + $0x28] sm:$0xff]
  %v2101 = vld [vmem:[%s0 + $0x30] sm:$0xff]
  %v2102 = vld [vmem:[%s0 + $0x38] sm:$0xff]
  %2111 = vrot.lane.b32.xlu0 %v2095, 35
  %v2112 = vpop.permute.xlu0 %2111
  %2113 = vrot.lane.b32.xlu0 %v2096, 35
  %v2114 = vpop.permute.xlu0 %2113
  %2115 = vrot.lane.b32.xlu0 %v2097, 35
  %v2116 = vpop.permute.xlu0 %2115
  %2117 = vrot.lane.b32.xlu0 %v2098, 35
  %v2118 = vpop.permute.xlu0 %2117
  %2119 = vrot.lane.b32.xlu0 %v2099, 35
  %v2120 = vpop.permute.xlu0 %2119
  %2121 = vrot.lane.b32.xlu0 %v2100, 35
  %v2122 = vpop.permute.xlu0 %2121
  %2123 = vrot.lane.b32.xlu0 %v2101, 35
  %v2124 = vpop.permute.xlu0 %2123
  %2125 = vrot.lane.b32.xlu0 %v2102, 35
  %v2126 = vpop.permute.xlu0 %2125
  %vm2127 = vcmask 285696
  %v2128 = vsel %vm2127, %v2112, %v2114
  %v2129 = vsel %vm2127, %v2114, %v2116
  %v2130 = vsel %vm2127, %v2116, %v2118
  %v2131 = vsel %vm2127, %v2118, %v2120
  %v2132 = vsel %vm2127, %v2120, %v2122
  %v2133 = vsel %vm2127, %v2122, %v2124
  %v2134 = vsel %vm2127, %v2124, %v2126
  %2142 = vst [vmem:[#allocation2 + $0x930] sm:$0xff] %v2128
  %2143 = vst [vmem:[#allocation2 + $0x938] sm:$0xff] %v2129
  %2144 = vst [vmem:[#allocation2 + $0x940] sm:$0xff] %v2130
  %2145 = vst [vmem:[#allocation2 + $0x948] sm:$0xff] %v2131
  %2146 = vst [vmem:[#allocation2 + $0x950] sm:$0xff] %v2132
  %2147 = vst [vmem:[#allocation2 + $0x958] sm:$0xff] %v2133
  %2148 = vst [vmem:[#allocation2 + $0x960] sm:$0xff] %v2134
  %v2149 = vld [vmem:[%s25] sm:$0xff]
  %v2150 = vld [vmem:[%s25 + $0x8] sm:$0xff]
  %v2151 = vld [vmem:[%s25 + $0x10] sm:$0xff]
  %v2152 = vld [vmem:[%s25 + $0x18] sm:$0xff]
  %v2153 = vld [vmem:[%s25 + $0x20] sm:$0xff]
  %v2154 = vld [vmem:[%s25 + $0x28] sm:$0xff]
  %v2155 = vld [vmem:[%s25 + $0x30] sm:$0xff]
  %v2156 = vld [vmem:[%s25 + $0x38] sm:$0xff]
  %2165 = vrot.lane.b32.xlu0 %v2149, 35
  %v2166 = vpop.permute.xlu0 %2165
  %2167 = vrot.lane.b32.xlu0 %v2150, 35
  %v2168 = vpop.permute.xlu0 %2167
  %2169 = vrot.lane.b32.xlu0 %v2151, 35
  %v2170 = vpop.permute.xlu0 %2169
  %2171 = vrot.lane.b32.xlu0 %v2152, 35
  %v2172 = vpop.permute.xlu0 %2171
  %2173 = vrot.lane.b32.xlu0 %v2153, 35
  %v2174 = vpop.permute.xlu0 %2173
  %2175 = vrot.lane.b32.xlu0 %v2154, 35
  %v2176 = vpop.permute.xlu0 %2175
  %2177 = vrot.lane.b32.xlu0 %v2155, 35
  %v2178 = vpop.permute.xlu0 %2177
  %2179 = vrot.lane.b32.xlu0 %v2156, 35
  %v2180 = vpop.permute.xlu0 %2179
  %v2181 = vsel %vm2127, %v2166, %v2168
  %v2182 = vsel %vm2127, %v2168, %v2170
  %v2183 = vsel %vm2127, %v2170, %v2172
  %v2184 = vsel %vm2127, %v2172, %v2174
  %v2185 = vsel %vm2127, %v2174, %v2176
  %v2186 = vsel %vm2127, %v2176, %v2178
  %v2187 = vsel %vm2127, %v2178, %v2180
  %2195 = vst [vmem:[#allocation2 + $0x968] sm:$0xff] %v2181
  %2196 = vst [vmem:[#allocation2 + $0x970] sm:$0xff] %v2182
  %2197 = vst [vmem:[#allocation2 + $0x978] sm:$0xff] %v2183
  %2198 = vst [vmem:[#allocation2 + $0x980] sm:$0xff] %v2184
  %2199 = vst [vmem:[#allocation2 + $0x988] sm:$0xff] %v2185
  %2200 = vst [vmem:[#allocation2 + $0x990] sm:$0xff] %v2186
  %2201 = vst [vmem:[#allocation2 + $0x998] sm:$0xff] %v2187
  %v2202 = vld [vmem:[%s0] sm:$0xff]
  %v2203 = vld [vmem:[%s0 + $0x8] sm:$0xff]
  %v2204 = vld [vmem:[%s0 + $0x10] sm:$0xff]
  %v2205 = vld [vmem:[%s0 + $0x18] sm:$0xff]
  %v2206 = vld [vmem:[%s0 + $0x20] sm:$0xff]
  %v2207 = vld [vmem:[%s0 + $0x28] sm:$0xff]
  %v2208 = vld [vmem:[%s0 + $0x30] sm:$0xff]
  %v2209 = vld [vmem:[%s0 + $0x38] sm:$0xff]
  %2218 = vrot.lane.b32.xlu0 %v2202, 34
  %v2219 = vpop.permute.xlu0 %2218
  %2220 = vrot.lane.b32.xlu0 %v2203, 34
  %v2221 = vpop.permute.xlu0 %2220
  %2222 = vrot.lane.b32.xlu0 %v2204, 34
  %v2223 = vpop.permute.xlu0 %2222
  %2224 = vrot.lane.b32.xlu0 %v2205, 34
  %v2225 = vpop.permute.xlu0 %2224
  %2226 = vrot.lane.b32.xlu0 %v2206, 34
  %v2227 = vpop.permute.xlu0 %2226
  %2228 = vrot.lane.b32.xlu0 %v2207, 34
  %v2229 = vpop.permute.xlu0 %2228
  %2230 = vrot.lane.b32.xlu0 %v2208, 34
  %v2231 = vpop.permute.xlu0 %2230
  %2232 = vrot.lane.b32.xlu0 %v2209, 34
  %v2233 = vpop.permute.xlu0 %2232
  %vm2234 = vcmask 277504
  %v2235 = vsel %vm2234, %v2219, %v2221
  %v2236 = vsel %vm2234, %v2221, %v2223
  %v2237 = vsel %vm2234, %v2223, %v2225
  %v2238 = vsel %vm2234, %v2225, %v2227
  %v2239 = vsel %vm2234, %v2227, %v2229
  %v2240 = vsel %vm2234, %v2229, %v2231
  %v2241 = vsel %vm2234, %v2231, %v2233
  %2249 = vst [vmem:[#allocation2 + $0x9a0] sm:$0xff] %v2235
  %2250 = vst [vmem:[#allocation2 + $0x9a8] sm:$0xff] %v2236
  %2251 = vst [vmem:[#allocation2 + $0x9b0] sm:$0xff] %v2237
  %2252 = vst [vmem:[#allocation2 + $0x9b8] sm:$0xff] %v2238
  %2253 = vst [vmem:[#allocation2 + $0x9c0] sm:$0xff] %v2239
  %2254 = vst [vmem:[#allocation2 + $0x9c8] sm:$0xff] %v2240
  %2255 = vst [vmem:[#allocation2 + $0x9d0] sm:$0xff] %v2241
  %v2256 = vld [vmem:[%s25] sm:$0xff]
  %v2257 = vld [vmem:[%s25 + $0x8] sm:$0xff]
  %v2258 = vld [vmem:[%s25 + $0x10] sm:$0xff]
  %v2259 = vld [vmem:[%s25 + $0x18] sm:$0xff]
  %v2260 = vld [vmem:[%s25 + $0x20] sm:$0xff]
  %v2261 = vld [vmem:[%s25 + $0x28] sm:$0xff]
  %v2262 = vld [vmem:[%s25 + $0x30] sm:$0xff]
  %v2263 = vld [vmem:[%s25 + $0x38] sm:$0xff]
  %2272 = vrot.lane.b32.xlu0 %v2256, 34
  %v2273 = vpop.permute.xlu0 %2272
  %2274 = vrot.lane.b32.xlu0 %v2257, 34
  %v2275 = vpop.permute.xlu0 %2274
  %2276 = vrot.lane.b32.xlu0 %v2258, 34
  %v2277 = vpop.permute.xlu0 %2276
  %2278 = vrot.lane.b32.xlu0 %v2259, 34
  %v2279 = vpop.permute.xlu0 %2278
  %2280 = vrot.lane.b32.xlu0 %v2260, 34
  %v2281 = vpop.permute.xlu0 %2280
  %2282 = vrot.lane.b32.xlu0 %v2261, 34
  %v2283 = vpop.permute.xlu0 %2282
  %2284 = vrot.lane.b32.xlu0 %v2262, 34
  %v2285 = vpop.permute.xlu0 %2284
  %2286 = vrot.lane.b32.xlu0 %v2263, 34
  %v2287 = vpop.permute.xlu0 %2286
  %v2288 = vsel %vm2234, %v2273, %v2275
  %v2289 = vsel %vm2234, %v2275, %v2277
  %v2290 = vsel %vm2234, %v2277, %v2279
  %v2291 = vsel %vm2234, %v2279, %v2281
  %v2292 = vsel %vm2234, %v2281, %v2283
  %v2293 = vsel %vm2234, %v2283, %v2285
  %v2294 = vsel %vm2234, %v2285, %v2287
  %2302 = vst [vmem:[#allocation2 + $0x9d8] sm:$0xff] %v2288
  %2303 = vst [vmem:[#allocation2 + $0x9e0] sm:$0xff] %v2289
  %2304 = vst [vmem:[#allocation2 + $0x9e8] sm:$0xff] %v2290
  %2305 = vst [vmem:[#allocation2 + $0x9f0] sm:$0xff] %v2291
  %2306 = vst [vmem:[#allocation2 + $0x9f8] sm:$0xff] %v2292
  %2307 = vst [vmem:[#allocation2 + $0xa00] sm:$0xff] %v2293
  %2308 = vst [vmem:[#allocation2 + $0xa08] sm:$0xff] %v2294
  %v2309 = vld [vmem:[%s0] sm:$0xff]
  %v2310 = vld [vmem:[%s0 + $0x8] sm:$0xff]
  %v2311 = vld [vmem:[%s0 + $0x10] sm:$0xff]
  %v2312 = vld [vmem:[%s0 + $0x18] sm:$0xff]
  %v2313 = vld [vmem:[%s0 + $0x20] sm:$0xff]
  %v2314 = vld [vmem:[%s0 + $0x28] sm:$0xff]
  %v2315 = vld [vmem:[%s0 + $0x30] sm:$0xff]
  %v2316 = vld [vmem:[%s0 + $0x38] sm:$0xff]
  %2325 = vrot.lane.b32.xlu0 %v2309, 33
  %v2326 = vpop.permute.xlu0 %2325
  %2327 = vrot.lane.b32.xlu0 %v2310, 33
  %v2328 = vpop.permute.xlu0 %2327
  %2329 = vrot.lane.b32.xlu0 %v2311, 33
  %v2330 = vpop.permute.xlu0 %2329
  %2331 = vrot.lane.b32.xlu0 %v2312, 33
  %v2332 = vpop.permute.xlu0 %2331
  %2333 = vrot.lane.b32.xlu0 %v2313, 33
  %v2334 = vpop.permute.xlu0 %2333
  %2335 = vrot.lane.b32.xlu0 %v2314, 33
  %v2336 = vpop.permute.xlu0 %2335
  %2337 = vrot.lane.b32.xlu0 %v2315, 33
  %v2338 = vpop.permute.xlu0 %2337
  %2339 = vrot.lane.b32.xlu0 %v2316, 33
  %v2340 = vpop.permute.xlu0 %2339
  %vm2341 = vcmask 269312
  %v2342 = vsel %vm2341, %v2326, %v2328
  %v2343 = vsel %vm2341, %v2328, %v2330
  %v2344 = vsel %vm2341, %v2330, %v2332
  %v2345 = vsel %vm2341, %v2332, %v2334
  %v2346 = vsel %vm2341, %v2334, %v2336
  %v2347 = vsel %vm2341, %v2336, %v2338
  %v2348 = vsel %vm2341, %v2338, %v2340
  %2356 = vst [vmem:[#allocation2 + $0xa10] sm:$0xff] %v2342
  %2357 = vst [vmem:[#allocation2 + $0xa18] sm:$0xff] %v2343
  %2358 = vst [vmem:[#allocation2 + $0xa20] sm:$0xff] %v2344
  %2359 = vst [vmem:[#allocation2 + $0xa28] sm:$0xff] %v2345
  %2360 = vst [vmem:[#allocation2 + $0xa30] sm:$0xff] %v2346
  %2361 = vst [vmem:[#allocation2 + $0xa38] sm:$0xff] %v2347
  %2362 = vst [vmem:[#allocation2 + $0xa40] sm:$0xff] %v2348
  %v2363 = vld [vmem:[%s25] sm:$0xff]
  %v2364 = vld [vmem:[%s25 + $0x8] sm:$0xff]
  %v2365 = vld [vmem:[%s25 + $0x10] sm:$0xff]
  %v2366 = vld [vmem:[%s25 + $0x18] sm:$0xff]
  %v2367 = vld [vmem:[%s25 + $0x20] sm:$0xff]
  %v2368 = vld [vmem:[%s25 + $0x28] sm:$0xff]
  %v2369 = vld [vmem:[%s25 + $0x30] sm:$0xff]
  %v2370 = vld [vmem:[%s25 + $0x38] sm:$0xff]
  %2379 = vrot.lane.b32.xlu0 %v2363, 33
  %v2380 = vpop.permute.xlu0 %2379
  %2381 = vrot.lane.b32.xlu0 %v2364, 33
  %v2382 = vpop.permute.xlu0 %2381
  %2383 = vrot.lane.b32.xlu0 %v2365, 33
  %v2384 = vpop.permute.xlu0 %2383
  %2385 = vrot.lane.b32.xlu0 %v2366, 33
  %v2386 = vpop.permute.xlu0 %2385
  %2387 = vrot.lane.b32.xlu0 %v2367, 33
  %v2388 = vpop.permute.xlu0 %2387
  %2389 = vrot.lane.b32.xlu0 %v2368, 33
  %v2390 = vpop.permute.xlu0 %2389
  %2391 = vrot.lane.b32.xlu0 %v2369, 33
  %v2392 = vpop.permute.xlu0 %2391
  %2393 = vrot.lane.b32.xlu0 %v2370, 33
  %v2394 = vpop.permute.xlu0 %2393
  %v2395 = vsel %vm2341, %v2380, %v2382
  %v2396 = vsel %vm2341, %v2382, %v2384
  %v2397 = vsel %vm2341, %v2384, %v2386
  %v2398 = vsel %vm2341, %v2386, %v2388
  %v2399 = vsel %vm2341, %v2388, %v2390
  %v2400 = vsel %vm2341, %v2390, %v2392
  %v2401 = vsel %vm2341, %v2392, %v2394
  %2409 = vst [vmem:[#allocation2 + $0xa48] sm:$0xff] %v2395
  %2410 = vst [vmem:[#allocation2 + $0xa50] sm:$0xff] %v2396
  %2411 = vst [vmem:[#allocation2 + $0xa58] sm:$0xff] %v2397
  %2412 = vst [vmem:[#allocation2 + $0xa60] sm:$0xff] %v2398
  %2413 = vst [vmem:[#allocation2 + $0xa68] sm:$0xff] %v2399
  %2414 = vst [vmem:[#allocation2 + $0xa70] sm:$0xff] %v2400
  %2415 = vst [vmem:[#allocation2 + $0xa78] sm:$0xff] %v2401
  %v2416 = vld [vmem:[%s0] sm:$0xff]
  %v2417 = vld [vmem:[%s0 + $0x8] sm:$0xff]
  %v2418 = vld [vmem:[%s0 + $0x10] sm:$0xff]
  %v2419 = vld [vmem:[%s0 + $0x18] sm:$0xff]
  %v2420 = vld [vmem:[%s0 + $0x20] sm:$0xff]
  %v2421 = vld [vmem:[%s0 + $0x28] sm:$0xff]
  %v2422 = vld [vmem:[%s0 + $0x30] sm:$0xff]
  %v2423 = vld [vmem:[%s0 + $0x38] sm:$0xff]
  %2432 = vrot.lane.b32.xlu0 %v2416, 32
  %v2433 = vpop.permute.xlu0 %2432
  %2434 = vrot.lane.b32.xlu0 %v2417, 32
  %v2435 = vpop.permute.xlu0 %2434
  %2436 = vrot.lane.b32.xlu0 %v2418, 32
  %v2437 = vpop.permute.xlu0 %2436
  %2438 = vrot.lane.b32.xlu0 %v2419, 32
  %v2439 = vpop.permute.xlu0 %2438
  %2440 = vrot.lane.b32.xlu0 %v2420, 32
  %v2441 = vpop.permute.xlu0 %2440
  %2442 = vrot.lane.b32.xlu0 %v2421, 32
  %v2443 = vpop.permute.xlu0 %2442
  %2444 = vrot.lane.b32.xlu0 %v2422, 32
  %v2445 = vpop.permute.xlu0 %2444
  %2446 = vrot.lane.b32.xlu0 %v2423, 32
  %v2447 = vpop.permute.xlu0 %2446
  %vm2448 = vcmask 261120
  %v2449 = vsel %vm2448, %v2433, %v2435
  %v2450 = vsel %vm2448, %v2435, %v2437
  %v2451 = vsel %vm2448, %v2437, %v2439
  %v2452 = vsel %vm2448, %v2439, %v2441
  %v2453 = vsel %vm2448, %v2441, %v2443
  %v2454 = vsel %vm2448, %v2443, %v2445
  %v2455 = vsel %vm2448, %v2445, %v2447
  %2463 = vst [vmem:[#allocation2 + $0xa80] sm:$0xff] %v2449
  %2464 = vst [vmem:[#allocation2 + $0xa88] sm:$0xff] %v2450
  %2465 = vst [vmem:[#allocation2 + $0xa90] sm:$0xff] %v2451
  %2466 = vst [vmem:[#allocation2 + $0xa98] sm:$0xff] %v2452
  %2467 = vst [vmem:[#allocation2 + $0xaa0] sm:$0xff] %v2453
  %2468 = vst [vmem:[#allocation2 + $0xaa8] sm:$0xff] %v2454
  %2469 = vst [vmem:[#allocation2 + $0xab0] sm:$0xff] %v2455
  %v2470 = vld [vmem:[%s1] sm:$0xff]
  %v2471 = vld [vmem:[%s1 + $0x8] sm:$0xff]
  %v2472 = vld [vmem:[%s1 + $0x10] sm:$0xff]
  %v2473 = vld [vmem:[%s1 + $0x18] sm:$0xff]
  %v2474 = vld [vmem:[%s1 + $0x60] sm:$0xff]
  %v2475 = vld [vmem:[%s1 + $0x68] sm:$0xff]
  %v2476 = vld [vmem:[%s1 + $0x70] sm:$0xff]
  %v2477 = vld [vmem:[%s1 + $0x78] sm:$0xff]
  %v2478 = vld [vmem:[#allocation2] sm:$0xff]
  %v2479 = vld [vmem:[#allocation2 + $0x8] sm:$0xff]
  %v2480 = vld [vmem:[#allocation2 + $0x10] sm:$0xff]
  %v2481 = vld [vmem:[#allocation2 + $0x18] sm:$0xff]
  %v2482 = vld [vmem:[#allocation2 + $0x20] sm:$0xff]
  %v2483 = vld [vmem:[#allocation2 + $0x28] sm:$0xff]
  %v2484 = vld [vmem:[#allocation2 + $0x30] sm:$0xff]
  %v2485 = vld [vmem:[#allocation2 + $0x38] sm:$0xff]
  %v2486 = vld [vmem:[#allocation2 + $0x40] sm:$0xff]
  %v2487 = vld [vmem:[#allocation2 + $0x48] sm:$0xff]
  %v2488 = vld [vmem:[#allocation2 + $0x50] sm:$0xff]
  %v2489 = vld [vmem:[#allocation2 + $0x58] sm:$0xff]
  %v2490 = vld [vmem:[#allocation2 + $0x60] sm:$0xff]
  %v2491 = vld [vmem:[#allocation2 + $0x68] sm:$0xff]
  %v2492 = vld [vmem:[#allocation2 + $0x70] sm:$0xff]
  %v2493 = vld [vmem:[#allocation2 + $0x78] sm:$0xff]
  %v2494 = vld [vmem:[#allocation2 + $0x80] sm:$0xff]
  %v2495 = vld [vmem:[#allocation2 + $0x88] sm:$0xff]
  %v2496 = vld [vmem:[#allocation2 + $0x90] sm:$0xff]
  %v2497 = vld [vmem:[#allocation2 + $0x98] sm:$0xff]
  %v2498 = vld [vmem:[#allocation2 + $0xa0] sm:$0xff]
  %v2499 = vld [vmem:[#allocation2 + $0xa8] sm:$0xff]
  %v2500 = vld [vmem:[#allocation2 + $0xb0] sm:$0xff]
  %v2501 = vld [vmem:[#allocation2 + $0xb8] sm:$0xff]
  %v2502 = vld [vmem:[#allocation2 + $0xc0] sm:$0xff]
  %v2503 = vld [vmem:[#allocation2 + $0xc8] sm:$0xff]
  %v2504 = vld [vmem:[#allocation2 + $0xd0] sm:$0xff]
  %v2505 = vld [vmem:[#allocation2 + $0xd8] sm:$0xff]
  %v2506 = vld [vmem:[#allocation2 + $0xe0] sm:$0xff]
  %v2507 = vld [vmem:[#allocation2 + $0xe8] sm:$0xff]
  %v2508 = vld [vmem:[#allocation2 + $0xf0] sm:$0xff]
  %v2509 = vld [vmem:[#allocation2 + $0xf8] sm:$0xff]
  %v2510 = vld [vmem:[#allocation2 + $0x100] sm:$0xff]
  %v2511 = vld [vmem:[#allocation2 + $0x108] sm:$0xff]
  %v2512 = vld [vmem:[#allocation2 + $0x110] sm:$0xff]
  %v2513 = vld [vmem:[#allocation2 + $0x118] sm:$0xff]
  %v2514 = vld [vmem:[#allocation2 + $0x120] sm:$0xff]
  %v2515 = vld [vmem:[#allocation2 + $0x128] sm:$0xff]
  %v2516 = vld [vmem:[#allocation2 + $0x130] sm:$0xff]
  %v2517 = vld [vmem:[#allocation2 + $0x138] sm:$0xff]
  %v2518 = vld [vmem:[#allocation2 + $0x140] sm:$0xff]
  %v2519 = vld [vmem:[#allocation2 + $0x148] sm:$0xff]
  %v2520 = vld [vmem:[#allocation2 + $0x150] sm:$0xff]
  %v2521 = vld [vmem:[#allocation2 + $0x158] sm:$0xff]
  %v2522 = vld [vmem:[#allocation2 + $0x160] sm:$0xff]
  %v2523 = vld [vmem:[#allocation2 + $0x168] sm:$0xff]
  %v2524 = vld [vmem:[#allocation2 + $0x170] sm:$0xff]
  %v2525 = vld [vmem:[#allocation2 + $0x178] sm:$0xff]
  %v2526 = vld [vmem:[#allocation2 + $0x180] sm:$0xff]
  %v2527 = vld [vmem:[#allocation2 + $0x188] sm:$0xff]
  %v2528 = vld [vmem:[#allocation2 + $0x190] sm:$0xff]
  %v2529 = vld [vmem:[#allocation2 + $0x198] sm:$0xff]
  %v2530 = vld [vmem:[#allocation2 + $0x1a0] sm:$0xff]
  %v2531 = vld [vmem:[#allocation2 + $0x1a8] sm:$0xff]
  %v2532 = vld [vmem:[#allocation2 + $0x1b0] sm:$0xff]
  %v2533 = vld [vmem:[#allocation2 + $0x1b8] sm:$0xff]
  %v2534 = vld [vmem:[#allocation2 + $0x1c0] sm:$0xff]
  %v2535 = vld [vmem:[#allocation2 + $0x1c8] sm:$0xff]
  %v2536 = vld [vmem:[#allocation2 + $0x1d0] sm:$0xff]
  %v2537 = vld [vmem:[#allocation2 + $0x1d8] sm:$0xff]
  %v2538 = vld [vmem:[#allocation2 + $0x1e0] sm:$0xff]
  %v2539 = vld [vmem:[#allocation2 + $0x1e8] sm:$0xff]
  %v2540 = vld [vmem:[#allocation2 + $0x1f0] sm:$0xff]
  %v2541 = vld [vmem:[#allocation2 + $0x1f8] sm:$0xff]
  %v2542 = vld [vmem:[#allocation2 + $0x200] sm:$0xff]
  %v2543 = vld [vmem:[#allocation2 + $0x208] sm:$0xff]
  %v2544 = vld [vmem:[#allocation2 + $0x210] sm:$0xff]
  %v2545 = vld [vmem:[#allocation2 + $0x218] sm:$0xff]
  %v2546 = vld [vmem:[#allocation2 + $0x220] sm:$0xff]
  %v2547 = vld [vmem:[#allocation2 + $0x228] sm:$0xff]
  %v2548 = vld [vmem:[#allocation2 + $0x230] sm:$0xff]
  %v2549 = vld [vmem:[#allocation2 + $0x238] sm:$0xff]
  %v2550 = vld [vmem:[#allocation2 + $0x240] sm:$0xff]
  %v2551 = vld [vmem:[#allocation2 + $0x248] sm:$0xff]
  %v2552 = vld [vmem:[#allocation2 + $0x250] sm:$0xff]
  %v2553 = vld [vmem:[#allocation2 + $0x258] sm:$0xff]
  %v2554 = vld [vmem:[#allocation2 + $0x260] sm:$0xff]
  %v2555 = vld [vmem:[#allocation2 + $0x268] sm:$0xff]
  %v2556 = vld [vmem:[#allocation2 + $0x270] sm:$0xff]
  %v2557 = vld [vmem:[#allocation2 + $0x278] sm:$0xff]
  %v2558 = vld [vmem:[#allocation2 + $0x280] sm:$0xff]
  %v2559 = vld [vmem:[#allocation2 + $0x288] sm:$0xff]
  %v2560 = vld [vmem:[#allocation2 + $0x290] sm:$0xff]
  %v2561 = vld [vmem:[#allocation2 + $0x298] sm:$0xff]
  %v2562 = vld [vmem:[#allocation2 + $0x2a0] sm:$0xff]
  %v2563 = vld [vmem:[#allocation2 + $0x2a8] sm:$0xff]
  %v2564 = vld [vmem:[#allocation2 + $0x2b0] sm:$0xff]
  %v2565 = vld [vmem:[#allocation2 + $0x2b8] sm:$0xff]
  %v2566 = vld [vmem:[#allocation2 + $0x2c0] sm:$0xff]
  %v2567 = vld [vmem:[#allocation2 + $0x2c8] sm:$0xff]
  %v2568 = vld [vmem:[#allocation2 + $0x2d0] sm:$0xff]
  %v2569 = vld [vmem:[#allocation2 + $0x2d8] sm:$0xff]
  %v2570 = vld [vmem:[#allocation2 + $0x2e0] sm:$0xff]
  %v2571 = vld [vmem:[#allocation2 + $0x2e8] sm:$0xff]
  %v2572 = vld [vmem:[#allocation2 + $0x2f0] sm:$0xff]
  %v2573 = vld [vmem:[#allocation2 + $0x2f8] sm:$0xff]
  %v2574 = vld [vmem:[#allocation2 + $0x300] sm:$0xff]
  %v2575 = vld [vmem:[#allocation2 + $0x308] sm:$0xff]
  %v2576 = vld [vmem:[#allocation2 + $0x310] sm:$0xff]
  %v2577 = vld [vmem:[#allocation2 + $0x318] sm:$0xff]
  %v2578 = vld [vmem:[#allocation2 + $0x320] sm:$0xff]
  %v2579 = vld [vmem:[#allocation2 + $0x328] sm:$0xff]
  %v2580 = vld [vmem:[#allocation2 + $0x330] sm:$0xff]
  %v2581 = vld [vmem:[#allocation2 + $0x338] sm:$0xff]
  %v2582 = vld [vmem:[#allocation2 + $0x340] sm:$0xff]
  %v2583 = vld [vmem:[#allocation2 + $0x348] sm:$0xff]
  %v2584 = vld [vmem:[#allocation2 + $0x350] sm:$0xff]
  %v2585 = vld [vmem:[#allocation2 + $0x358] sm:$0xff]
  %v2586 = vld [vmem:[#allocation2 + $0x360] sm:$0xff]
  %v2587 = vld [vmem:[#allocation2 + $0x368] sm:$0xff]
  %v2588 = vld [vmem:[#allocation2 + $0x370] sm:$0xff]
  %v2589 = vld [vmem:[#allocation2 + $0x378] sm:$0xff]
  %v2590 = vld [vmem:[#allocation2 + $0x380] sm:$0xff]
  %v2591 = vld [vmem:[#allocation2 + $0x388] sm:$0xff]
  %v2592 = vld [vmem:[#allocation2 + $0x390] sm:$0xff]
  %v2593 = vld [vmem:[#allocation2 + $0x398] sm:$0xff]
  %v2594 = vld [vmem:[#allocation2 + $0x3a0] sm:$0xff]
  %v2595 = vld [vmem:[#allocation2 + $0x3a8] sm:$0xff]
  %v2596 = vld [vmem:[#allocation2 + $0x3b0] sm:$0xff]
  %v2597 = vld [vmem:[#allocation2 + $0x3b8] sm:$0xff]
  %v2598 = vld [vmem:[#allocation2 + $0x3c0] sm:$0xff]
  %v2599 = vld [vmem:[#allocation2 + $0x3c8] sm:$0xff]
  %v2600 = vld [vmem:[#allocation2 + $0x3d0] sm:$0xff]
  %v2601 = vld [vmem:[#allocation2 + $0x3d8] sm:$0xff]
  %v2602 = vld [vmem:[#allocation2 + $0x3e0] sm:$0xff]
  %v2603 = vld [vmem:[#allocation2 + $0x3e8] sm:$0xff]
  %v2604 = vld [vmem:[#allocation2 + $0x3f0] sm:$0xff]
  %v2605 = vld [vmem:[#allocation2 + $0x3f8] sm:$0xff]
  %v2606 = vld [vmem:[#allocation2 + $0x400] sm:$0xff]
  %v2607 = vld [vmem:[#allocation2 + $0x408] sm:$0xff]
  %v2608 = vld [vmem:[#allocation2 + $0x410] sm:$0xff]
  %v2609 = vld [vmem:[#allocation2 + $0x418] sm:$0xff]
  %v2610 = vld [vmem:[#allocation2 + $0x420] sm:$0xff]
  %v2611 = vld [vmem:[#allocation2 + $0x428] sm:$0xff]
  %v2612 = vld [vmem:[#allocation2 + $0x430] sm:$0xff]
  %v2613 = vld [vmem:[#allocation2 + $0x438] sm:$0xff]
  %v2614 = vld [vmem:[#allocation2 + $0x440] sm:$0xff]
  %v2615 = vld [vmem:[#allocation2 + $0x448] sm:$0xff]
  %v2616 = vld [vmem:[#allocation2 + $0x450] sm:$0xff]
  %v2617 = vld [vmem:[#allocation2 + $0x458] sm:$0xff]
  %v2618 = vld [vmem:[#allocation2 + $0x460] sm:$0xff]
  %v2619 = vld [vmem:[#allocation2 + $0x468] sm:$0xff]
  %v2620 = vld [vmem:[#allocation2 + $0x470] sm:$0xff]
  %v2621 = vld [vmem:[#allocation2 + $0x478] sm:$0xff]
  %v2622 = vld [vmem:[#allocation2 + $0x480] sm:$0xff]
  %v2623 = vld [vmem:[#allocation2 + $0x488] sm:$0xff]
  %v2624 = vld [vmem:[#allocation2 + $0x490] sm:$0xff]
  %v2625 = vld [vmem:[#allocation2 + $0x498] sm:$0xff]
  %v2626 = vld [vmem:[#allocation2 + $0x4a0] sm:$0xff]
  %v2627 = vld [vmem:[#allocation2 + $0x4a8] sm:$0xff]
  %v2628 = vld [vmem:[#allocation2 + $0x4b0] sm:$0xff]
  %v2629 = vld [vmem:[#allocation2 + $0x4b8] sm:$0xff]
  %v2630 = vld [vmem:[#allocation2 + $0x4c0] sm:$0xff]
  %v2631 = vld [vmem:[#allocation2 + $0x4c8] sm:$0xff]
  %v2632 = vld [vmem:[#allocation2 + $0x4d0] sm:$0xff]
  %v2633 = vld [vmem:[#allocation2 + $0x4d8] sm:$0xff]
  %v2634 = vld [vmem:[#allocation2 + $0x4e0] sm:$0xff]
  %v2635 = vld [vmem:[#allocation2 + $0x4e8] sm:$0xff]
  %v2636 = vld [vmem:[#allocation2 + $0x4f0] sm:$0xff]
  %v2637 = vld [vmem:[#allocation2 + $0x4f8] sm:$0xff]
  %v2638 = vld [vmem:[#allocation2 + $0x500] sm:$0xff]
  %v2639 = vld [vmem:[#allocation2 + $0x508] sm:$0xff]
  %v2640 = vld [vmem:[#allocation2 + $0x510] sm:$0xff]
  %v2641 = vld [vmem:[#allocation2 + $0x518] sm:$0xff]
  %v2642 = vld [vmem:[#allocation2 + $0x520] sm:$0xff]
  %v2643 = vld [vmem:[#allocation2 + $0x528] sm:$0xff]
  %v2644 = vld [vmem:[#allocation2 + $0x530] sm:$0xff]
  %v2645 = vld [vmem:[#allocation2 + $0x538] sm:$0xff]
  %v2646 = vld [vmem:[#allocation2 + $0x540] sm:$0xff]
  %v2647 = vld [vmem:[#allocation2 + $0x548] sm:$0xff]
  %v2648 = vld [vmem:[#allocation2 + $0x550] sm:$0xff]
  %v2649 = vld [vmem:[#allocation2 + $0x558] sm:$0xff]
  %v2650 = vld [vmem:[#allocation2 + $0x560] sm:$0xff]
  %v2651 = vld [vmem:[#allocation2 + $0x568] sm:$0xff]
  %v2652 = vld [vmem:[#allocation2 + $0x570] sm:$0xff]
  %v2653 = vld [vmem:[#allocation2 + $0x578] sm:$0xff]
  %v2654 = vld [vmem:[#allocation2 + $0x580] sm:$0xff]
  %v2655 = vld [vmem:[#allocation2 + $0x588] sm:$0xff]
  %v2656 = vld [vmem:[#allocation2 + $0x590] sm:$0xff]
  %v2657 = vld [vmem:[#allocation2 + $0x598] sm:$0xff]
  %v2658 = vld [vmem:[#allocation2 + $0x5a0] sm:$0xff]
  %v2659 = vld [vmem:[#allocation2 + $0x5a8] sm:$0xff]
  %v2660 = vld [vmem:[#allocation2 + $0x5b0] sm:$0xff]
  %v2661 = vld [vmem:[#allocation2 + $0x5b8] sm:$0xff]
  %v2662 = vld [vmem:[#allocation2 + $0x5c0] sm:$0xff]
  %v2663 = vld [vmem:[#allocation2 + $0x5c8] sm:$0xff]
  %v2664 = vld [vmem:[#allocation2 + $0x5d0] sm:$0xff]
  %v2665 = vld [vmem:[#allocation2 + $0x5d8] sm:$0xff]
  %v2666 = vld [vmem:[#allocation2 + $0x5e0] sm:$0xff]
  %v2667 = vld [vmem:[#allocation2 + $0x5e8] sm:$0xff]
  %v2668 = vld [vmem:[#allocation2 + $0x5f0] sm:$0xff]
  %v2669 = vld [vmem:[#allocation2 + $0x5f8] sm:$0xff]
  %v2670 = vld [vmem:[#allocation2 + $0x600] sm:$0xff]
  %v2671 = vld [vmem:[#allocation2 + $0x608] sm:$0xff]
  %v2672 = vld [vmem:[#allocation2 + $0x610] sm:$0xff]
  %v2673 = vld [vmem:[#allocation2 + $0x618] sm:$0xff]
  %v2674 = vld [vmem:[#allocation2 + $0x620] sm:$0xff]
  %v2675 = vld [vmem:[#allocation2 + $0x628] sm:$0xff]
  %v2676 = vld [vmem:[#allocation2 + $0x630] sm:$0xff]
  %v2677 = vld [vmem:[#allocation2 + $0x638] sm:$0xff]
  %v2678 = vld [vmem:[#allocation2 + $0x640] sm:$0xff]
  %v2679 = vld [vmem:[#allocation2 + $0x648] sm:$0xff]
  %v2680 = vld [vmem:[#allocation2 + $0x650] sm:$0xff]
  %v2681 = vld [vmem:[#allocation2 + $0x658] sm:$0xff]
  %v2682 = vld [vmem:[#allocation2 + $0x660] sm:$0xff]
  %v2683 = vld [vmem:[#allocation2 + $0x668] sm:$0xff]
  %v2684 = vld [vmem:[#allocation2 + $0x670] sm:$0xff]
  %v2685 = vld [vmem:[#allocation2 + $0x678] sm:$0xff]
  %v2686 = vld [vmem:[#allocation2 + $0x680] sm:$0xff]
  %v2687 = vld [vmem:[#allocation2 + $0x688] sm:$0xff]
  %v2688 = vld [vmem:[#allocation2 + $0x690] sm:$0xff]
  %v2689 = vld [vmem:[#allocation2 + $0x698] sm:$0xff]
  %v2690 = vld [vmem:[#allocation2 + $0x6a0] sm:$0xff]
  %v2691 = vld [vmem:[#allocation2 + $0x6a8] sm:$0xff]
  %v2692 = vld [vmem:[#allocation2 + $0x6b0] sm:$0xff]
  %v2693 = vld [vmem:[#allocation2 + $0x6b8] sm:$0xff]
  %v2694 = vld [vmem:[#allocation2 + $0x6c0] sm:$0xff]
  %v2695 = vld [vmem:[#allocation2 + $0x6c8] sm:$0xff]
  %v2696 = vld [vmem:[#allocation2 + $0x6d0] sm:$0xff]
  %v2697 = vld [vmem:[#allocation2 + $0x6d8] sm:$0xff]
  %v2698 = vld [vmem:[#allocation2 + $0x6e0] sm:$0xff]
  %v2699 = vld [vmem:[#allocation2 + $0x6e8] sm:$0xff]
  %v2700 = vld [vmem:[#allocation2 + $0x6f0] sm:$0xff]
  %v2701 = vld [vmem:[#allocation2 + $0x6f8] sm:$0xff]
  %v2702 = vld [vmem:[#allocation2 + $0x700] sm:$0xff]
  %v2703 = vld [vmem:[#allocation2 + $0x708] sm:$0xff]
  %v2704 = vld [vmem:[#allocation2 + $0x710] sm:$0xff]
  %v2705 = vld [vmem:[#allocation2 + $0x718] sm:$0xff]
  %v2706 = vld [vmem:[#allocation2 + $0x720] sm:$0xff]
  %v2707 = vld [vmem:[#allocation2 + $0x728] sm:$0xff]
  %v2708 = vld [vmem:[#allocation2 + $0x730] sm:$0xff]
  %v2709 = vld [vmem:[#allocation2 + $0x738] sm:$0xff]
  %v2710 = vld [vmem:[#allocation2 + $0x740] sm:$0xff]
  %v2711 = vld [vmem:[#allocation2 + $0x748] sm:$0xff]
  %v2712 = vld [vmem:[#allocation2 + $0x750] sm:$0xff]
  %v2713 = vld [vmem:[#allocation2 + $0x758] sm:$0xff]
  %v2714 = vld [vmem:[#allocation2 + $0x760] sm:$0xff]
  %v2715 = vld [vmem:[#allocation2 + $0x768] sm:$0xff]
  %v2716 = vld [vmem:[#allocation2 + $0x770] sm:$0xff]
  %v2717 = vld [vmem:[#allocation2 + $0x778] sm:$0xff]
  %v2718 = vld [vmem:[#allocation2 + $0x780] sm:$0xff]
  %v2719 = vld [vmem:[#allocation2 + $0x788] sm:$0xff]
  %v2720 = vld [vmem:[#allocation2 + $0x790] sm:$0xff]
  %v2721 = vld [vmem:[#allocation2 + $0x798] sm:$0xff]
  %v2722 = vld [vmem:[#allocation2 + $0x7a0] sm:$0xff]
  %v2723 = vld [vmem:[#allocation2 + $0x7a8] sm:$0xff]
  %v2724 = vld [vmem:[#allocation2 + $0x7b0] sm:$0xff]
  %v2725 = vld [vmem:[#allocation2 + $0x7b8] sm:$0xff]
  %v2726 = vld [vmem:[#allocation2 + $0x7c0] sm:$0xff]
  %v2727 = vld [vmem:[#allocation2 + $0x7c8] sm:$0xff]
  %v2728 = vld [vmem:[#allocation2 + $0x7d0] sm:$0xff]
  %v2729 = vld [vmem:[#allocation2 + $0x7d8] sm:$0xff]
  %v2730 = vld [vmem:[#allocation2 + $0x7e0] sm:$0xff]
  %v2731 = vld [vmem:[#allocation2 + $0x7e8] sm:$0xff]
  %v2732 = vld [vmem:[#allocation2 + $0x7f0] sm:$0xff]
  %v2733 = vld [vmem:[#allocation2 + $0x7f8] sm:$0xff]
  %v2734 = vld [vmem:[#allocation2 + $0x800] sm:$0xff]
  %v2735 = vld [vmem:[#allocation2 + $0x808] sm:$0xff]
  %v2736 = vld [vmem:[#allocation2 + $0x810] sm:$0xff]
  %v2737 = vld [vmem:[#allocation2 + $0x818] sm:$0xff]
  %v2738 = vld [vmem:[#allocation2 + $0x820] sm:$0xff]
  %v2739 = vld [vmem:[#allocation2 + $0x828] sm:$0xff]
  %v2740 = vld [vmem:[#allocation2 + $0x830] sm:$0xff]
  %v2741 = vld [vmem:[#allocation2 + $0x838] sm:$0xff]
  %v2742 = vld [vmem:[#allocation2 + $0x840] sm:$0xff]
  %v2743 = vld [vmem:[#allocation2 + $0x848] sm:$0xff]
  %v2744 = vld [vmem:[#allocation2 + $0x850] sm:$0xff]
  %v2745 = vld [vmem:[#allocation2 + $0x858] sm:$0xff]
  %v2746 = vld [vmem:[#allocation2 + $0x860] sm:$0xff]
  %v2747 = vld [vmem:[#allocation2 + $0x868] sm:$0xff]
  %v2748 = vld [vmem:[#allocation2 + $0x870] sm:$0xff]
  %v2749 = vld [vmem:[#allocation2 + $0x878] sm:$0xff]
  %v2750 = vld [vmem:[#allocation2 + $0x880] sm:$0xff]
  %v2751 = vld [vmem:[#allocation2 + $0x888] sm:$0xff]
  %v2752 = vld [vmem:[#allocation2 + $0x890] sm:$0xff]
  %v2753 = vld [vmem:[#allocation2 + $0x898] sm:$0xff]
  %v2754 = vld [vmem:[#allocation2 + $0x8a0] sm:$0xff]
  %v2755 = vld [vmem:[#allocation2 + $0x8a8] sm:$0xff]
  %v2756 = vld [vmem:[#allocation2 + $0x8b0] sm:$0xff]
  %v2757 = vld [vmem:[#allocation2 + $0x8b8] sm:$0xff]
  %v2758 = vld [vmem:[#allocation2 + $0x8c0] sm:$0xff]
  %v2759 = vld [vmem:[#allocation2 + $0x8c8] sm:$0xff]
  %v2760 = vld [vmem:[#allocation2 + $0x8d0] sm:$0xff]
  %v2761 = vld [vmem:[#allocation2 + $0x8d8] sm:$0xff]
  %v2762 = vld [vmem:[#allocation2 + $0x8e0] sm:$0xff]
  %v2763 = vld [vmem:[#allocation2 + $0x8e8] sm:$0xff]
  %v2764 = vld [vmem:[#allocation2 + $0x8f0] sm:$0xff]
  %v2765 = vld [vmem:[#allocation2 + $0x8f8] sm:$0xff]
  %v2766 = vld [vmem:[#allocation2 + $0x900] sm:$0xff]
  %v2767 = vld [vmem:[#allocation2 + $0x908] sm:$0xff]
  %v2768 = vld [vmem:[#allocation2 + $0x910] sm:$0xff]
  %v2769 = vld [vmem:[#allocation2 + $0x918] sm:$0xff]
  %v2770 = vld [vmem:[#allocation2 + $0x920] sm:$0xff]
  %v2771 = vld [vmem:[#allocation2 + $0x928] sm:$0xff]
  %v2772 = vld [vmem:[#allocation2 + $0x930] sm:$0xff]
  %v2773 = vld [vmem:[#allocation2 + $0x938] sm:$0xff]
  %v2774 = vld [vmem:[#allocation2 + $0x940] sm:$0xff]
  %v2775 = vld [vmem:[#allocation2 + $0x948] sm:$0xff]
  %v2776 = vld [vmem:[#allocation2 + $0x950] sm:$0xff]
  %v2777 = vld [vmem:[#allocation2 + $0x958] sm:$0xff]
  %v2778 = vld [vmem:[#allocation2 + $0x960] sm:$0xff]
  %v2779 = vld [vmem:[#allocation2 + $0x968] sm:$0xff]
  %v2780 = vld [vmem:[#allocation2 + $0x970] sm:$0xff]
  %v2781 = vld [vmem:[#allocation2 + $0x978] sm:$0xff]
  %v2782 = vld [vmem:[#allocation2 + $0x980] sm:$0xff]
  %v2783 = vld [vmem:[#allocation2 + $0x988] sm:$0xff]
  %v2784 = vld [vmem:[#allocation2 + $0x990] sm:$0xff]
  %v2785 = vld [vmem:[#allocation2 + $0x998] sm:$0xff]
  %v2786 = vld [vmem:[#allocation2 + $0x9a0] sm:$0xff]
  %v2787 = vld [vmem:[#allocation2 + $0x9a8] sm:$0xff]
  %v2788 = vld [vmem:[#allocation2 + $0x9b0] sm:$0xff]
  %v2789 = vld [vmem:[#allocation2 + $0x9b8] sm:$0xff]
  %v2790 = vld [vmem:[#allocation2 + $0x9c0] sm:$0xff]
  %v2791 = vld [vmem:[#allocation2 + $0x9c8] sm:$0xff]
  %v2792 = vld [vmem:[#allocation2 + $0x9d0] sm:$0xff]
  %v2793 = vld [vmem:[#allocation2 + $0x9d8] sm:$0xff]
  %v2794 = vld [vmem:[#allocation2 + $0x9e0] sm:$0xff]
  %v2795 = vld [vmem:[#allocation2 + $0x9e8] sm:$0xff]
  %v2796 = vld [vmem:[#allocation2 + $0x9f0] sm:$0xff]
  %v2797 = vld [vmem:[#allocation2 + $0x9f8] sm:$0xff]
  %v2798 = vld [vmem:[#allocation2 + $0xa00] sm:$0xff]
  %v2799 = vld [vmem:[#allocation2 + $0xa08] sm:$0xff]
  %v2800 = vld [vmem:[#allocation2 + $0xa10] sm:$0xff]
  %v2801 = vld [vmem:[#allocation2 + $0xa18] sm:$0xff]
  %v2802 = vld [vmem:[#allocation2 + $0xa20] sm:$0xff]
  %v2803 = vld [vmem:[#allocation2 + $0xa28] sm:$0xff]
  %v2804 = vld [vmem:[#allocation2 + $0xa30] sm:$0xff]
  %v2805 = vld [vmem:[#allocation2 + $0xa38] sm:$0xff]
  %v2806 = vld [vmem:[#allocation2 + $0xa40] sm:$0xff]
  %v2807 = vld [vmem:[#allocation2 + $0xa48] sm:$0xff]
  %v2808 = vld [vmem:[#allocation2 + $0xa50] sm:$0xff]
  %v2809 = vld [vmem:[#allocation2 + $0xa58] sm:$0xff]
  %v2810 = vld [vmem:[#allocation2 + $0xa60] sm:$0xff]
  %v2811 = vld [vmem:[#allocation2 + $0xa68] sm:$0xff]
  %v2812 = vld [vmem:[#allocation2 + $0xa70] sm:$0xff]
  %v2813 = vld [vmem:[#allocation2 + $0xa78] sm:$0xff]
  %v2814 = vld [vmem:[#allocation2 + $0xa80] sm:$0xff]
  %v2815 = vld [vmem:[#allocation2 + $0xa88] sm:$0xff]
  %v2816 = vld [vmem:[#allocation2 + $0xa90] sm:$0xff]
  %v2817 = vld [vmem:[#allocation2 + $0xa98] sm:$0xff]
  %v2818 = vld [vmem:[#allocation2 + $0xaa0] sm:$0xff]
  %v2819 = vld [vmem:[#allocation2 + $0xaa8] sm:$0xff]
  %v2820 = vld [vmem:[#allocation2 + $0xab0] sm:$0xff]
  %v2821 = vld [vmem:[%s1 + $0x20] sm:$0xff]
  %v2822 = vld [vmem:[%s1 + $0x80] sm:$0xff]
  %s2823 = scalar_lea.vmem %s1, 32
  %v2824 = vld [vmem:[%s2823] ss:$8 sm:$0xf]
  %v2825 = vld [vmem:[%s2823] ss:$8 sm:$0xf0]
  %v2826 = vor.u32 %v2824, %v2825
  %2828 = vset.pattern.permute.xlu0 24
  %2829 = vperm.xlu0 %2828, %v2821
  %v2830 = vpop.permute.xlu0 %2829
  %2833 = vset.pattern.permute.xlu0 24
  %2834 = vperm.xlu0 %2833, %v2822
  %v2835 = vpop.permute.xlu0 %2834
  %vm2837 = vcmask 64512
  %v2839 = vsel %vm2837, %v2473, 0
  %v2842 = vsel %vm2837, %v2477, 0
  %2844 = vmatprep.subr.mxu0 %v2584
  %2845 = vmatpush1.msra.mxu0 %v2583
  %2846 = vmatprep.subr.mxu0 %v2577
  %2847 = vmatpush1.msra.mxu0 %v2576
  %2848 = vmatprep.subr.mxu0 %v2570
  %2849 = vmatpush1.msra.mxu0 %v2569
  %2850 = vmatprep.subr.mxu0 %v2563
  %2851 = vmatpush1.msra.mxu0 %v2562
  %2852 = vmatprep.subr.mxu0 %v2556
  %2853 = vmatpush1.msra.mxu0 %v2555
  %2854 = vmatprep.subr.mxu0 %v2549
  %2855 = vmatpush1.msra.mxu0 %v2548
  %2856 = vmatprep.subr.mxu0 %v2542
  %2857 = vmatpush1.msra.mxu0 %v2541
  %2858 = vmatprep.subr.mxu0 %v2535
  %2859 = vmatpush1.msra.mxu0 %v2534
  %2860 = vmatprep.subr.mxu0 %v2528
  %2861 = vmatpush1.msra.mxu0 %v2527
  %2862 = vmatprep.subr.mxu0 %v2521
  %2863 = vmatpush1.msra.mxu0 %v2520
  %2864 = vmatprep.subr.mxu0 %v2514
  %2865 = vmatpush1.msra.mxu0 %v2513
  %2866 = vmatprep.subr.mxu0 %v2507
  %2867 = vmatpush1.msra.mxu0 %v2506
  %2868 = vmatprep.subr.mxu0 %v2500
  %2869 = vmatpush1.msra.mxu0 %v2499
  %2870 = vmatprep.subr.mxu0 %v2493
  %2871 = vmatpush1.msra.mxu0 %v2492
  %2872 = vmatprep.subr.mxu0 %v2486
  %2873 = vmatpush1.msra.mxu0 %v2485
  %2874 = vmatprep.subr.mxu0 %v2479
  %2875 = vmatpush1.msra.mxu0 %v2478
  %2876 = vmatprep.subr.mxu0 %v2696
  %2877 = vmatpush2.msra.mxu0 %v2695
  %2878 = vmatprep.subr.mxu0 %v2689
  %2879 = vmatpush2.msra.mxu0 %v2688
  %2880 = vmatprep.subr.mxu0 %v2682
  %2881 = vmatpush2.msra.mxu0 %v2681
  %2882 = vmatprep.subr.mxu0 %v2675
  %2883 = vmatpush2.msra.mxu0 %v2674
  %2884 = vmatprep.subr.mxu0 %v2668
  %2885 = vmatpush2.msra.mxu0 %v2667
  %2886 = vmatprep.subr.mxu0 %v2661
  %2887 = vmatpush2.msra.mxu0 %v2660
  %2888 = vmatprep.subr.mxu0 %v2654
  %2889 = vmatpush2.msra.mxu0 %v2653
  %2890 = vmatprep.subr.mxu0 %v2647
  %2891 = vmatpush2.msra.mxu0 %v2646
  %2892 = vmatprep.subr.mxu0 %v2640
  %2893 = vmatpush2.msra.mxu0 %v2639
  %2894 = vmatprep.subr.mxu0 %v2633
  %2895 = vmatpush2.msra.mxu0 %v2632
  %2896 = vmatprep.subr.mxu0 %v2626
  %2897 = vmatpush2.msra.mxu0 %v2625
  %2898 = vmatprep.subr.mxu0 %v2619
  %2899 = vmatpush2.msra.mxu0 %v2618
  %2900 = vmatprep.subr.mxu0 %v2612
  %2901 = vmatpush2.msra.mxu0 %v2611
  %2902 = vmatprep.subr.mxu0 %v2605
  %2903 = vmatpush2.msra.mxu0 %v2604
  %2904 = vmatprep.subr.mxu0 %v2598
  %2905 = vmatpush2.msra.mxu0 %v2597
  %2906 = vmatprep.subr.mxu0 %v2591
  %2907 = vmatpush2.msra.mxu0 %v2590
  %2908 = vmatprep.mubr.f32.mxu0 %v2471
  %2909 = vmatmul.mubr.f32.gmra.mxu0 %v2470
  %v2910 = vpop.f32.mrf.mxu0
  %v2911 = vadd.f32 %v2830, %v2910
  %v2912 = vpop.f32.mrf.mxu0
  %v2913 = vadd.f32 %v2830, %v2912
  %2914 = vmatprep.mubr.f32.mxu0 %v2475
  %2915 = vmatmul.mubr.f32.gmra.mxu0 %v2474
  %v2916 = vpop.f32.mrf.mxu0
  %v2917 = vadd.f32 %v2835, %v2916
  %v2918 = vpop.f32.mrf.mxu0
  %v2919 = vadd.f32 %v2835, %v2918
  %2920 = vdwg.mxu0
  %2921 = vmatprep.subr.mxu0 %v2808
  %2922 = vmatpush1.msra.mxu0 %v2807
  %2923 = vmatprep.subr.mxu0 %v2801
  %2924 = vmatpush1.msra.mxu0 %v2800
  %2925 = vmatprep.subr.mxu0 %v2794
  %2926 = vmatpush1.msra.mxu0 %v2793
  %2927 = vmatprep.subr.mxu0 %v2787
  %2928 = vmatpush1.msra.mxu0 %v2786
  %2929 = vmatprep.subr.mxu0 %v2780
  %2930 = vmatpush1.msra.mxu0 %v2779
  %2931 = vmatprep.subr.mxu0 %v2773
  %2932 = vmatpush1.msra.mxu0 %v2772
  %2933 = vmatprep.subr.mxu0 %v2766
  %2934 = vmatpush1.msra.mxu0 %v2765
  %2935 = vmatprep.subr.mxu0 %v2759
  %2936 = vmatpush1.msra.mxu0 %v2758
  %2937 = vmatprep.subr.mxu0 %v2752
  %2938 = vmatpush1.msra.mxu0 %v2751
  %2939 = vmatprep.subr.mxu0 %v2745
  %2940 = vmatpush1.msra.mxu0 %v2744
  %2941 = vmatprep.subr.mxu0 %v2738
  %2942 = vmatpush1.msra.mxu0 %v2737
  %2943 = vmatprep.subr.mxu0 %v2731
  %2944 = vmatpush1.msra.mxu0 %v2730
  %2945 = vmatprep.subr.mxu0 %v2724
  %2946 = vmatpush1.msra.mxu0 %v2723
  %2947 = vmatprep.subr.mxu0 %v2717
  %2948 = vmatpush1.msra.mxu0 %v2716
  %2949 = vmatprep.subr.mxu0 %v2710
  %2950 = vmatpush1.msra.mxu0 %v2709
  %2951 = vmatprep.subr.mxu0 %v2703
  %2952 = vmatpush1.msra.mxu0 %v2702
  %2953 = vmatprep.subr.mxu0 0.0
  %2954 = vmatpush2.msra.mxu0 0.0
  %2955 = vmatprep.subr.mxu0 0.0
  %2956 = vmatpush2.msra.mxu0 0.0
  %2957 = vmatprep.subr.mxu0 0.0
  %2958 = vmatpush2.msra.mxu0 0.0
  %2959 = vmatprep.subr.mxu0 0.0
  %2960 = vmatpush2.msra.mxu0 0.0
  %2961 = vmatprep.subr.mxu0 0.0
  %2962 = vmatpush2.msra.mxu0 0.0
  %2963 = vmatprep.subr.mxu0 0.0
  %2964 = vmatpush2.msra.mxu0 0.0
  %2965 = vmatprep.subr.mxu0 0.0
  %2966 = vmatpush2.msra.mxu0 0.0
  %2967 = vmatprep.subr.mxu0 0.0
  %2968 = vmatpush2.msra.mxu0 0.0
  %2969 = vmatprep.subr.mxu0 0.0
  %2970 = vmatpush2.msra.mxu0 0.0
  %2971 = vmatprep.subr.mxu0 0.0
  %2972 = vmatpush2.msra.mxu0 0.0
  %2973 = vmatprep.subr.mxu0 0.0
  %2974 = vmatpush2.msra.mxu0 0.0
  %2975 = vmatprep.subr.mxu0 0.0
  %2976 = vmatpush2.msra.mxu0 0.0
  %2977 = vmatprep.subr.mxu0 0.0
  %2978 = vmatpush2.msra.mxu0 0.0
  %2979 = vmatprep.subr.mxu0 0.0
  %2980 = vmatpush2.msra.mxu0 0.0
  %2981 = vmatprep.subr.mxu0 0.0
  %2982 = vmatpush2.msra.mxu0 0.0
  %2983 = vmatprep.subr.mxu0 %v2815
  %2984 = vmatpush2.msra.mxu0 %v2814
  %2985 = vmatprep.mubr.f32.mxu0 %v2839
  %2986 = vmatmul.mubr.f32.gmra.mxu0 %v2472
  %v2987 = vpop.f32.mrf.mxu0
  %v2988 = vadd.f32 %v2911, %v2987
  %v2989 = vpop.f32.mrf.mxu0
  %v2990 = vadd.f32 %v2913, %v2989
  %2991 = vmatprep.mubr.f32.mxu0 %v2842
  %2992 = vmatmul.mubr.f32.gmra.mxu0 %v2476
  %v2993 = vpop.f32.mrf.mxu0
  %v2994 = vadd.f32 %v2917, %v2993
  %v2995 = vpop.f32.mrf.mxu0
  %v2996 = vadd.f32 %v2919, %v2995
  %2997 = vdwg.mxu0
  %2998 = vmatprep.subr.mxu0 %v2586
  %2999 = vmatpush1.msra.mxu0 %v2585
  %3000 = vmatprep.subr.mxu0 %v2579
  %3001 = vmatpush1.msra.mxu0 %v2578
  %3002 = vmatprep.subr.mxu0 %v2572
  %3003 = vmatpush1.msra.mxu0 %v2571
  %3004 = vmatprep.subr.mxu0 %v2565
  %3005 = vmatpush1.msra.mxu0 %v2564
  %3006 = vmatprep.subr.mxu0 %v2558
  %3007 = vmatpush1.msra.mxu0 %v2557
  %3008 = vmatprep.subr.mxu0 %v2551
  %3009 = vmatpush1.msra.mxu0 %v2550
  %3010 = vmatprep.subr.mxu0 %v2544
  %3011 = vmatpush1.msra.mxu0 %v2543
  %3012 = vmatprep.subr.mxu0 %v2537
  %3013 = vmatpush1.msra.mxu0 %v2536
  %3014 = vmatprep.subr.mxu0 %v2530
  %3015 = vmatpush1.msra.mxu0 %v2529
  %3016 = vmatprep.subr.mxu0 %v2523
  %3017 = vmatpush1.msra.mxu0 %v2522
  %3018 = vmatprep.subr.mxu0 %v2516
  %3019 = vmatpush1.msra.mxu0 %v2515
  %3020 = vmatprep.subr.mxu0 %v2509
  %3021 = vmatpush1.msra.mxu0 %v2508
  %3022 = vmatprep.subr.mxu0 %v2502
  %3023 = vmatpush1.msra.mxu0 %v2501
  %3024 = vmatprep.subr.mxu0 %v2495
  %3025 = vmatpush1.msra.mxu0 %v2494
  %3026 = vmatprep.subr.mxu0 %v2488
  %3027 = vmatpush1.msra.mxu0 %v2487
  %3028 = vmatprep.subr.mxu0 %v2481
  %3029 = vmatpush1.msra.mxu0 %v2480
  %3030 = vmatprep.subr.mxu0 %v2698
  %3031 = vmatpush2.msra.mxu0 %v2697
  %3032 = vmatprep.subr.mxu0 %v2691
  %3033 = vmatpush2.msra.mxu0 %v2690
  %3034 = vmatprep.subr.mxu0 %v2684
  %3035 = vmatpush2.msra.mxu0 %v2683
  %3036 = vmatprep.subr.mxu0 %v2677
  %3037 = vmatpush2.msra.mxu0 %v2676
  %3038 = vmatprep.subr.mxu0 %v2670
  %3039 = vmatpush2.msra.mxu0 %v2669
  %3040 = vmatprep.subr.mxu0 %v2663
  %3041 = vmatpush2.msra.mxu0 %v2662
  %3042 = vmatprep.subr.mxu0 %v2656
  %3043 = vmatpush2.msra.mxu0 %v2655
  %3044 = vmatprep.subr.mxu0 %v2649
  %3045 = vmatpush2.msra.mxu0 %v2648
  %3046 = vmatprep.subr.mxu0 %v2642
  %3047 = vmatpush2.msra.mxu0 %v2641
  %3048 = vmatprep.subr.mxu0 %v2635
  %3049 = vmatpush2.msra.mxu0 %v2634
  %3050 = vmatprep.subr.mxu0 %v2628
  %3051 = vmatpush2.msra.mxu0 %v2627
  %3052 = vmatprep.subr.mxu0 %v2621
  %3053 = vmatpush2.msra.mxu0 %v2620
  %3054 = vmatprep.subr.mxu0 %v2614
  %3055 = vmatpush2.msra.mxu0 %v2613
  %3056 = vmatprep.subr.mxu0 %v2607
  %3057 = vmatpush2.msra.mxu0 %v2606
  %3058 = vmatprep.subr.mxu0 %v2600
  %3059 = vmatpush2.msra.mxu0 %v2599
  %3060 = vmatprep.subr.mxu0 %v2593
  %3061 = vmatpush2.msra.mxu0 %v2592
  %3062 = vmatprep.mubr.f32.mxu0 %v2471
  %3063 = vmatmul.mubr.f32.gmra.mxu0 %v2470
  %v3064 = vpop.f32.mrf.mxu0
  %v3065 = vadd.f32 %v2830, %v3064
  %v3066 = vpop.f32.mrf.mxu0
  %v3067 = vadd.f32 %v2830, %v3066
  %3068 = vmatprep.mubr.f32.mxu0 %v2475
  %3069 = vmatmul.mubr.f32.gmra.mxu0 %v2474
  %v3070 = vpop.f32.mrf.mxu0
  %v3071 = vadd.f32 %v2835, %v3070
  %v3072 = vpop.f32.mrf.mxu0
  %v3073 = vadd.f32 %v2835, %v3072
  %3074 = vdwg.mxu0
  %3075 = vmatprep.subr.mxu0 %v2810
  %3076 = vmatpush1.msra.mxu0 %v2809
  %3077 = vmatprep.subr.mxu0 %v2803
  %3078 = vmatpush1.msra.mxu0 %v2802
  %3079 = vmatprep.subr.mxu0 %v2796
  %3080 = vmatpush1.msra.mxu0 %v2795
  %3081 = vmatprep.subr.mxu0 %v2789
  %3082 = vmatpush1.msra.mxu0 %v2788
  %3083 = vmatprep.subr.mxu0 %v2782
  %3084 = vmatpush1.msra.mxu0 %v2781
  %3085 = vmatprep.subr.mxu0 %v2775
  %3086 = vmatpush1.msra.mxu0 %v2774
  %3087 = vmatprep.subr.mxu0 %v2768
  %3088 = vmatpush1.msra.mxu0 %v2767
  %3089 = vmatprep.subr.mxu0 %v2761
  %3090 = vmatpush1.msra.mxu0 %v2760
  %3091 = vmatprep.subr.mxu0 %v2754
  %3092 = vmatpush1.msra.mxu0 %v2753
  %3093 = vmatprep.subr.mxu0 %v2747
  %3094 = vmatpush1.msra.mxu0 %v2746
  %3095 = vmatprep.subr.mxu0 %v2740
  %3096 = vmatpush1.msra.mxu0 %v2739
  %3097 = vmatprep.subr.mxu0 %v2733
  %3098 = vmatpush1.msra.mxu0 %v2732
  %3099 = vmatprep.subr.mxu0 %v2726
  %3100 = vmatpush1.msra.mxu0 %v2725
  %3101 = vmatprep.subr.mxu0 %v2719
  %3102 = vmatpush1.msra.mxu0 %v2718
  %3103 = vmatprep.subr.mxu0 %v2712
  %3104 = vmatpush1.msra.mxu0 %v2711
  %3105 = vmatprep.subr.mxu0 %v2705
  %3106 = vmatpush1.msra.mxu0 %v2704
  %3107 = vmatprep.subr.mxu0 0.0
  %3108 = vmatpush2.msra.mxu0 0.0
  %3109 = vmatprep.subr.mxu0 0.0
  %3110 = vmatpush2.msra.mxu0 0.0
  %3111 = vmatprep.subr.mxu0 0.0
  %3112 = vmatpush2.msra.mxu0 0.0
  %3113 = vmatprep.subr.mxu0 0.0
  %3114 = vmatpush2.msra.mxu0 0.0
  %3115 = vmatprep.subr.mxu0 0.0
  %3116 = vmatpush2.msra.mxu0 0.0
  %3117 = vmatprep.subr.mxu0 0.0
  %3118 = vmatpush2.msra.mxu0 0.0
  %3119 = vmatprep.subr.mxu0 0.0
  %3120 = vmatpush2.msra.mxu0 0.0
  %3121 = vmatprep.subr.mxu0 0.0
  %3122 = vmatpush2.msra.mxu0 0.0
  %3123 = vmatprep.subr.mxu0 0.0
  %3124 = vmatpush2.msra.mxu0 0.0
  %3125 = vmatprep.subr.mxu0 0.0
  %3126 = vmatpush2.msra.mxu0 0.0
  %3127 = vmatprep.subr.mxu0 0.0
  %3128 = vmatpush2.msra.mxu0 0.0
  %3129 = vmatprep.subr.mxu0 0.0
  %3130 = vmatpush2.msra.mxu0 0.0
  %3131 = vmatprep.subr.mxu0 0.0
  %3132 = vmatpush2.msra.mxu0 0.0
  %3133 = vmatprep.subr.mxu0 0.0
  %3134 = vmatpush2.msra.mxu0 0.0
  %3135 = vmatprep.subr.mxu0 0.0
  %3136 = vmatpush2.msra.mxu0 0.0
  %3137 = vmatprep.subr.mxu0 %v2817
  %3138 = vmatpush2.msra.mxu0 %v2816
  %3139 = vmatprep.mubr.f32.mxu0 %v2839
  %3140 = vmatmul.mubr.f32.gmra.mxu0 %v2472
  %v3141 = vpop.f32.mrf.mxu0
  %v3142 = vadd.f32 %v3065, %v3141
  %v3143 = vpop.f32.mrf.mxu0
  %v3144 = vadd.f32 %v3067, %v3143
  %3145 = vmatprep.mubr.f32.mxu0 %v2842
  %3146 = vmatmul.mubr.f32.gmra.mxu0 %v2476
  %v3147 = vpop.f32.mrf.mxu0
  %v3148 = vadd.f32 %v3071, %v3147
  %v3149 = vpop.f32.mrf.mxu0
  %v3150 = vadd.f32 %v3073, %v3149
  %3151 = vdwg.mxu0
  %3152 = vmatprep.subr.mxu0 %v2588
  %3153 = vmatpush1.msra.mxu0 %v2587
  %3154 = vmatprep.subr.mxu0 %v2581
  %3155 = vmatpush1.msra.mxu0 %v2580
  %3156 = vmatprep.subr.mxu0 %v2574
  %3157 = vmatpush1.msra.mxu0 %v2573
  %3158 = vmatprep.subr.mxu0 %v2567
  %3159 = vmatpush1.msra.mxu0 %v2566
  %3160 = vmatprep.subr.mxu0 %v2560
  %3161 = vmatpush1.msra.mxu0 %v2559
  %3162 = vmatprep.subr.mxu0 %v2553
  %3163 = vmatpush1.msra.mxu0 %v2552
  %3164 = vmatprep.subr.mxu0 %v2546
  %3165 = vmatpush1.msra.mxu0 %v2545
  %3166 = vmatprep.subr.mxu0 %v2539
  %3167 = vmatpush1.msra.mxu0 %v2538
  %3168 = vmatprep.subr.mxu0 %v2532
  %3169 = vmatpush1.msra.mxu0 %v2531
  %3170 = vmatprep.subr.mxu0 %v2525
  %3171 = vmatpush1.msra.mxu0 %v2524
  %3172 = vmatprep.subr.mxu0 %v2518
  %3173 = vmatpush1.msra.mxu0 %v2517
  %3174 = vmatprep.subr.mxu0 %v2511
  %3175 = vmatpush1.msra.mxu0 %v2510
  %3176 = vmatprep.subr.mxu0 %v2504
  %3177 = vmatpush1.msra.mxu0 %v2503
  %3178 = vmatprep.subr.mxu0 %v2497
  %3179 = vmatpush1.msra.mxu0 %v2496
  %3180 = vmatprep.subr.mxu0 %v2490
  %3181 = vmatpush1.msra.mxu0 %v2489
  %3182 = vmatprep.subr.mxu0 %v2483
  %3183 = vmatpush1.msra.mxu0 %v2482
  %3184 = vmatprep.subr.mxu0 %v2700
  %3185 = vmatpush2.msra.mxu0 %v2699
  %3186 = vmatprep.subr.mxu0 %v2693
  %3187 = vmatpush2.msra.mxu0 %v2692
  %3188 = vmatprep.subr.mxu0 %v2686
  %3189 = vmatpush2.msra.mxu0 %v2685
  %3190 = vmatprep.subr.mxu0 %v2679
  %3191 = vmatpush2.msra.mxu0 %v2678
  %3192 = vmatprep.subr.mxu0 %v2672
  %3193 = vmatpush2.msra.mxu0 %v2671
  %3194 = vmatprep.subr.mxu0 %v2665
  %3195 = vmatpush2.msra.mxu0 %v2664
  %3196 = vmatprep.subr.mxu0 %v2658
  %3197 = vmatpush2.msra.mxu0 %v2657
  %3198 = vmatprep.subr.mxu0 %v2651
  %3199 = vmatpush2.msra.mxu0 %v2650
  %3200 = vmatprep.subr.mxu0 %v2644
  %3201 = vmatpush2.msra.mxu0 %v2643
  %3202 = vmatprep.subr.mxu0 %v2637
  %3203 = vmatpush2.msra.mxu0 %v2636
  %3204 = vmatprep.subr.mxu0 %v2630
  %3205 = vmatpush2.msra.mxu0 %v2629
  %3206 = vmatprep.subr.mxu0 %v2623
  %3207 = vmatpush2.msra.mxu0 %v2622
  %3208 = vmatprep.subr.mxu0 %v2616
  %3209 = vmatpush2.msra.mxu0 %v2615
  %3210 = vmatprep.subr.mxu0 %v2609
  %3211 = vmatpush2.msra.mxu0 %v2608
  %3212 = vmatprep.subr.mxu0 %v2602
  %3213 = vmatpush2.msra.mxu0 %v2601
  %3214 = vmatprep.subr.mxu0 %v2595
  %3215 = vmatpush2.msra.mxu0 %v2594
  %3216 = vmatprep.mubr.f32.mxu0 %v2471
  %3217 = vmatmul.mubr.f32.gmra.mxu0 %v2470
  %v3218 = vpop.f32.mrf.mxu0
  %v3219 = vadd.f32 %v2830, %v3218
  %v3220 = vpop.f32.mrf.mxu0
  %v3221 = vadd.f32 %v2830, %v3220
  %3222 = vmatprep.mubr.f32.mxu0 %v2475
  %3223 = vmatmul.mubr.f32.gmra.mxu0 %v2474
  %v3224 = vpop.f32.mrf.mxu0
  %v3225 = vadd.f32 %v2835, %v3224
  %v3226 = vpop.f32.mrf.mxu0
  %v3227 = vadd.f32 %v2835, %v3226
  %3228 = vdwg.mxu0
  %3229 = vmatprep.subr.mxu0 %v2812
  %3230 = vmatpush1.msra.mxu0 %v2811
  %3231 = vmatprep.subr.mxu0 %v2805
  %3232 = vmatpush1.msra.mxu0 %v2804
  %3233 = vmatprep.subr.mxu0 %v2798
  %3234 = vmatpush1.msra.mxu0 %v2797
  %3235 = vmatprep.subr.mxu0 %v2791
  %3236 = vmatpush1.msra.mxu0 %v2790
  %3237 = vmatprep.subr.mxu0 %v2784
  %3238 = vmatpush1.msra.mxu0 %v2783
  %3239 = vmatprep.subr.mxu0 %v2777
  %3240 = vmatpush1.msra.mxu0 %v2776
  %3241 = vmatprep.subr.mxu0 %v2770
  %3242 = vmatpush1.msra.mxu0 %v2769
  %3243 = vmatprep.subr.mxu0 %v2763
  %3244 = vmatpush1.msra.mxu0 %v2762
  %3245 = vmatprep.subr.mxu0 %v2756
  %3246 = vmatpush1.msra.mxu0 %v2755
  %3247 = vmatprep.subr.mxu0 %v2749
  %3248 = vmatpush1.msra.mxu0 %v2748
  %3249 = vmatprep.subr.mxu0 %v2742
  %3250 = vmatpush1.msra.mxu0 %v2741
  %3251 = vmatprep.subr.mxu0 %v2735
  %3252 = vmatpush1.msra.mxu0 %v2734
  %3253 = vmatprep.subr.mxu0 %v2728
  %3254 = vmatpush1.msra.mxu0 %v2727
  %3255 = vmatprep.subr.mxu0 %v2721
  %3256 = vmatpush1.msra.mxu0 %v2720
  %3257 = vmatprep.subr.mxu0 %v2714
  %3258 = vmatpush1.msra.mxu0 %v2713
  %3259 = vmatprep.subr.mxu0 %v2707
  %3260 = vmatpush1.msra.mxu0 %v2706
  %3261 = vmatprep.subr.mxu0 0.0
  %3262 = vmatpush2.msra.mxu0 0.0
  %3263 = vmatprep.subr.mxu0 0.0
  %3264 = vmatpush2.msra.mxu0 0.0
  %3265 = vmatprep.subr.mxu0 0.0
  %3266 = vmatpush2.msra.mxu0 0.0
  %3267 = vmatprep.subr.mxu0 0.0
  %3268 = vmatpush2.msra.mxu0 0.0
  %3269 = vmatprep.subr.mxu0 0.0
  %3270 = vmatpush2.msra.mxu0 0.0
  %3271 = vmatprep.subr.mxu0 0.0
  %3272 = vmatpush2.msra.mxu0 0.0
  %3273 = vmatprep.subr.mxu0 0.0
  %3274 = vmatpush2.msra.mxu0 0.0
  %3275 = vmatprep.subr.mxu0 0.0
  %3276 = vmatpush2.msra.mxu0 0.0
  %3277 = vmatprep.subr.mxu0 0.0
  %3278 = vmatpush2.msra.mxu0 0.0
  %3279 = vmatprep.subr.mxu0 0.0
  %3280 = vmatpush2.msra.mxu0 0.0
  %3281 = vmatprep.subr.mxu0 0.0
  %3282 = vmatpush2.msra.mxu0 0.0
  %3283 = vmatprep.subr.mxu0 0.0
  %3284 = vmatpush2.msra.mxu0 0.0
  %3285 = vmatprep.subr.mxu0 0.0
  %3286 = vmatpush2.msra.mxu0 0.0
  %3287 = vmatprep.subr.mxu0 0.0
  %3288 = vmatpush2.msra.mxu0 0.0
  %3289 = vmatprep.subr.mxu0 0.0
  %3290 = vmatpush2.msra.mxu0 0.0
  %3291 = vmatprep.subr.mxu0 %v2819
  %3292 = vmatpush2.msra.mxu0 %v2818
  %3293 = vmatprep.mubr.f32.mxu0 %v2839
  %3294 = vmatmul.mubr.f32.gmra.mxu0 %v2472
  %v3295 = vpop.f32.mrf.mxu0
  %v3296 = vadd.f32 %v3219, %v3295
  %v3297 = vpop.f32.mrf.mxu0
  %v3298 = vadd.f32 %v3221, %v3297
  %3299 = vmatprep.mubr.f32.mxu0 %v2842
  %3300 = vmatmul.mubr.f32.gmra.mxu0 %v2476
  %v3301 = vpop.f32.mrf.mxu0
  %v3302 = vadd.f32 %v3225, %v3301
  %v3303 = vpop.f32.mrf.mxu0
  %v3304 = vadd.f32 %v3227, %v3303
  %3305 = vdwg.mxu0
  %3306 = vmatprep.subr.mxu0 0.0
  %3307 = vmatpush1.msra.mxu0 %v2589
  %3308 = vmatprep.subr.mxu0 0.0
  %3309 = vmatpush1.msra.mxu0 %v2582
  %3310 = vmatprep.subr.mxu0 0.0
  %3311 = vmatpush1.msra.mxu0 %v2575
  %3312 = vmatprep.subr.mxu0 0.0
  %3313 = vmatpush1.msra.mxu0 %v2568
  %3314 = vmatprep.subr.mxu0 0.0
  %3315 = vmatpush1.msra.mxu0 %v2561
  %3316 = vmatprep.subr.mxu0 0.0
  %3317 = vmatpush1.msra.mxu0 %v2554
  %3318 = vmatprep.subr.mxu0 0.0
  %3319 = vmatpush1.msra.mxu0 %v2547
  %3320 = vmatprep.subr.mxu0 0.0
  %3321 = vmatpush1.msra.mxu0 %v2540
  %3322 = vmatprep.subr.mxu0 0.0
  %3323 = vmatpush1.msra.mxu0 %v2533
  %3324 = vmatprep.subr.mxu0 0.0
  %3325 = vmatpush1.msra.mxu0 %v2526
  %3326 = vmatprep.subr.mxu0 0.0
  %3327 = vmatpush1.msra.mxu0 %v2519
  %3328 = vmatprep.subr.mxu0 0.0
  %3329 = vmatpush1.msra.mxu0 %v2512
  %3330 = vmatprep.subr.mxu0 0.0
  %3331 = vmatpush1.msra.mxu0 %v2505
  %3332 = vmatprep.subr.mxu0 0.0
  %3333 = vmatpush1.msra.mxu0 %v2498
  %3334 = vmatprep.subr.mxu0 0.0
  %3335 = vmatpush1.msra.mxu0 %v2491
  %3336 = vmatprep.subr.mxu0 0.0
  %3337 = vmatpush1.msra.mxu0 %v2484
  %3338 = vmatprep.subr.mxu0 0.0
  %3339 = vmatpush2.msra.mxu0 %v2701
  %3340 = vmatprep.subr.mxu0 0.0
  %3341 = vmatpush2.msra.mxu0 %v2694
  %3342 = vmatprep.subr.mxu0 0.0
  %3343 = vmatpush2.msra.mxu0 %v2687
  %3344 = vmatprep.subr.mxu0 0.0
  %3345 = vmatpush2.msra.mxu0 %v2680
  %3346 = vmatprep.subr.mxu0 0.0
  %3347 = vmatpush2.msra.mxu0 %v2673
  %3348 = vmatprep.subr.mxu0 0.0
  %3349 = vmatpush2.msra.mxu0 %v2666
  %3350 = vmatprep.subr.mxu0 0.0
  %3351 = vmatpush2.msra.mxu0 %v2659
  %3352 = vmatprep.subr.mxu0 0.0
  %3353 = vmatpush2.msra.mxu0 %v2652
  %3354 = vmatprep.subr.mxu0 0.0
  %3355 = vmatpush2.msra.mxu0 %v2645
  %3356 = vmatprep.subr.mxu0 0.0
  %3357 = vmatpush2.msra.mxu0 %v2638
  %3358 = vmatprep.subr.mxu0 0.0
  %3359 = vmatpush2.msra.mxu0 %v2631
  %3360 = vmatprep.subr.mxu0 0.0
  %3361 = vmatpush2.msra.mxu0 %v2624
  %3362 = vmatprep.subr.mxu0 0.0
  %3363 = vmatpush2.msra.mxu0 %v2617
  %3364 = vmatprep.subr.mxu0 0.0
  %3365 = vmatpush2.msra.mxu0 %v2610
  %3366 = vmatprep.subr.mxu0 0.0
  %3367 = vmatpush2.msra.mxu0 %v2603
  %3368 = vmatprep.subr.mxu0 0.0
  %3369 = vmatpush2.msra.mxu0 %v2596
  %3370 = vmatprep.mubr.f32.mxu0 %v2471
  %3371 = vmatmul.mubr.f32.gmra.mxu0 %v2470
  %v3372 = vpop.f32.mrf.mxu0
  %v3373 = vadd.f32 %v2830, %v3372
  %v3374 = vpop.f32.mrf.mxu0
  %3375 = vmatprep.mubr.f32.mxu0 %v2475
  %3376 = vmatmul.mubr.f32.gmra.mxu0 %v2474
  %v3377 = vpop.f32.mrf.mxu0
  %v3378 = vadd.f32 %v2835, %v3377
  %v3379 = vpop.f32.mrf.mxu0
  %3380 = vdwg.mxu0
  %3381 = vmatprep.subr.mxu0 0.0
  %3382 = vmatpush1.msra.mxu0 %v2813
  %3383 = vmatprep.subr.mxu0 0.0
  %3384 = vmatpush1.msra.mxu0 %v2806
  %3385 = vmatprep.subr.mxu0 0.0
  %3386 = vmatpush1.msra.mxu0 %v2799
  %3387 = vmatprep.subr.mxu0 0.0
  %3388 = vmatpush1.msra.mxu0 %v2792
  %3389 = vmatprep.subr.mxu0 0.0
  %3390 = vmatpush1.msra.mxu0 %v2785
  %3391 = vmatprep.subr.mxu0 0.0
  %3392 = vmatpush1.msra.mxu0 %v2778
  %3393 = vmatprep.subr.mxu0 0.0
  %3394 = vmatpush1.msra.mxu0 %v2771
  %3395 = vmatprep.subr.mxu0 0.0
  %3396 = vmatpush1.msra.mxu0 %v2764
  %3397 = vmatprep.subr.mxu0 0.0
  %3398 = vmatpush1.msra.mxu0 %v2757
  %3399 = vmatprep.subr.mxu0 0.0
  %3400 = vmatpush1.msra.mxu0 %v2750
  %3401 = vmatprep.subr.mxu0 0.0
  %3402 = vmatpush1.msra.mxu0 %v2743
  %3403 = vmatprep.subr.mxu0 0.0
  %3404 = vmatpush1.msra.mxu0 %v2736
  %3405 = vmatprep.subr.mxu0 0.0
  %3406 = vmatpush1.msra.mxu0 %v2729
  %3407 = vmatprep.subr.mxu0 0.0
  %3408 = vmatpush1.msra.mxu0 %v2722
  %3409 = vmatprep.subr.mxu0 0.0
  %3410 = vmatpush1.msra.mxu0 %v2715
  %3411 = vmatprep.subr.mxu0 0.0
  %3412 = vmatpush1.msra.mxu0 %v2708
  %3413 = vmatprep.subr.mxu0 0.0
  %3414 = vmatpush2.msra.mxu0 0.0
  %3415 = vmatprep.subr.mxu0 0.0
  %3416 = vmatpush2.msra.mxu0 0.0
  %3417 = vmatprep.subr.mxu0 0.0
  %3418 = vmatpush2.msra.mxu0 0.0
  %3419 = vmatprep.subr.mxu0 0.0
  %3420 = vmatpush2.msra.mxu0 0.0
  %3421 = vmatprep.subr.mxu0 0.0
  %3422 = vmatpush2.msra.mxu0 0.0
  %3423 = vmatprep.subr.mxu0 0.0
  %3424 = vmatpush2.msra.mxu0 0.0
  %3425 = vmatprep.subr.mxu0 0.0
  %3426 = vmatpush2.msra.mxu0 0.0
  %3427 = vmatprep.subr.mxu0 0.0
  %3428 = vmatpush2.msra.mxu0 0.0
  %3429 = vmatprep.subr.mxu0 0.0
  %3430 = vmatpush2.msra.mxu0 0.0
  %3431 = vmatprep.subr.mxu0 0.0
  %3432 = vmatpush2.msra.mxu0 0.0
  %3433 = vmatprep.subr.mxu0 0.0
  %3434 = vmatpush2.msra.mxu0 0.0
  %3435 = vmatprep.subr.mxu0 0.0
  %3436 = vmatpush2.msra.mxu0 0.0
  %3437 = vmatprep.subr.mxu0 0.0
  %3438 = vmatpush2.msra.mxu0 0.0
  %3439 = vmatprep.subr.mxu0 0.0
  %3440 = vmatpush2.msra.mxu0 0.0
  %3441 = vmatprep.subr.mxu0 0.0
  %3442 = vmatpush2.msra.mxu0 0.0
  %3443 = vmatprep.subr.mxu0 0.0
  %3444 = vmatpush2.msra.mxu0 %v2820
  %3445 = vmatprep.mubr.f32.mxu0 %v2839
  %3446 = vmatmul.mubr.f32.gmra.mxu0 %v2472
  %v3447 = vpop.f32.mrf.mxu0
  %v3448 = vadd.f32 %v3373, %v3447
  %v3449 = vpop.f32.mrf.mxu0
  %3450 = vmatprep.mubr.f32.mxu0 %v2842
  %3451 = vmatmul.mubr.f32.gmra.mxu0 %v2476
  %v3452 = vpop.f32.mrf.mxu0
  %v3453 = vadd.f32 %v3378, %v3452
  %v3454 = vpop.f32.mrf.mxu0
  %3455 = vdwg.mxu0
  %v3456 = vmax.f32 %v2988, 0.0
  %v3457 = vmax.f32 %v2990, 0.0
  %v3458 = vmax.f32 %v3142, 0.0
  %v3459 = vmax.f32 %v3144, 0.0
  %v3460 = vmax.f32 %v3296, 0.0
  %v3461 = vmax.f32 %v3298, 0.0
  %v3462 = vmax.f32 %v3448, 0.0
  %v3463 = vmax.f32 %v2994, 0.0
  %v3464 = vmax.f32 %v2996, 0.0
  %v3465 = vmax.f32 %v3148, 0.0
  %v3466 = vmax.f32 %v3150, 0.0
  %v3467 = vmax.f32 %v3302, 0.0
  %v3468 = vmax.f32 %v3304, 0.0
  %v3469 = vmax.f32 %v3453, 0.0
  %v3471 = vlaneseq
  %v3472 = vshrl.u32 %v3471, 7
  %v3473 = vsub.s32 0, %v3472
  %v3474 = vrot.slane %v2826, %v3473
  %v3475 = vlaneseq
  %v3476 = vshrl.u32 %v3475, 7
  %v3477 = vsub.s32 1, %v3476
  %v3478 = vrot.slane %v2826, %v3477
  %v3479 = vlaneseq
  %v3480 = vshrl.u32 %v3479, 7
  %v3481 = vsub.s32 2, %v3480
  %v3482 = vrot.slane %v2826, %v3481
  %v3483 = vlaneseq
  %v3484 = vshrl.u32 %v3483, 7
  %v3485 = vsub.s32 3, %v3484
  %v3486 = vrot.slane %v2826, %v3485
  %v3487 = vlaneseq
  %v3488 = vshrl.u32 %v3487, 7
  %v3489 = vsub.s32 4, %v3488
  %v3490 = vrot.slane %v2826, %v3489
  %v3491 = vlaneseq
  %v3492 = vshrl.u32 %v3491, 7
  %v3493 = vsub.s32 5, %v3492
  %v3494 = vrot.slane %v2826, %v3493
  %v3495 = vlaneseq
  %v3496 = vshrl.u32 %v3495, 7
  %v3497 = vsub.s32 6, %v3496
  %v3498 = vrot.slane %v2826, %v3497
  %v3499 = vlaneseq
  %v3500 = vshrl.u32 %v3499, 7
  %v3501 = vsub.s32 7, %v3500
  %v3502 = vrot.slane %v2826, %v3501
  %3503 = vrot.lane.b32.xlu0 %v3474, 102
  %v3504 = vpop.permute.xlu0 %3503
  %3505 = vrot.lane.b32.xlu0 %v3478, 102
  %v3506 = vpop.permute.xlu0 %3505
  %3507 = vrot.lane.b32.xlu0 %v3482, 102
  %v3508 = vpop.permute.xlu0 %3507
  %3509 = vrot.lane.b32.xlu0 %v3486, 102
  %v3510 = vpop.permute.xlu0 %3509
  %3511 = vrot.lane.b32.xlu0 %v3490, 102
  %v3512 = vpop.permute.xlu0 %3511
  %3513 = vrot.lane.b32.xlu0 %v3494, 102
  %v3514 = vpop.permute.xlu0 %3513
  %3515 = vrot.lane.b32.xlu0 %v3498, 102
  %v3516 = vpop.permute.xlu0 %3515
  %3517 = vrot.lane.b32.xlu0 %v3502, 102
  %v3518 = vpop.permute.xlu0 %3517
  %vm3519 = vcmask 834560
  %v3520 = vsel %vm3519, %v3504, %v3506
  %v3521 = vsel %vm3519, %v3506, %v3508
  %v3522 = vsel %vm3519, %v3508, %v3510
  %v3523 = vsel %vm3519, %v3510, %v3512
  %v3524 = vsel %vm3519, %v3512, %v3514
  %v3525 = vsel %vm3519, %v3514, %v3516
  %v3526 = vsel %vm3519, %v3516, %v3518
  %v3534 = vmul.f32 %v3456, %v3520
  %v3535 = vmul.f32 %v3457, %v3521
  %v3536 = vmul.f32 %v3458, %v3522
  %v3537 = vmul.f32 %v3459, %v3523
  %v3538 = vmul.f32 %v3460, %v3524
  %v3539 = vmul.f32 %v3461, %v3525
  %v3540 = vmul.f32 %v3462, %v3526
  %v3541 = vmul.f32 %v3463, %v3520
  %v3542 = vmul.f32 %v3464, %v3521
  %v3543 = vmul.f32 %v3465, %v3522
  %v3544 = vmul.f32 %v3466, %v3523
  %v3545 = vmul.f32 %v3467, %v3524
  %v3546 = vmul.f32 %v3468, %v3525
  %v3547 = vmul.f32 %v3469, %v3526
  %3548 = vst.msk [vmem:[#allocation3] sm:$0xff] %vm1595, 0.0
  %3549 = vst.msk [vmem:[#allocation3 + $0x48] sm:$0xff] %vm1595, 0.0
  %vm3550 = vcmask 1048064
  %3551 = vst.msk [vmem:[#allocation3 + $0x38] sm:$0xff] %vm3550, 0.0
  %3552 = vst.msk [vmem:[#allocation3 + $0x40] sm:$0xff] %vm1595, 0.0
  %3553 = vst.msk [vmem:[#allocation3 + $0x80] sm:$0xff] %vm3550, 0.0
  %3554 = vst.msk [vmem:[#allocation3 + $0x88] sm:$0xff] %vm1595, 0.0
  %3569 = vrot.lane.b32.xlu0 %v3534, 64
  %v3570 = vpop.permute.xlu0 %3569
  %3571 = vrot.lane.b32.xlu0 %v3535, 64
  %v3572 = vpop.permute.xlu0 %3571
  %3573 = vrot.lane.b32.xlu0 %v3536, 64
  %v3574 = vpop.permute.xlu0 %3573
  %3575 = vrot.lane.b32.xlu0 %v3537, 64
  %v3576 = vpop.permute.xlu0 %3575
  %3577 = vrot.lane.b32.xlu0 %v3538, 64
  %v3578 = vpop.permute.xlu0 %3577
  %3579 = vrot.lane.b32.xlu0 %v3539, 64
  %v3580 = vpop.permute.xlu0 %3579
  %3581 = vrot.lane.b32.xlu0 %v3540, 64
  %v3582 = vpop.permute.xlu0 %3581
  %3583 = vrot.lane.b32.xlu0 %v3541, 64
  %v3584 = vpop.permute.xlu0 %3583
  %3585 = vrot.lane.b32.xlu0 %v3542, 64
  %v3586 = vpop.permute.xlu0 %3585
  %3587 = vrot.lane.b32.xlu0 %v3543, 64
  %v3588 = vpop.permute.xlu0 %3587
  %3589 = vrot.lane.b32.xlu0 %v3544, 64
  %v3590 = vpop.permute.xlu0 %3589
  %3591 = vrot.lane.b32.xlu0 %v3545, 64
  %v3592 = vpop.permute.xlu0 %3591
  %3593 = vrot.lane.b32.xlu0 %v3546, 64
  %v3594 = vpop.permute.xlu0 %3593
  %3595 = vrot.lane.b32.xlu0 %v3547, 64
  %v3596 = vpop.permute.xlu0 %3595
  %v3597 = vsel %vm1595, %v3570, %v3572
  %v3598 = vsel %vm1595, %v3572, %v3574
  %v3599 = vsel %vm1595, %v3574, %v3576
  %v3600 = vsel %vm1595, %v3576, %v3578
  %v3601 = vsel %vm1595, %v3578, %v3580
  %v3602 = vsel %vm1595, %v3580, %v3582
  %v3603 = vsel %vm1595, %v3584, %v3586
  %v3604 = vsel %vm1595, %v3586, %v3588
  %v3605 = vsel %vm1595, %v3588, %v3590
  %v3606 = vsel %vm1595, %v3590, %v3592
  %v3607 = vsel %vm1595, %v3592, %v3594
  %v3608 = vsel %vm1595, %v3594, %v3596
  %3625 = vst.msk [vmem:[#allocation3] sm:$0xff] %vm3550, %v3570
  %3626 = vst [vmem:[#allocation3 + $0x8] sm:$0xff] %v3597
  %3627 = vst [vmem:[#allocation3 + $0x10] sm:$0xff] %v3598
  %3628 = vst [vmem:[#allocation3 + $0x18] sm:$0xff] %v3599
  %3629 = vst [vmem:[#allocation3 + $0x20] sm:$0xff] %v3600
  %3630 = vst [vmem:[#allocation3 + $0x28] sm:$0xff] %v3601
  %3631 = vst [vmem:[#allocation3 + $0x30] sm:$0xff] %v3602
  %3632 = vst.msk [vmem:[#allocation3 + $0x38] sm:$0xff] %vm1595, %v3582
  %3633 = vst.msk [vmem:[#allocation3 + $0x48] sm:$0xff] %vm3550, %v3584
  %3634 = vst [vmem:[#allocation3 + $0x50] sm:$0xff] %v3603
  %3635 = vst [vmem:[#allocation3 + $0x58] sm:$0xff] %v3604
  %3636 = vst [vmem:[#allocation3 + $0x60] sm:$0xff] %v3605
  %3637 = vst [vmem:[#allocation3 + $0x68] sm:$0xff] %v3606
  %3638 = vst [vmem:[#allocation3 + $0x70] sm:$0xff] %v3607
  %3639 = vst [vmem:[#allocation3 + $0x78] sm:$0xff] %v3608
  %3640 = vst.msk [vmem:[#allocation3 + $0x80] sm:$0xff] %vm1595, %v3596
  %v3641 = vld [vmem:[#allocation3] sm:$0xff]
  %v3642 = vld [vmem:[#allocation3 + $0x8] sm:$0xff]
  %v3643 = vld [vmem:[#allocation3 + $0x10] sm:$0xff]
  %v3644 = vld [vmem:[#allocation3 + $0x18] sm:$0xff]
  %v3645 = vld [vmem:[#allocation3 + $0x20] sm:$0xff]
  %v3646 = vld [vmem:[#allocation3 + $0x28] sm:$0xff]
  %v3647 = vld [vmem:[#allocation3 + $0x30] sm:$0xff]
  %v3648 = vld [vmem:[#allocation3 + $0x38] sm:$0xff]
  %v3649 = vld [vmem:[#allocation3 + $0x48] sm:$0xff]
  %v3650 = vld [vmem:[#allocation3 + $0x50] sm:$0xff]
  %v3651 = vld [vmem:[#allocation3 + $0x58] sm:$0xff]
  %v3652 = vld [vmem:[#allocation3 + $0x60] sm:$0xff]
  %v3653 = vld [vmem:[#allocation3 + $0x68] sm:$0xff]
  %v3654 = vld [vmem:[#allocation3 + $0x70] sm:$0xff]
  %v3655 = vld [vmem:[#allocation3 + $0x78] sm:$0xff]
  %v3656 = vld [vmem:[#allocation3 + $0x80] sm:$0xff]
  %3657 = vst [vmem:[#allocation4] sm:$0xff] %v3641
  %3658 = vst [vmem:[#allocation4 + $0x8] sm:$0xff] %v3642
  %3659 = vst [vmem:[#allocation4 + $0x10] sm:$0xff] %v3643
  %3660 = vst [vmem:[#allocation4 + $0x18] sm:$0xff] %v3644
  %3661 = vst [vmem:[#allocation4 + $0x20] sm:$0xff] %v3645
  %3662 = vst [vmem:[#allocation4 + $0x28] sm:$0xff] %v3646
  %3663 = vst [vmem:[#allocation4 + $0x30] sm:$0xff] %v3647
  %3664 = vst [vmem:[#allocation4 + $0x38] sm:$0xff] %v3648
  %3665 = vst [vmem:[#allocation4 + $0x40] sm:$0xff] %v3649
  %3666 = vst [vmem:[#allocation4 + $0x48] sm:$0xff] %v3650
  %3667 = vst [vmem:[#allocation4 + $0x50] sm:$0xff] %v3651
  %3668 = vst [vmem:[#allocation4 + $0x58] sm:$0xff] %v3652
  %3669 = vst [vmem:[#allocation4 + $0x60] sm:$0xff] %v3653
  %3670 = vst [vmem:[#allocation4 + $0x68] sm:$0xff] %v3654
  %3671 = vst [vmem:[#allocation4 + $0x70] sm:$0xff] %v3655
  %3672 = vst [vmem:[#allocation4 + $0x78] sm:$0xff] %v3656
  %v3673 = vld [vmem:[#allocation3] sm:$0xff]
  %v3674 = vld [vmem:[#allocation3 + $0x8] sm:$0xff]
  %v3675 = vld [vmem:[#allocation3 + $0x10] sm:$0xff]
  %v3676 = vld [vmem:[#allocation3 + $0x18] sm:$0xff]
  %v3677 = vld [vmem:[#allocation3 + $0x20] sm:$0xff]
  %v3678 = vld [vmem:[#allocation3 + $0x28] sm:$0xff]
  %v3679 = vld [vmem:[#allocation3 + $0x30] sm:$0xff]
  %v3680 = vld [vmem:[#allocation3 + $0x38] sm:$0xff]
  %v3681 = vld [vmem:[#allocation3 + $0x40] sm:$0xff]
  %v3682 = vld [vmem:[#allocation3 + $0x48] sm:$0xff]
  %v3683 = vld [vmem:[#allocation3 + $0x50] sm:$0xff]
  %v3684 = vld [vmem:[#allocation3 + $0x58] sm:$0xff]
  %v3685 = vld [vmem:[#allocation3 + $0x60] sm:$0xff]
  %v3686 = vld [vmem:[#allocation3 + $0x68] sm:$0xff]
  %v3687 = vld [vmem:[#allocation3 + $0x70] sm:$0xff]
  %v3688 = vld [vmem:[#allocation3 + $0x78] sm:$0xff]
  %v3689 = vld [vmem:[#allocation3 + $0x80] sm:$0xff]
  %v3690 = vld [vmem:[#allocation3 + $0x88] sm:$0xff]
  %3709 = vrot.lane.b32.xlu0 %v3673, 127
  %v3710 = vpop.permute.xlu0 %3709
  %3711 = vrot.lane.b32.xlu0 %v3674, 127
  %v3712 = vpop.permute.xlu0 %3711
  %3713 = vrot.lane.b32.xlu0 %v3675, 127
  %v3714 = vpop.permute.xlu0 %3713
  %3715 = vrot.lane.b32.xlu0 %v3676, 127
  %v3716 = vpop.permute.xlu0 %3715
  %3717 = vrot.lane.b32.xlu0 %v3677, 127
  %v3718 = vpop.permute.xlu0 %3717
  %3719 = vrot.lane.b32.xlu0 %v3678, 127
  %v3720 = vpop.permute.xlu0 %3719
  %3721 = vrot.lane.b32.xlu0 %v3679, 127
  %v3722 = vpop.permute.xlu0 %3721
  %3723 = vrot.lane.b32.xlu0 %v3680, 127
  %v3724 = vpop.permute.xlu0 %3723
  %3725 = vrot.lane.b32.xlu0 %v3681, 127
  %v3726 = vpop.permute.xlu0 %3725
  %3727 = vrot.lane.b32.xlu0 %v3682, 127
  %v3728 = vpop.permute.xlu0 %3727
  %3729 = vrot.lane.b32.xlu0 %v3683, 127
  %v3730 = vpop.permute.xlu0 %3729
  %3731 = vrot.lane.b32.xlu0 %v3684, 127
  %v3732 = vpop.permute.xlu0 %3731
  %3733 = vrot.lane.b32.xlu0 %v3685, 127
  %v3734 = vpop.permute.xlu0 %3733
  %3735 = vrot.lane.b32.xlu0 %v3686, 127
  %v3736 = vpop.permute.xlu0 %3735
  %3737 = vrot.lane.b32.xlu0 %v3687, 127
  %v3738 = vpop.permute.xlu0 %3737
  %3739 = vrot.lane.b32.xlu0 %v3688, 127
  %v3740 = vpop.permute.xlu0 %3739
  %3741 = vrot.lane.b32.xlu0 %v3689, 127
  %v3742 = vpop.permute.xlu0 %3741
  %3743 = vrot.lane.b32.xlu0 %v3690, 127
  %v3744 = vpop.permute.xlu0 %3743
  %v3745 = vsel %vm72, %v3710, %v3712
  %v3746 = vsel %vm72, %v3712, %v3714
  %v3747 = vsel %vm72, %v3714, %v3716
  %v3748 = vsel %vm72, %v3716, %v3718
  %v3749 = vsel %vm72, %v3718, %v3720
  %v3750 = vsel %vm72, %v3720, %v3722
  %v3751 = vsel %vm72, %v3722, %v3724
  %v3752 = vsel %vm72, %v3724, %v3726
  %v3753 = vsel %vm72, %v3728, %v3730
  %v3754 = vsel %vm72, %v3730, %v3732
  %v3755 = vsel %vm72, %v3732, %v3734
  %v3756 = vsel %vm72, %v3734, %v3736
  %v3757 = vsel %vm72, %v3736, %v3738
  %v3758 = vsel %vm72, %v3738, %v3740
  %v3759 = vsel %vm72, %v3740, %v3742
  %v3760 = vsel %vm72, %v3742, %v3744
  %3777 = vst [vmem:[#allocation4 + $0x80] sm:$0xff] %v3745
  %3778 = vst [vmem:[#allocation4 + $0x88] sm:$0xff] %v3746
  %3779 = vst [vmem:[#allocation4 + $0x90] sm:$0xff] %v3747
  %3780 = vst [vmem:[#allocation4 + $0x98] sm:$0xff] %v3748
  %3781 = vst [vmem:[#allocation4 + $0xa0] sm:$0xff] %v3749
  %3782 = vst [vmem:[#allocation4 + $0xa8] sm:$0xff] %v3750
  %3783 = vst [vmem:[#allocation4 + $0xb0] sm:$0xff] %v3751
  %3784 = vst [vmem:[#allocation4 + $0xb8] sm:$0xff] %v3752
  %3785 = vst [vmem:[#allocation4 + $0xc0] sm:$0xff] %v3753
  %3786 = vst [vmem:[#allocation4 + $0xc8] sm:$0xff] %v3754
  %3787 = vst [vmem:[#allocation4 + $0xd0] sm:$0xff] %v3755
  %3788 = vst [vmem:[#allocation4 + $0xd8] sm:$0xff] %v3756
  %3789 = vst [vmem:[#allocation4 + $0xe0] sm:$0xff] %v3757
  %3790 = vst [vmem:[#allocation4 + $0xe8] sm:$0xff] %v3758
  %3791 = vst [vmem:[#allocation4 + $0xf0] sm:$0xff] %v3759
  %3792 = vst [vmem:[#allocation4 + $0xf8] sm:$0xff] %v3760
  %v3793 = vld [vmem:[#allocation3] sm:$0xff]
  %v3794 = vld [vmem:[#allocation3 + $0x8] sm:$0xff]
  %v3795 = vld [vmem:[#allocation3 + $0x10] sm:$0xff]
  %v3796 = vld [vmem:[#allocation3 + $0x18] sm:$0xff]
  %v3797 = vld [vmem:[#allocation3 + $0x20] sm:$0xff]
  %v3798 = vld [vmem:[#allocation3 + $0x28] sm:$0xff]
  %v3799 = vld [vmem:[#allocation3 + $0x30] sm:$0xff]
  %v3800 = vld [vmem:[#allocation3 + $0x38] sm:$0xff]
  %v3801 = vld [vmem:[#allocation3 + $0x40] sm:$0xff]
  %v3802 = vld [vmem:[#allocation3 + $0x48] sm:$0xff]
  %v3803 = vld [vmem:[#allocation3 + $0x50] sm:$0xff]
  %v3804 = vld [vmem:[#allocation3 + $0x58] sm:$0xff]
  %v3805 = vld [vmem:[#allocation3 + $0x60] sm:$0xff]
  %v3806 = vld [vmem:[#allocation3 + $0x68] sm:$0xff]
  %v3807 = vld [vmem:[#allocation3 + $0x70] sm:$0xff]
  %v3808 = vld [vmem:[#allocation3 + $0x78] sm:$0xff]
  %v3809 = vld [vmem:[#allocation3 + $0x80] sm:$0xff]
  %v3810 = vld [vmem:[#allocation3 + $0x88] sm:$0xff]
  %3829 = vrot.lane.b32.xlu0 %v3793, 126
  %v3830 = vpop.permute.xlu0 %3829
  %3831 = vrot.lane.b32.xlu0 %v3794, 126
  %v3832 = vpop.permute.xlu0 %3831
  %3833 = vrot.lane.b32.xlu0 %v3795, 126
  %v3834 = vpop.permute.xlu0 %3833
  %3835 = vrot.lane.b32.xlu0 %v3796, 126
  %v3836 = vpop.permute.xlu0 %3835
  %3837 = vrot.lane.b32.xlu0 %v3797, 126
  %v3838 = vpop.permute.xlu0 %3837
  %3839 = vrot.lane.b32.xlu0 %v3798, 126
  %v3840 = vpop.permute.xlu0 %3839
  %3841 = vrot.lane.b32.xlu0 %v3799, 126
  %v3842 = vpop.permute.xlu0 %3841
  %3843 = vrot.lane.b32.xlu0 %v3800, 126
  %v3844 = vpop.permute.xlu0 %3843
  %3845 = vrot.lane.b32.xlu0 %v3801, 126
  %v3846 = vpop.permute.xlu0 %3845
  %3847 = vrot.lane.b32.xlu0 %v3802, 126
  %v3848 = vpop.permute.xlu0 %3847
  %3849 = vrot.lane.b32.xlu0 %v3803, 126
  %v3850 = vpop.permute.xlu0 %3849
  %3851 = vrot.lane.b32.xlu0 %v3804, 126
  %v3852 = vpop.permute.xlu0 %3851
  %3853 = vrot.lane.b32.xlu0 %v3805, 126
  %v3854 = vpop.permute.xlu0 %3853
  %3855 = vrot.lane.b32.xlu0 %v3806, 126
  %v3856 = vpop.permute.xlu0 %3855
  %3857 = vrot.lane.b32.xlu0 %v3807, 126
  %v3858 = vpop.permute.xlu0 %3857
  %3859 = vrot.lane.b32.xlu0 %v3808, 126
  %v3860 = vpop.permute.xlu0 %3859
  %3861 = vrot.lane.b32.xlu0 %v3809, 126
  %v3862 = vpop.permute.xlu0 %3861
  %3863 = vrot.lane.b32.xlu0 %v3810, 126
  %v3864 = vpop.permute.xlu0 %3863
  %v3865 = vsel %vm179, %v3830, %v3832
  %v3866 = vsel %vm179, %v3832, %v3834
  %v3867 = vsel %vm179, %v3834, %v3836
  %v3868 = vsel %vm179, %v3836, %v3838
  %v3869 = vsel %vm179, %v3838, %v3840
  %v3870 = vsel %vm179, %v3840, %v3842
  %v3871 = vsel %vm179, %v3842, %v3844
  %v3872 = vsel %vm179, %v3844, %v3846
  %v3873 = vsel %vm179, %v3848, %v3850
  %v3874 = vsel %vm179, %v3850, %v3852
  %v3875 = vsel %vm179, %v3852, %v3854
  %v3876 = vsel %vm179, %v3854, %v3856
  %v3877 = vsel %vm179, %v3856, %v3858
  %v3878 = vsel %vm179, %v3858, %v3860
  %v3879 = vsel %vm179, %v3860, %v3862
  %v3880 = vsel %vm179, %v3862, %v3864
  %3897 = vst [vmem:[#allocation4 + $0x100] sm:$0xff] %v3865
  %3898 = vst [vmem:[#allocation4 + $0x108] sm:$0xff] %v3866
  %3899 = vst [vmem:[#allocation4 + $0x110] sm:$0xff] %v3867
  %3900 = vst [vmem:[#allocation4 + $0x118] sm:$0xff] %v3868
  %3901 = vst [vmem:[#allocation4 + $0x120] sm:$0xff] %v3869
  %3902 = vst [vmem:[#allocation4 + $0x128] sm:$0xff] %v3870
  %3903 = vst [vmem:[#allocation4 + $0x130] sm:$0xff] %v3871
  %3904 = vst [vmem:[#allocation4 + $0x138] sm:$0xff] %v3872
  %3905 = vst [vmem:[#allocation4 + $0x140] sm:$0xff] %v3873
  %3906 = vst [vmem:[#allocation4 + $0x148] sm:$0xff] %v3874
  %3907 = vst [vmem:[#allocation4 + $0x150] sm:$0xff] %v3875
  %3908 = vst [vmem:[#allocation4 + $0x158] sm:$0xff] %v3876
  %3909 = vst [vmem:[#allocation4 + $0x160] sm:$0xff] %v3877
  %3910 = vst [vmem:[#allocation4 + $0x168] sm:$0xff] %v3878
  %3911 = vst [vmem:[#allocation4 + $0x170] sm:$0xff] %v3879
  %3912 = vst [vmem:[#allocation4 + $0x178] sm:$0xff] %v3880
  %v3913 = vld [vmem:[#allocation3] sm:$0xff]
  %v3914 = vld [vmem:[#allocation3 + $0x8] sm:$0xff]
  %v3915 = vld [vmem:[#allocation3 + $0x10] sm:$0xff]
  %v3916 = vld [vmem:[#allocation3 + $0x18] sm:$0xff]
  %v3917 = vld [vmem:[#allocation3 + $0x20] sm:$0xff]
  %v3918 = vld [vmem:[#allocation3 + $0x28] sm:$0xff]
  %v3919 = vld [vmem:[#allocation3 + $0x30] sm:$0xff]
  %v3920 = vld [vmem:[#allocation3 + $0x38] sm:$0xff]
  %v3921 = vld [vmem:[#allocation3 + $0x40] sm:$0xff]
  %v3922 = vld [vmem:[#allocation3 + $0x48] sm:$0xff]
  %v3923 = vld [vmem:[#allocation3 + $0x50] sm:$0xff]
  %v3924 = vld [vmem:[#allocation3 + $0x58] sm:$0xff]
  %v3925 = vld [vmem:[#allocation3 + $0x60] sm:$0xff]
  %v3926 = vld [vmem:[#allocation3 + $0x68] sm:$0xff]
  %v3927 = vld [vmem:[#allocation3 + $0x70] sm:$0xff]
  %v3928 = vld [vmem:[#allocation3 + $0x78] sm:$0xff]
  %v3929 = vld [vmem:[#allocation3 + $0x80] sm:$0xff]
  %v3930 = vld [vmem:[#allocation3 + $0x88] sm:$0xff]
  %3949 = vrot.lane.b32.xlu0 %v3913, 97
  %v3950 = vpop.permute.xlu0 %3949
  %3951 = vrot.lane.b32.xlu0 %v3914, 97
  %v3952 = vpop.permute.xlu0 %3951
  %3953 = vrot.lane.b32.xlu0 %v3915, 97
  %v3954 = vpop.permute.xlu0 %3953
  %3955 = vrot.lane.b32.xlu0 %v3916, 97
  %v3956 = vpop.permute.xlu0 %3955
  %3957 = vrot.lane.b32.xlu0 %v3917, 97
  %v3958 = vpop.permute.xlu0 %3957
  %3959 = vrot.lane.b32.xlu0 %v3918, 97
  %v3960 = vpop.permute.xlu0 %3959
  %3961 = vrot.lane.b32.xlu0 %v3919, 97
  %v3962 = vpop.permute.xlu0 %3961
  %3963 = vrot.lane.b32.xlu0 %v3920, 97
  %v3964 = vpop.permute.xlu0 %3963
  %3965 = vrot.lane.b32.xlu0 %v3921, 97
  %v3966 = vpop.permute.xlu0 %3965
  %3967 = vrot.lane.b32.xlu0 %v3922, 97
  %v3968 = vpop.permute.xlu0 %3967
  %3969 = vrot.lane.b32.xlu0 %v3923, 97
  %v3970 = vpop.permute.xlu0 %3969
  %3971 = vrot.lane.b32.xlu0 %v3924, 97
  %v3972 = vpop.permute.xlu0 %3971
  %3973 = vrot.lane.b32.xlu0 %v3925, 97
  %v3974 = vpop.permute.xlu0 %3973
  %3975 = vrot.lane.b32.xlu0 %v3926, 97
  %v3976 = vpop.permute.xlu0 %3975
  %3977 = vrot.lane.b32.xlu0 %v3927, 97
  %v3978 = vpop.permute.xlu0 %3977
  %3979 = vrot.lane.b32.xlu0 %v3928, 97
  %v3980 = vpop.permute.xlu0 %3979
  %3981 = vrot.lane.b32.xlu0 %v3929, 97
  %v3982 = vpop.permute.xlu0 %3981
  %3983 = vrot.lane.b32.xlu0 %v3930, 97
  %v3984 = vpop.permute.xlu0 %3983
  %v3985 = vsel %vm635, %v3950, %v3952
  %v3986 = vsel %vm635, %v3952, %v3954
  %v3987 = vsel %vm635, %v3954, %v3956
  %v3988 = vsel %vm635, %v3956, %v3958
  %v3989 = vsel %vm635, %v3958, %v3960
  %v3990 = vsel %vm635, %v3960, %v3962
  %v3991 = vsel %vm635, %v3962, %v3964
  %v3992 = vsel %vm635, %v3964, %v3966
  %v3993 = vsel %vm635, %v3968, %v3970
  %v3994 = vsel %vm635, %v3970, %v3972
  %v3995 = vsel %vm635, %v3972, %v3974
  %v3996 = vsel %vm635, %v3974, %v3976
  %v3997 = vsel %vm635, %v3976, %v3978
  %v3998 = vsel %vm635, %v3978, %v3980
  %v3999 = vsel %vm635, %v3980, %v3982
  %v4000 = vsel %vm635, %v3982, %v3984
  %4017 = vst [vmem:[#allocation4 + $0x180] sm:$0xff] %v3985
  %4018 = vst [vmem:[#allocation4 + $0x188] sm:$0xff] %v3986
  %4019 = vst [vmem:[#allocation4 + $0x190] sm:$0xff] %v3987
  %4020 = vst [vmem:[#allocation4 + $0x198] sm:$0xff] %v3988
  %4021 = vst [vmem:[#allocation4 + $0x1a0] sm:$0xff] %v3989
  %4022 = vst [vmem:[#allocation4 + $0x1a8] sm:$0xff] %v3990
  %4023 = vst [vmem:[#allocation4 + $0x1b0] sm:$0xff] %v3991
  %4024 = vst [vmem:[#allocation4 + $0x1b8] sm:$0xff] %v3992
  %4025 = vst [vmem:[#allocation4 + $0x1c0] sm:$0xff] %v3993
  %4026 = vst [vmem:[#allocation4 + $0x1c8] sm:$0xff] %v3994
  %4027 = vst [vmem:[#allocation4 + $0x1d0] sm:$0xff] %v3995
  %4028 = vst [vmem:[#allocation4 + $0x1d8] sm:$0xff] %v3996
  %4029 = vst [vmem:[#allocation4 + $0x1e0] sm:$0xff] %v3997
  %4030 = vst [vmem:[#allocation4 + $0x1e8] sm:$0xff] %v3998
  %4031 = vst [vmem:[#allocation4 + $0x1f0] sm:$0xff] %v3999
  %4032 = vst [vmem:[#allocation4 + $0x1f8] sm:$0xff] %v4000
  %v4033 = vld [vmem:[#allocation3] sm:$0xff]
  %v4034 = vld [vmem:[#allocation3 + $0x8] sm:$0xff]
  %v4035 = vld [vmem:[#allocation3 + $0x10] sm:$0xff]
  %v4036 = vld [vmem:[#allocation3 + $0x18] sm:$0xff]
  %v4037 = vld [vmem:[#allocation3 + $0x20] sm:$0xff]
  %v4038 = vld [vmem:[#allocation3 + $0x28] sm:$0xff]
  %v4039 = vld [vmem:[#allocation3 + $0x30] sm:$0xff]
  %v4040 = vld [vmem:[#allocation3 + $0x38] sm:$0xff]
  %v4041 = vld [vmem:[#allocation3 + $0x40] sm:$0xff]
  %v4042 = vld [vmem:[#allocation3 + $0x48] sm:$0xff]
  %v4043 = vld [vmem:[#allocation3 + $0x50] sm:$0xff]
  %v4044 = vld [vmem:[#allocation3 + $0x58] sm:$0xff]
  %v4045 = vld [vmem:[#allocation3 + $0x60] sm:$0xff]
  %v4046 = vld [vmem:[#allocation3 + $0x68] sm:$0xff]
  %v4047 = vld [vmem:[#allocation3 + $0x70] sm:$0xff]
  %v4048 = vld [vmem:[#allocation3 + $0x78] sm:$0xff]
  %v4049 = vld [vmem:[#allocation3 + $0x80] sm:$0xff]
  %v4050 = vld [vmem:[#allocation3 + $0x88] sm:$0xff]
  %4069 = vrot.lane.b32.xlu0 %v4033, 96
  %v4070 = vpop.permute.xlu0 %4069
  %4071 = vrot.lane.b32.xlu0 %v4034, 96
  %v4072 = vpop.permute.xlu0 %4071
  %4073 = vrot.lane.b32.xlu0 %v4035, 96
  %v4074 = vpop.permute.xlu0 %4073
  %4075 = vrot.lane.b32.xlu0 %v4036, 96
  %v4076 = vpop.permute.xlu0 %4075
  %4077 = vrot.lane.b32.xlu0 %v4037, 96
  %v4078 = vpop.permute.xlu0 %4077
  %4079 = vrot.lane.b32.xlu0 %v4038, 96
  %v4080 = vpop.permute.xlu0 %4079
  %4081 = vrot.lane.b32.xlu0 %v4039, 96
  %v4082 = vpop.permute.xlu0 %4081
  %4083 = vrot.lane.b32.xlu0 %v4040, 96
  %v4084 = vpop.permute.xlu0 %4083
  %4085 = vrot.lane.b32.xlu0 %v4041, 96
  %v4086 = vpop.permute.xlu0 %4085
  %4087 = vrot.lane.b32.xlu0 %v4042, 96
  %v4088 = vpop.permute.xlu0 %4087
  %4089 = vrot.lane.b32.xlu0 %v4043, 96
  %v4090 = vpop.permute.xlu0 %4089
  %4091 = vrot.lane.b32.xlu0 %v4044, 96
  %v4092 = vpop.permute.xlu0 %4091
  %4093 = vrot.lane.b32.xlu0 %v4045, 96
  %v4094 = vpop.permute.xlu0 %4093
  %4095 = vrot.lane.b32.xlu0 %v4046, 96
  %v4096 = vpop.permute.xlu0 %4095
  %4097 = vrot.lane.b32.xlu0 %v4047, 96
  %v4098 = vpop.permute.xlu0 %4097
  %4099 = vrot.lane.b32.xlu0 %v4048, 96
  %v4100 = vpop.permute.xlu0 %4099
  %4101 = vrot.lane.b32.xlu0 %v4049, 96
  %v4102 = vpop.permute.xlu0 %4101
  %4103 = vrot.lane.b32.xlu0 %v4050, 96
  %v4104 = vpop.permute.xlu0 %4103
  %v4105 = vsel %vm742, %v4070, %v4072
  %v4106 = vsel %vm742, %v4072, %v4074
  %v4107 = vsel %vm742, %v4074, %v4076
  %v4108 = vsel %vm742, %v4076, %v4078
  %v4109 = vsel %vm742, %v4078, %v4080
  %v4110 = vsel %vm742, %v4080, %v4082
  %v4111 = vsel %vm742, %v4082, %v4084
  %v4112 = vsel %vm742, %v4084, %v4086
  %v4113 = vsel %vm742, %v4088, %v4090
  %v4114 = vsel %vm742, %v4090, %v4092
  %v4115 = vsel %vm742, %v4092, %v4094
  %v4116 = vsel %vm742, %v4094, %v4096
  %v4117 = vsel %vm742, %v4096, %v4098
  %v4118 = vsel %vm742, %v4098, %v4100
  %v4119 = vsel %vm742, %v4100, %v4102
  %v4120 = vsel %vm742, %v4102, %v4104
  %4137 = vst [vmem:[#allocation4 + $0x200] sm:$0xff] %v4105
  %4138 = vst [vmem:[#allocation4 + $0x208] sm:$0xff] %v4106
  %4139 = vst [vmem:[#allocation4 + $0x210] sm:$0xff] %v4107
  %4140 = vst [vmem:[#allocation4 + $0x218] sm:$0xff] %v4108
  %4141 = vst [vmem:[#allocation4 + $0x220] sm:$0xff] %v4109
  %4142 = vst [vmem:[#allocation4 + $0x228] sm:$0xff] %v4110
  %4143 = vst [vmem:[#allocation4 + $0x230] sm:$0xff] %v4111
  %4144 = vst [vmem:[#allocation4 + $0x238] sm:$0xff] %v4112
  %4145 = vst [vmem:[#allocation4 + $0x240] sm:$0xff] %v4113
  %4146 = vst [vmem:[#allocation4 + $0x248] sm:$0xff] %v4114
  %4147 = vst [vmem:[#allocation4 + $0x250] sm:$0xff] %v4115
  %4148 = vst [vmem:[#allocation4 + $0x258] sm:$0xff] %v4116
  %4149 = vst [vmem:[#allocation4 + $0x260] sm:$0xff] %v4117
  %4150 = vst [vmem:[#allocation4 + $0x268] sm:$0xff] %v4118
  %4151 = vst [vmem:[#allocation4 + $0x270] sm:$0xff] %v4119
  %4152 = vst [vmem:[#allocation4 + $0x278] sm:$0xff] %v4120
  %v4153 = vld [vmem:[#allocation3] sm:$0xff]
  %v4154 = vld [vmem:[#allocation3 + $0x8] sm:$0xff]
  %v4155 = vld [vmem:[#allocation3 + $0x10] sm:$0xff]
  %v4156 = vld [vmem:[#allocation3 + $0x18] sm:$0xff]
  %v4157 = vld [vmem:[#allocation3 + $0x20] sm:$0xff]
  %v4158 = vld [vmem:[#allocation3 + $0x28] sm:$0xff]
  %v4159 = vld [vmem:[#allocation3 + $0x30] sm:$0xff]
  %v4160 = vld [vmem:[#allocation3 + $0x38] sm:$0xff]
  %v4161 = vld [vmem:[#allocation3 + $0x40] sm:$0xff]
  %v4162 = vld [vmem:[#allocation3 + $0x48] sm:$0xff]
  %v4163 = vld [vmem:[#allocation3 + $0x50] sm:$0xff]
  %v4164 = vld [vmem:[#allocation3 + $0x58] sm:$0xff]
  %v4165 = vld [vmem:[#allocation3 + $0x60] sm:$0xff]
  %v4166 = vld [vmem:[#allocation3 + $0x68] sm:$0xff]
  %v4167 = vld [vmem:[#allocation3 + $0x70] sm:$0xff]
  %v4168 = vld [vmem:[#allocation3 + $0x78] sm:$0xff]
  %v4169 = vld [vmem:[#allocation3 + $0x80] sm:$0xff]
  %v4170 = vld [vmem:[#allocation3 + $0x88] sm:$0xff]
  %4189 = vrot.lane.b32.xlu0 %v4153, 95
  %v4190 = vpop.permute.xlu0 %4189
  %4191 = vrot.lane.b32.xlu0 %v4154, 95
  %v4192 = vpop.permute.xlu0 %4191
  %4193 = vrot.lane.b32.xlu0 %v4155, 95
  %v4194 = vpop.permute.xlu0 %4193
  %4195 = vrot.lane.b32.xlu0 %v4156, 95
  %v4196 = vpop.permute.xlu0 %4195
  %4197 = vrot.lane.b32.xlu0 %v4157, 95
  %v4198 = vpop.permute.xlu0 %4197
  %4199 = vrot.lane.b32.xlu0 %v4158, 95
  %v4200 = vpop.permute.xlu0 %4199
  %4201 = vrot.lane.b32.xlu0 %v4159, 95
  %v4202 = vpop.permute.xlu0 %4201
  %4203 = vrot.lane.b32.xlu0 %v4160, 95
  %v4204 = vpop.permute.xlu0 %4203
  %4205 = vrot.lane.b32.xlu0 %v4161, 95
  %v4206 = vpop.permute.xlu0 %4205
  %4207 = vrot.lane.b32.xlu0 %v4162, 95
  %v4208 = vpop.permute.xlu0 %4207
  %4209 = vrot.lane.b32.xlu0 %v4163, 95
  %v4210 = vpop.permute.xlu0 %4209
  %4211 = vrot.lane.b32.xlu0 %v4164, 95
  %v4212 = vpop.permute.xlu0 %4211
  %4213 = vrot.lane.b32.xlu0 %v4165, 95
  %v4214 = vpop.permute.xlu0 %4213
  %4215 = vrot.lane.b32.xlu0 %v4166, 95
  %v4216 = vpop.permute.xlu0 %4215
  %4217 = vrot.lane.b32.xlu0 %v4167, 95
  %v4218 = vpop.permute.xlu0 %4217
  %4219 = vrot.lane.b32.xlu0 %v4168, 95
  %v4220 = vpop.permute.xlu0 %4219
  %4221 = vrot.lane.b32.xlu0 %v4169, 95
  %v4222 = vpop.permute.xlu0 %4221
  %4223 = vrot.lane.b32.xlu0 %v4170, 95
  %v4224 = vpop.permute.xlu0 %4223
  %v4225 = vsel %vm849, %v4190, %v4192
  %v4226 = vsel %vm849, %v4192, %v4194
  %v4227 = vsel %vm849, %v4194, %v4196
  %v4228 = vsel %vm849, %v4196, %v4198
  %v4229 = vsel %vm849, %v4198, %v4200
  %v4230 = vsel %vm849, %v4200, %v4202
  %v4231 = vsel %vm849, %v4202, %v4204
  %v4232 = vsel %vm849, %v4204, %v4206
  %v4233 = vsel %vm849, %v4208, %v4210
  %v4234 = vsel %vm849, %v4210, %v4212
  %v4235 = vsel %vm849, %v4212, %v4214
  %v4236 = vsel %vm849, %v4214, %v4216
  %v4237 = vsel %vm849, %v4216, %v4218
  %v4238 = vsel %vm849, %v4218, %v4220
  %v4239 = vsel %vm849, %v4220, %v4222
  %v4240 = vsel %vm849, %v4222, %v4224
  %4257 = vst [vmem:[#allocation4 + $0x280] sm:$0xff] %v4225
  %4258 = vst [vmem:[#allocation4 + $0x288] sm:$0xff] %v4226
  %4259 = vst [vmem:[#allocation4 + $0x290] sm:$0xff] %v4227
  %4260 = vst [vmem:[#allocation4 + $0x298] sm:$0xff] %v4228
  %4261 = vst [vmem:[#allocation4 + $0x2a0] sm:$0xff] %v4229
  %4262 = vst [vmem:[#allocation4 + $0x2a8] sm:$0xff] %v4230
  %4263 = vst [vmem:[#allocation4 + $0x2b0] sm:$0xff] %v4231
  %4264 = vst [vmem:[#allocation4 + $0x2b8] sm:$0xff] %v4232
  %4265 = vst [vmem:[#allocation4 + $0x2c0] sm:$0xff] %v4233
  %4266 = vst [vmem:[#allocation4 + $0x2c8] sm:$0xff] %v4234
  %4267 = vst [vmem:[#allocation4 + $0x2d0] sm:$0xff] %v4235
  %4268 = vst [vmem:[#allocation4 + $0x2d8] sm:$0xff] %v4236
  %4269 = vst [vmem:[#allocation4 + $0x2e0] sm:$0xff] %v4237
  %4270 = vst [vmem:[#allocation4 + $0x2e8] sm:$0xff] %v4238
  %4271 = vst [vmem:[#allocation4 + $0x2f0] sm:$0xff] %v4239
  %4272 = vst [vmem:[#allocation4 + $0x2f8] sm:$0xff] %v4240
  %v4273 = vld [vmem:[#allocation3] sm:$0xff]
  %v4274 = vld [vmem:[#allocation3 + $0x8] sm:$0xff]
  %v4275 = vld [vmem:[#allocation3 + $0x10] sm:$0xff]
  %v4276 = vld [vmem:[#allocation3 + $0x18] sm:$0xff]
  %v4277 = vld [vmem:[#allocation3 + $0x20] sm:$0xff]
  %v4278 = vld [vmem:[#allocation3 + $0x28] sm:$0xff]
  %v4279 = vld [vmem:[#allocation3 + $0x30] sm:$0xff]
  %v4280 = vld [vmem:[#allocation3 + $0x38] sm:$0xff]
  %v4281 = vld [vmem:[#allocation3 + $0x40] sm:$0xff]
  %v4282 = vld [vmem:[#allocation3 + $0x48] sm:$0xff]
  %v4283 = vld [vmem:[#allocation3 + $0x50] sm:$0xff]
  %v4284 = vld [vmem:[#allocation3 + $0x58] sm:$0xff]
  %v4285 = vld [vmem:[#allocation3 + $0x60] sm:$0xff]
  %v4286 = vld [vmem:[#allocation3 + $0x68] sm:$0xff]
  %v4287 = vld [vmem:[#allocation3 + $0x70] sm:$0xff]
  %v4288 = vld [vmem:[#allocation3 + $0x78] sm:$0xff]
  %v4289 = vld [vmem:[#allocation3 + $0x80] sm:$0xff]
  %v4290 = vld [vmem:[#allocation3 + $0x88] sm:$0xff]
  %4309 = vrot.lane.b32.xlu0 %v4273, 66
  %v4310 = vpop.permute.xlu0 %4309
  %4311 = vrot.lane.b32.xlu0 %v4274, 66
  %v4312 = vpop.permute.xlu0 %4311
  %4313 = vrot.lane.b32.xlu0 %v4275, 66
  %v4314 = vpop.permute.xlu0 %4313
  %4315 = vrot.lane.b32.xlu0 %v4276, 66
  %v4316 = vpop.permute.xlu0 %4315
  %4317 = vrot.lane.b32.xlu0 %v4277, 66
  %v4318 = vpop.permute.xlu0 %4317
  %4319 = vrot.lane.b32.xlu0 %v4278, 66
  %v4320 = vpop.permute.xlu0 %4319
  %4321 = vrot.lane.b32.xlu0 %v4279, 66
  %v4322 = vpop.permute.xlu0 %4321
  %4323 = vrot.lane.b32.xlu0 %v4280, 66
  %v4324 = vpop.permute.xlu0 %4323
  %4325 = vrot.lane.b32.xlu0 %v4281, 66
  %v4326 = vpop.permute.xlu0 %4325
  %4327 = vrot.lane.b32.xlu0 %v4282, 66
  %v4328 = vpop.permute.xlu0 %4327
  %4329 = vrot.lane.b32.xlu0 %v4283, 66
  %v4330 = vpop.permute.xlu0 %4329
  %4331 = vrot.lane.b32.xlu0 %v4284, 66
  %v4332 = vpop.permute.xlu0 %4331
  %4333 = vrot.lane.b32.xlu0 %v4285, 66
  %v4334 = vpop.permute.xlu0 %4333
  %4335 = vrot.lane.b32.xlu0 %v4286, 66
  %v4336 = vpop.permute.xlu0 %4335
  %4337 = vrot.lane.b32.xlu0 %v4287, 66
  %v4338 = vpop.permute.xlu0 %4337
  %4339 = vrot.lane.b32.xlu0 %v4288, 66
  %v4340 = vpop.permute.xlu0 %4339
  %4341 = vrot.lane.b32.xlu0 %v4289, 66
  %v4342 = vpop.permute.xlu0 %4341
  %4343 = vrot.lane.b32.xlu0 %v4290, 66
  %v4344 = vpop.permute.xlu0 %4343
  %v4345 = vsel %vm1381, %v4310, %v4312
  %v4346 = vsel %vm1381, %v4312, %v4314
  %v4347 = vsel %vm1381, %v4314, %v4316
  %v4348 = vsel %vm1381, %v4316, %v4318
  %v4349 = vsel %vm1381, %v4318, %v4320
  %v4350 = vsel %vm1381, %v4320, %v4322
  %v4351 = vsel %vm1381, %v4322, %v4324
  %v4352 = vsel %vm1381, %v4324, %v4326
  %v4353 = vsel %vm1381, %v4328, %v4330
  %v4354 = vsel %vm1381, %v4330, %v4332
  %v4355 = vsel %vm1381, %v4332, %v4334
  %v4356 = vsel %vm1381, %v4334, %v4336
  %v4357 = vsel %vm1381, %v4336, %v4338
  %v4358 = vsel %vm1381, %v4338, %v4340
  %v4359 = vsel %vm1381, %v4340, %v4342
  %v4360 = vsel %vm1381, %v4342, %v4344
  %4377 = vst [vmem:[#allocation4 + $0x300] sm:$0xff] %v4345
  %4378 = vst [vmem:[#allocation4 + $0x308] sm:$0xff] %v4346
  %4379 = vst [vmem:[#allocation4 + $0x310] sm:$0xff] %v4347
  %4380 = vst [vmem:[#allocation4 + $0x318] sm:$0xff] %v4348
  %4381 = vst [vmem:[#allocation4 + $0x320] sm:$0xff] %v4349
  %4382 = vst [vmem:[#allocation4 + $0x328] sm:$0xff] %v4350
  %4383 = vst [vmem:[#allocation4 + $0x330] sm:$0xff] %v4351
  %4384 = vst [vmem:[#allocation4 + $0x338] sm:$0xff] %v4352
  %4385 = vst [vmem:[#allocation4 + $0x340] sm:$0xff] %v4353
  %4386 = vst [vmem:[#allocation4 + $0x348] sm:$0xff] %v4354
  %4387 = vst [vmem:[#allocation4 + $0x350] sm:$0xff] %v4355
  %4388 = vst [vmem:[#allocation4 + $0x358] sm:$0xff] %v4356
  %4389 = vst [vmem:[#allocation4 + $0x360] sm:$0xff] %v4357
  %4390 = vst [vmem:[#allocation4 + $0x368] sm:$0xff] %v4358
  %4391 = vst [vmem:[#allocation4 + $0x370] sm:$0xff] %v4359
  %4392 = vst [vmem:[#allocation4 + $0x378] sm:$0xff] %v4360
  %v4393 = vld [vmem:[#allocation3] sm:$0xff]
  %v4394 = vld [vmem:[#allocation3 + $0x8] sm:$0xff]
  %v4395 = vld [vmem:[#allocation3 + $0x10] sm:$0xff]
  %v4396 = vld [vmem:[#allocation3 + $0x18] sm:$0xff]
  %v4397 = vld [vmem:[#allocation3 + $0x20] sm:$0xff]
  %v4398 = vld [vmem:[#allocation3 + $0x28] sm:$0xff]
  %v4399 = vld [vmem:[#allocation3 + $0x30] sm:$0xff]
  %v4400 = vld [vmem:[#allocation3 + $0x38] sm:$0xff]
  %v4401 = vld [vmem:[#allocation3 + $0x40] sm:$0xff]
  %v4402 = vld [vmem:[#allocation3 + $0x48] sm:$0xff]
  %v4403 = vld [vmem:[#allocation3 + $0x50] sm:$0xff]
  %v4404 = vld [vmem:[#allocation3 + $0x58] sm:$0xff]
  %v4405 = vld [vmem:[#allocation3 + $0x60] sm:$0xff]
  %v4406 = vld [vmem:[#allocation3 + $0x68] sm:$0xff]
  %v4407 = vld [vmem:[#allocation3 + $0x70] sm:$0xff]
  %v4408 = vld [vmem:[#allocation3 + $0x78] sm:$0xff]
  %v4409 = vld [vmem:[#allocation3 + $0x80] sm:$0xff]
  %v4410 = vld [vmem:[#allocation3 + $0x88] sm:$0xff]
  %4429 = vrot.lane.b32.xlu0 %v4393, 65
  %v4430 = vpop.permute.xlu0 %4429
  %4431 = vrot.lane.b32.xlu0 %v4394, 65
  %v4432 = vpop.permute.xlu0 %4431
  %4433 = vrot.lane.b32.xlu0 %v4395, 65
  %v4434 = vpop.permute.xlu0 %4433
  %4435 = vrot.lane.b32.xlu0 %v4396, 65
  %v4436 = vpop.permute.xlu0 %4435
  %4437 = vrot.lane.b32.xlu0 %v4397, 65
  %v4438 = vpop.permute.xlu0 %4437
  %4439 = vrot.lane.b32.xlu0 %v4398, 65
  %v4440 = vpop.permute.xlu0 %4439
  %4441 = vrot.lane.b32.xlu0 %v4399, 65
  %v4442 = vpop.permute.xlu0 %4441
  %4443 = vrot.lane.b32.xlu0 %v4400, 65
  %v4444 = vpop.permute.xlu0 %4443
  %4445 = vrot.lane.b32.xlu0 %v4401, 65
  %v4446 = vpop.permute.xlu0 %4445
  %4447 = vrot.lane.b32.xlu0 %v4402, 65
  %v4448 = vpop.permute.xlu0 %4447
  %4449 = vrot.lane.b32.xlu0 %v4403, 65
  %v4450 = vpop.permute.xlu0 %4449
  %4451 = vrot.lane.b32.xlu0 %v4404, 65
  %v4452 = vpop.permute.xlu0 %4451
  %4453 = vrot.lane.b32.xlu0 %v4405, 65
  %v4454 = vpop.permute.xlu0 %4453
  %4455 = vrot.lane.b32.xlu0 %v4406, 65
  %v4456 = vpop.permute.xlu0 %4455
  %4457 = vrot.lane.b32.xlu0 %v4407, 65
  %v4458 = vpop.permute.xlu0 %4457
  %4459 = vrot.lane.b32.xlu0 %v4408, 65
  %v4460 = vpop.permute.xlu0 %4459
  %4461 = vrot.lane.b32.xlu0 %v4409, 65
  %v4462 = vpop.permute.xlu0 %4461
  %4463 = vrot.lane.b32.xlu0 %v4410, 65
  %v4464 = vpop.permute.xlu0 %4463
  %v4465 = vsel %vm1488, %v4430, %v4432
  %v4466 = vsel %vm1488, %v4432, %v4434
  %v4467 = vsel %vm1488, %v4434, %v4436
  %v4468 = vsel %vm1488, %v4436, %v4438
  %v4469 = vsel %vm1488, %v4438, %v4440
  %v4470 = vsel %vm1488, %v4440, %v4442
  %v4471 = vsel %vm1488, %v4442, %v4444
  %v4472 = vsel %vm1488, %v4444, %v4446
  %v4473 = vsel %vm1488, %v4448, %v4450
  %v4474 = vsel %vm1488, %v4450, %v4452
  %v4475 = vsel %vm1488, %v4452, %v4454
  %v4476 = vsel %vm1488, %v4454, %v4456
  %v4477 = vsel %vm1488, %v4456, %v4458
  %v4478 = vsel %vm1488, %v4458, %v4460
  %v4479 = vsel %vm1488, %v4460, %v4462
  %v4480 = vsel %vm1488, %v4462, %v4464
  %4497 = vst [vmem:[#allocation4 + $0x380] sm:$0xff] %v4465
  %4498 = vst [vmem:[#allocation4 + $0x388] sm:$0xff] %v4466
  %4499 = vst [vmem:[#allocation4 + $0x390] sm:$0xff] %v4467
  %4500 = vst [vmem:[#allocation4 + $0x398] sm:$0xff] %v4468
  %4501 = vst [vmem:[#allocation4 + $0x3a0] sm:$0xff] %v4469
  %4502 = vst [vmem:[#allocation4 + $0x3a8] sm:$0xff] %v4470
  %4503 = vst [vmem:[#allocation4 + $0x3b0] sm:$0xff] %v4471
  %4504 = vst [vmem:[#allocation4 + $0x3b8] sm:$0xff] %v4472
  %4505 = vst [vmem:[#allocation4 + $0x3c0] sm:$0xff] %v4473
  %4506 = vst [vmem:[#allocation4 + $0x3c8] sm:$0xff] %v4474
  %4507 = vst [vmem:[#allocation4 + $0x3d0] sm:$0xff] %v4475
  %4508 = vst [vmem:[#allocation4 + $0x3d8] sm:$0xff] %v4476
  %4509 = vst [vmem:[#allocation4 + $0x3e0] sm:$0xff] %v4477
  %4510 = vst [vmem:[#allocation4 + $0x3e8] sm:$0xff] %v4478
  %4511 = vst [vmem:[#allocation4 + $0x3f0] sm:$0xff] %v4479
  %4512 = vst [vmem:[#allocation4 + $0x3f8] sm:$0xff] %v4480
  %v4513 = vld [vmem:[#allocation3] sm:$0xff]
  %v4514 = vld [vmem:[#allocation3 + $0x8] sm:$0xff]
  %v4515 = vld [vmem:[#allocation3 + $0x10] sm:$0xff]
  %v4516 = vld [vmem:[#allocation3 + $0x18] sm:$0xff]
  %v4517 = vld [vmem:[#allocation3 + $0x20] sm:$0xff]
  %v4518 = vld [vmem:[#allocation3 + $0x28] sm:$0xff]
  %v4519 = vld [vmem:[#allocation3 + $0x30] sm:$0xff]
  %v4520 = vld [vmem:[#allocation3 + $0x38] sm:$0xff]
  %v4521 = vld [vmem:[#allocation3 + $0x40] sm:$0xff]
  %v4522 = vld [vmem:[#allocation3 + $0x48] sm:$0xff]
  %v4523 = vld [vmem:[#allocation3 + $0x50] sm:$0xff]
  %v4524 = vld [vmem:[#allocation3 + $0x58] sm:$0xff]
  %v4525 = vld [vmem:[#allocation3 + $0x60] sm:$0xff]
  %v4526 = vld [vmem:[#allocation3 + $0x68] sm:$0xff]
  %v4527 = vld [vmem:[#allocation3 + $0x70] sm:$0xff]
  %v4528 = vld [vmem:[#allocation3 + $0x78] sm:$0xff]
  %v4529 = vld [vmem:[#allocation3 + $0x80] sm:$0xff]
  %v4530 = vld [vmem:[#allocation3 + $0x88] sm:$0xff]
  %4549 = vrot.lane.b32.xlu0 %v4513, 64
  %v4550 = vpop.permute.xlu0 %4549
  %4551 = vrot.lane.b32.xlu0 %v4514, 64
  %v4552 = vpop.permute.xlu0 %4551
  %4553 = vrot.lane.b32.xlu0 %v4515, 64
  %v4554 = vpop.permute.xlu0 %4553
  %4555 = vrot.lane.b32.xlu0 %v4516, 64
  %v4556 = vpop.permute.xlu0 %4555
  %4557 = vrot.lane.b32.xlu0 %v4517, 64
  %v4558 = vpop.permute.xlu0 %4557
  %4559 = vrot.lane.b32.xlu0 %v4518, 64
  %v4560 = vpop.permute.xlu0 %4559
  %4561 = vrot.lane.b32.xlu0 %v4519, 64
  %v4562 = vpop.permute.xlu0 %4561
  %4563 = vrot.lane.b32.xlu0 %v4520, 64
  %v4564 = vpop.permute.xlu0 %4563
  %4565 = vrot.lane.b32.xlu0 %v4521, 64
  %v4566 = vpop.permute.xlu0 %4565
  %4567 = vrot.lane.b32.xlu0 %v4522, 64
  %v4568 = vpop.permute.xlu0 %4567
  %4569 = vrot.lane.b32.xlu0 %v4523, 64
  %v4570 = vpop.permute.xlu0 %4569
  %4571 = vrot.lane.b32.xlu0 %v4524, 64
  %v4572 = vpop.permute.xlu0 %4571
  %4573 = vrot.lane.b32.xlu0 %v4525, 64
  %v4574 = vpop.permute.xlu0 %4573
  %4575 = vrot.lane.b32.xlu0 %v4526, 64
  %v4576 = vpop.permute.xlu0 %4575
  %4577 = vrot.lane.b32.xlu0 %v4527, 64
  %v4578 = vpop.permute.xlu0 %4577
  %4579 = vrot.lane.b32.xlu0 %v4528, 64
  %v4580 = vpop.permute.xlu0 %4579
  %4581 = vrot.lane.b32.xlu0 %v4529, 64
  %v4582 = vpop.permute.xlu0 %4581
  %4583 = vrot.lane.b32.xlu0 %v4530, 64
  %v4584 = vpop.permute.xlu0 %4583
  %v4585 = vsel %vm1595, %v4550, %v4552
  %v4586 = vsel %vm1595, %v4552, %v4554
  %v4587 = vsel %vm1595, %v4554, %v4556
  %v4588 = vsel %vm1595, %v4556, %v4558
  %v4589 = vsel %vm1595, %v4558, %v4560
  %v4590 = vsel %vm1595, %v4560, %v4562
  %v4591 = vsel %vm1595, %v4562, %v4564
  %v4592 = vsel %vm1595, %v4564, %v4566
  %v4593 = vsel %vm1595, %v4568, %v4570
  %v4594 = vsel %vm1595, %v4570, %v4572
  %v4595 = vsel %vm1595, %v4572, %v4574
  %v4596 = vsel %vm1595, %v4574, %v4576
  %v4597 = vsel %vm1595, %v4576, %v4578
  %v4598 = vsel %vm1595, %v4578, %v4580
  %v4599 = vsel %vm1595, %v4580, %v4582
  %v4600 = vsel %vm1595, %v4582, %v4584
  %4617 = vst [vmem:[#allocation4 + $0x400] sm:$0xff] %v4585
  %4618 = vst [vmem:[#allocation4 + $0x408] sm:$0xff] %v4586
  %4619 = vst [vmem:[#allocation4 + $0x410] sm:$0xff] %v4587
  %4620 = vst [vmem:[#allocation4 + $0x418] sm:$0xff] %v4588
  %4621 = vst [vmem:[#allocation4 + $0x420] sm:$0xff] %v4589
  %4622 = vst [vmem:[#allocation4 + $0x428] sm:$0xff] %v4590
  %4623 = vst [vmem:[#allocation4 + $0x430] sm:$0xff] %v4591
  %4624 = vst [vmem:[#allocation4 + $0x438] sm:$0xff] %v4592
  %4625 = vst [vmem:[#allocation4 + $0x440] sm:$0xff] %v4593
  %4626 = vst [vmem:[#allocation4 + $0x448] sm:$0xff] %v4594
  %4627 = vst [vmem:[#allocation4 + $0x450] sm:$0xff] %v4595
  %4628 = vst [vmem:[#allocation4 + $0x458] sm:$0xff] %v4596
  %4629 = vst [vmem:[#allocation4 + $0x460] sm:$0xff] %v4597
  %4630 = vst [vmem:[#allocation4 + $0x468] sm:$0xff] %v4598
  %4631 = vst [vmem:[#allocation4 + $0x470] sm:$0xff] %v4599
  %4632 = vst [vmem:[#allocation4 + $0x478] sm:$0xff] %v4600
  %v4633 = vld [vmem:[%s1 + $0x18] sm:$0xff]
  %v4634 = vld [vmem:[%s1 + $0x20] sm:$0xff]
  %v4635 = vld [vmem:[%s1 + $0x78] sm:$0xff]
  %v4636 = vld [vmem:[%s1 + $0x80] sm:$0xff]
  %v4637 = vld [vmem:[#allocation4] sm:$0xff]
  %v4638 = vld [vmem:[#allocation4 + $0x8] sm:$0xff]
  %v4639 = vld [vmem:[#allocation4 + $0x10] sm:$0xff]
  %v4640 = vld [vmem:[#allocation4 + $0x18] sm:$0xff]
  %v4641 = vld [vmem:[#allocation4 + $0x20] sm:$0xff]
  %v4642 = vld [vmem:[#allocation4 + $0x28] sm:$0xff]
  %v4643 = vld [vmem:[#allocation4 + $0x30] sm:$0xff]
  %v4644 = vld [vmem:[#allocation4 + $0x38] sm:$0xff]
  %v4645 = vld [vmem:[#allocation4 + $0x40] sm:$0xff]
  %v4646 = vld [vmem:[#allocation4 + $0x48] sm:$0xff]
  %v4647 = vld [vmem:[#allocation4 + $0x50] sm:$0xff]
  %v4648 = vld [vmem:[#allocation4 + $0x58] sm:$0xff]
  %v4649 = vld [vmem:[#allocation4 + $0x60] sm:$0xff]
  %v4650 = vld [vmem:[#allocation4 + $0x68] sm:$0xff]
  %v4651 = vld [vmem:[#allocation4 + $0x70] sm:$0xff]
  %v4652 = vld [vmem:[#allocation4 + $0x78] sm:$0xff]
  %v4653 = vld [vmem:[#allocation4 + $0x80] sm:$0xff]
  %v4654 = vld [vmem:[#allocation4 + $0x88] sm:$0xff]
  %v4655 = vld [vmem:[#allocation4 + $0x90] sm:$0xff]
  %v4656 = vld [vmem:[#allocation4 + $0x98] sm:$0xff]
  %v4657 = vld [vmem:[#allocation4 + $0xa0] sm:$0xff]
  %v4658 = vld [vmem:[#allocation4 + $0xa8] sm:$0xff]
  %v4659 = vld [vmem:[#allocation4 + $0xb0] sm:$0xff]
  %v4660 = vld [vmem:[#allocation4 + $0xb8] sm:$0xff]
  %v4661 = vld [vmem:[#allocation4 + $0xc0] sm:$0xff]
  %v4662 = vld [vmem:[#allocation4 + $0xc8] sm:$0xff]
  %v4663 = vld [vmem:[#allocation4 + $0xd0] sm:$0xff]
  %v4664 = vld [vmem:[#allocation4 + $0xd8] sm:$0xff]
  %v4665 = vld [vmem:[#allocation4 + $0xe0] sm:$0xff]
  %v4666 = vld [vmem:[#allocation4 + $0xe8] sm:$0xff]
  %v4667 = vld [vmem:[#allocation4 + $0xf0] sm:$0xff]
  %v4668 = vld [vmem:[#allocation4 + $0xf8] sm:$0xff]
  %v4669 = vld [vmem:[#allocation4 + $0x100] sm:$0xff]
  %v4670 = vld [vmem:[#allocation4 + $0x108] sm:$0xff]
  %v4671 = vld [vmem:[#allocation4 + $0x110] sm:$0xff]
  %v4672 = vld [vmem:[#allocation4 + $0x118] sm:$0xff]
  %v4673 = vld [vmem:[#allocation4 + $0x120] sm:$0xff]
  %v4674 = vld [vmem:[#allocation4 + $0x128] sm:$0xff]
  %v4675 = vld [vmem:[#allocation4 + $0x130] sm:$0xff]
  %v4676 = vld [vmem:[#allocation4 + $0x138] sm:$0xff]
  %v4677 = vld [vmem:[#allocation4 + $0x140] sm:$0xff]
  %v4678 = vld [vmem:[#allocation4 + $0x148] sm:$0xff]
  %v4679 = vld [vmem:[#allocation4 + $0x150] sm:$0xff]
  %v4680 = vld [vmem:[#allocation4 + $0x158] sm:$0xff]
  %v4681 = vld [vmem:[#allocation4 + $0x160] sm:$0xff]
  %v4682 = vld [vmem:[#allocation4 + $0x168] sm:$0xff]
  %v4683 = vld [vmem:[#allocation4 + $0x170] sm:$0xff]
  %v4684 = vld [vmem:[#allocation4 + $0x178] sm:$0xff]
  %v4685 = vld [vmem:[#allocation4 + $0x180] sm:$0xff]
  %v4686 = vld [vmem:[#allocation4 + $0x188] sm:$0xff]
  %v4687 = vld [vmem:[#allocation4 + $0x190] sm:$0xff]
  %v4688 = vld [vmem:[#allocation4 + $0x198] sm:$0xff]
  %v4689 = vld [vmem:[#allocation4 + $0x1a0] sm:$0xff]
  %v4690 = vld [vmem:[#allocation4 + $0x1a8] sm:$0xff]
  %v4691 = vld [vmem:[#allocation4 + $0x1b0] sm:$0xff]
  %v4692 = vld [vmem:[#allocation4 + $0x1b8] sm:$0xff]
  %v4693 = vld [vmem:[#allocation4 + $0x1c0] sm:$0xff]
  %v4694 = vld [vmem:[#allocation4 + $0x1c8] sm:$0xff]
  %v4695 = vld [vmem:[#allocation4 + $0x1d0] sm:$0xff]
  %v4696 = vld [vmem:[#allocation4 + $0x1d8] sm:$0xff]
  %v4697 = vld [vmem:[#allocation4 + $0x1e0] sm:$0xff]
  %v4698 = vld [vmem:[#allocation4 + $0x1e8] sm:$0xff]
  %v4699 = vld [vmem:[#allocation4 + $0x1f0] sm:$0xff]
  %v4700 = vld [vmem:[#allocation4 + $0x1f8] sm:$0xff]
  %v4701 = vld [vmem:[#allocation4 + $0x200] sm:$0xff]
  %v4702 = vld [vmem:[#allocation4 + $0x208] sm:$0xff]
  %v4703 = vld [vmem:[#allocation4 + $0x210] sm:$0xff]
  %v4704 = vld [vmem:[#allocation4 + $0x218] sm:$0xff]
  %v4705 = vld [vmem:[#allocation4 + $0x220] sm:$0xff]
  %v4706 = vld [vmem:[#allocation4 + $0x228] sm:$0xff]
  %v4707 = vld [vmem:[#allocation4 + $0x230] sm:$0xff]
  %v4708 = vld [vmem:[#allocation4 + $0x238] sm:$0xff]
  %v4709 = vld [vmem:[#allocation4 + $0x240] sm:$0xff]
  %v4710 = vld [vmem:[#allocation4 + $0x248] sm:$0xff]
  %v4711 = vld [vmem:[#allocation4 + $0x250] sm:$0xff]
  %v4712 = vld [vmem:[#allocation4 + $0x258] sm:$0xff]
  %v4713 = vld [vmem:[#allocation4 + $0x260] sm:$0xff]
  %v4714 = vld [vmem:[#allocation4 + $0x268] sm:$0xff]
  %v4715 = vld [vmem:[#allocation4 + $0x270] sm:$0xff]
  %v4716 = vld [vmem:[#allocation4 + $0x278] sm:$0xff]
  %v4717 = vld [vmem:[#allocation4 + $0x280] sm:$0xff]
  %v4718 = vld [vmem:[#allocation4 + $0x288] sm:$0xff]
  %v4719 = vld [vmem:[#allocation4 + $0x290] sm:$0xff]
  %v4720 = vld [vmem:[#allocation4 + $0x298] sm:$0xff]
  %v4721 = vld [vmem:[#allocation4 + $0x2a0] sm:$0xff]
  %v4722 = vld [vmem:[#allocation4 + $0x2a8] sm:$0xff]
  %v4723 = vld [vmem:[#allocation4 + $0x2b0] sm:$0xff]
  %v4724 = vld [vmem:[#allocation4 + $0x2b8] sm:$0xff]
  %v4725 = vld [vmem:[#allocation4 + $0x2c0] sm:$0xff]
  %v4726 = vld [vmem:[#allocation4 + $0x2c8] sm:$0xff]
  %v4727 = vld [vmem:[#allocation4 + $0x2d0] sm:$0xff]
  %v4728 = vld [vmem:[#allocation4 + $0x2d8] sm:$0xff]
  %v4729 = vld [vmem:[#allocation4 + $0x2e0] sm:$0xff]
  %v4730 = vld [vmem:[#allocation4 + $0x2e8] sm:$0xff]
  %v4731 = vld [vmem:[#allocation4 + $0x2f0] sm:$0xff]
  %v4732 = vld [vmem:[#allocation4 + $0x2f8] sm:$0xff]
  %v4733 = vld [vmem:[#allocation4 + $0x300] sm:$0xff]
  %v4734 = vld [vmem:[#allocation4 + $0x308] sm:$0xff]
  %v4735 = vld [vmem:[#allocation4 + $0x310] sm:$0xff]
  %v4736 = vld [vmem:[#allocation4 + $0x318] sm:$0xff]
  %v4737 = vld [vmem:[#allocation4 + $0x320] sm:$0xff]
  %v4738 = vld [vmem:[#allocation4 + $0x328] sm:$0xff]
  %v4739 = vld [vmem:[#allocation4 + $0x330] sm:$0xff]
  %v4740 = vld [vmem:[#allocation4 + $0x338] sm:$0xff]
  %v4741 = vld [vmem:[#allocation4 + $0x340] sm:$0xff]
  %v4742 = vld [vmem:[#allocation4 + $0x348] sm:$0xff]
  %v4743 = vld [vmem:[#allocation4 + $0x350] sm:$0xff]
  %v4744 = vld [vmem:[#allocation4 + $0x358] sm:$0xff]
  %v4745 = vld [vmem:[#allocation4 + $0x360] sm:$0xff]
  %v4746 = vld [vmem:[#allocation4 + $0x368] sm:$0xff]
  %v4747 = vld [vmem:[#allocation4 + $0x370] sm:$0xff]
  %v4748 = vld [vmem:[#allocation4 + $0x378] sm:$0xff]
  %v4749 = vld [vmem:[#allocation4 + $0x380] sm:$0xff]
  %v4750 = vld [vmem:[#allocation4 + $0x388] sm:$0xff]
  %v4751 = vld [vmem:[#allocation4 + $0x390] sm:$0xff]
  %v4752 = vld [vmem:[#allocation4 + $0x398] sm:$0xff]
  %v4753 = vld [vmem:[#allocation4 + $0x3a0] sm:$0xff]
  %v4754 = vld [vmem:[#allocation4 + $0x3a8] sm:$0xff]
  %v4755 = vld [vmem:[#allocation4 + $0x3b0] sm:$0xff]
  %v4756 = vld [vmem:[#allocation4 + $0x3b8] sm:$0xff]
  %v4757 = vld [vmem:[#allocation4 + $0x3c0] sm:$0xff]
  %v4758 = vld [vmem:[#allocation4 + $0x3c8] sm:$0xff]
  %v4759 = vld [vmem:[#allocation4 + $0x3d0] sm:$0xff]
  %v4760 = vld [vmem:[#allocation4 + $0x3d8] sm:$0xff]
  %v4761 = vld [vmem:[#allocation4 + $0x3e0] sm:$0xff]
  %v4762 = vld [vmem:[#allocation4 + $0x3e8] sm:$0xff]
  %v4763 = vld [vmem:[#allocation4 + $0x3f0] sm:$0xff]
  %v4764 = vld [vmem:[#allocation4 + $0x3f8] sm:$0xff]
  %v4765 = vld [vmem:[#allocation4 + $0x400] sm:$0xff]
  %v4766 = vld [vmem:[#allocation4 + $0x408] sm:$0xff]
  %v4767 = vld [vmem:[#allocation4 + $0x410] sm:$0xff]
  %v4768 = vld [vmem:[#allocation4 + $0x418] sm:$0xff]
  %v4769 = vld [vmem:[#allocation4 + $0x420] sm:$0xff]
  %v4770 = vld [vmem:[#allocation4 + $0x428] sm:$0xff]
  %v4771 = vld [vmem:[#allocation4 + $0x430] sm:$0xff]
  %v4772 = vld [vmem:[#allocation4 + $0x438] sm:$0xff]
  %v4773 = vld [vmem:[#allocation4 + $0x440] sm:$0xff]
  %v4774 = vld [vmem:[#allocation4 + $0x448] sm:$0xff]
  %v4775 = vld [vmem:[#allocation4 + $0x450] sm:$0xff]
  %v4776 = vld [vmem:[#allocation4 + $0x458] sm:$0xff]
  %v4777 = vld [vmem:[#allocation4 + $0x460] sm:$0xff]
  %v4778 = vld [vmem:[#allocation4 + $0x468] sm:$0xff]
  %v4779 = vld [vmem:[#allocation4 + $0x470] sm:$0xff]
  %v4780 = vld [vmem:[#allocation4 + $0x478] sm:$0xff]
  %4782 = vset.pattern.permute.xlu0 25
  %4783 = vperm.xlu0 %4782, %v4634
  %v4784 = vpop.permute.xlu0 %4783
  %4787 = vset.pattern.permute.xlu0 25
  %4788 = vperm.xlu0 %4787, %v4636
  %v4789 = vpop.permute.xlu0 %4788
  %4793 = vrot.lane.b32.xlu0 %v4633, 120
  %v4794 = vpop.permute.xlu0 %4793
  %4795 = vrot.lane.b32.xlu0 %v4634, 120
  %v4796 = vpop.permute.xlu0 %4795
  %4797 = vrot.lane.b32.xlu0 %v4635, 120
  %v4798 = vpop.permute.xlu0 %4797
  %4799 = vrot.lane.b32.xlu0 %v4636, 120
  %v4800 = vpop.permute.xlu0 %4799
  %vm4801 = vcmask 982016
  %v4802 = vsel %vm4801, %v4794, %v4796
  %v4803 = vsel %vm4801, %v4798, %v4800
  %vm4806 = vcmask 130048
  %v4807 = vsel %vm4806, %v4796, 0
  %v4809 = vsel %vm4806, %v4800, 0
  %4811 = vmatprep.subr.mxu0 %v4758
  %4812 = vmatpush1.msra.mxu0 %v4757
  %4813 = vmatprep.subr.mxu0 %v4750
  %4814 = vmatpush1.msra.mxu0 %v4749
  %4815 = vmatprep.subr.mxu0 %v4742
  %4816 = vmatpush1.msra.mxu0 %v4741
  %4817 = vmatprep.subr.mxu0 %v4734
  %4818 = vmatpush1.msra.mxu0 %v4733
  %4819 = vmatprep.subr.mxu0 %v4726
  %4820 = vmatpush1.msra.mxu0 %v4725
  %4821 = vmatprep.subr.mxu0 %v4718
  %4822 = vmatpush1.msra.mxu0 %v4717
  %4823 = vmatprep.subr.mxu0 %v4710
  %4824 = vmatpush1.msra.mxu0 %v4709
  %4825 = vmatprep.subr.mxu0 %v4702
  %4826 = vmatpush1.msra.mxu0 %v4701
  %4827 = vmatprep.subr.mxu0 %v4694
  %4828 = vmatpush1.msra.mxu0 %v4693
  %4829 = vmatprep.subr.mxu0 %v4686
  %4830 = vmatpush1.msra.mxu0 %v4685
  %4831 = vmatprep.subr.mxu0 %v4678
  %4832 = vmatpush1.msra.mxu0 %v4677
  %4833 = vmatprep.subr.mxu0 %v4670
  %4834 = vmatpush1.msra.mxu0 %v4669
  %4835 = vmatprep.subr.mxu0 %v4662
  %4836 = vmatpush1.msra.mxu0 %v4661
  %4837 = vmatprep.subr.mxu0 %v4654
  %4838 = vmatpush1.msra.mxu0 %v4653
  %4839 = vmatprep.subr.mxu0 %v4646
  %4840 = vmatpush1.msra.mxu0 %v4645
  %4841 = vmatprep.subr.mxu0 %v4638
  %4842 = vmatpush1.msra.mxu0 %v4637
  %4843 = vmatprep.subr.mxu0 0.0
  %4844 = vmatpush2.msra.mxu0 0.0
  %4845 = vmatprep.subr.mxu0 0.0
  %4846 = vmatpush2.msra.mxu0 0.0
  %4847 = vmatprep.subr.mxu0 0.0
  %4848 = vmatpush2.msra.mxu0 0.0
  %4849 = vmatprep.subr.mxu0 0.0
  %4850 = vmatpush2.msra.mxu0 0.0
  %4851 = vmatprep.subr.mxu0 0.0
  %4852 = vmatpush2.msra.mxu0 0.0
  %4853 = vmatprep.subr.mxu0 0.0
  %4854 = vmatpush2.msra.mxu0 0.0
  %4855 = vmatprep.subr.mxu0 0.0
  %4856 = vmatpush2.msra.mxu0 0.0
  %4857 = vmatprep.subr.mxu0 0.0
  %4858 = vmatpush2.msra.mxu0 0.0
  %4859 = vmatprep.subr.mxu0 0.0
  %4860 = vmatpush2.msra.mxu0 0.0
  %4861 = vmatprep.subr.mxu0 0.0
  %4862 = vmatpush2.msra.mxu0 0.0
  %4863 = vmatprep.subr.mxu0 0.0
  %4864 = vmatpush2.msra.mxu0 0.0
  %4865 = vmatprep.subr.mxu0 0.0
  %4866 = vmatpush2.msra.mxu0 0.0
  %4867 = vmatprep.subr.mxu0 0.0
  %4868 = vmatpush2.msra.mxu0 0.0
  %4869 = vmatprep.subr.mxu0 0.0
  %4870 = vmatpush2.msra.mxu0 0.0
  %4871 = vmatprep.subr.mxu0 %v4774
  %4872 = vmatpush2.msra.mxu0 %v4773
  %4873 = vmatprep.subr.mxu0 %v4766
  %4874 = vmatpush2.msra.mxu0 %v4765
  %4875 = vmatprep.mubr.f32.mxu0 %v4807
  %4876 = vmatmul.mubr.f32.gmra.mxu0 %v4802
  %v4877 = vpop.f32.mrf.mxu0
  %v4878 = vadd.f32 %v4784, %v4877
  %v4879 = vpop.f32.mrf.mxu0
  %v4880 = vadd.f32 %v4784, %v4879
  %4881 = vmatprep.mubr.f32.mxu0 %v4809
  %4882 = vmatmul.mubr.f32.gmra.mxu0 %v4803
  %v4883 = vpop.f32.mrf.mxu0
  %v4884 = vadd.f32 %v4789, %v4883
  %v4885 = vpop.f32.mrf.mxu0
  %v4886 = vadd.f32 %v4789, %v4885
  %4887 = vdwg.mxu0
  %4888 = vmatprep.subr.mxu0 %v4760
  %4889 = vmatpush1.msra.mxu0 %v4759
  %4890 = vmatprep.subr.mxu0 %v4752
  %4891 = vmatpush1.msra.mxu0 %v4751
  %4892 = vmatprep.subr.mxu0 %v4744
  %4893 = vmatpush1.msra.mxu0 %v4743
  %4894 = vmatprep.subr.mxu0 %v4736
  %4895 = vmatpush1.msra.mxu0 %v4735
  %4896 = vmatprep.subr.mxu0 %v4728
  %4897 = vmatpush1.msra.mxu0 %v4727
  %4898 = vmatprep.subr.mxu0 %v4720
  %4899 = vmatpush1.msra.mxu0 %v4719
  %4900 = vmatprep.subr.mxu0 %v4712
  %4901 = vmatpush1.msra.mxu0 %v4711
  %4902 = vmatprep.subr.mxu0 %v4704
  %4903 = vmatpush1.msra.mxu0 %v4703
  %4904 = vmatprep.subr.mxu0 %v4696
  %4905 = vmatpush1.msra.mxu0 %v4695
  %4906 = vmatprep.subr.mxu0 %v4688
  %4907 = vmatpush1.msra.mxu0 %v4687
  %4908 = vmatprep.subr.mxu0 %v4680
  %4909 = vmatpush1.msra.mxu0 %v4679
  %4910 = vmatprep.subr.mxu0 %v4672
  %4911 = vmatpush1.msra.mxu0 %v4671
  %4912 = vmatprep.subr.mxu0 %v4664
  %4913 = vmatpush1.msra.mxu0 %v4663
  %4914 = vmatprep.subr.mxu0 %v4656
  %4915 = vmatpush1.msra.mxu0 %v4655
  %4916 = vmatprep.subr.mxu0 %v4648
  %4917 = vmatpush1.msra.mxu0 %v4647
  %4918 = vmatprep.subr.mxu0 %v4640
  %4919 = vmatpush1.msra.mxu0 %v4639
  %4920 = vmatprep.subr.mxu0 0.0
  %4921 = vmatpush2.msra.mxu0 0.0
  %4922 = vmatprep.subr.mxu0 0.0
  %4923 = vmatpush2.msra.mxu0 0.0
  %4924 = vmatprep.subr.mxu0 0.0
  %4925 = vmatpush2.msra.mxu0 0.0
  %4926 = vmatprep.subr.mxu0 0.0
  %4927 = vmatpush2.msra.mxu0 0.0
  %4928 = vmatprep.subr.mxu0 0.0
  %4929 = vmatpush2.msra.mxu0 0.0
  %4930 = vmatprep.subr.mxu0 0.0
  %4931 = vmatpush2.msra.mxu0 0.0
  %4932 = vmatprep.subr.mxu0 0.0
  %4933 = vmatpush2.msra.mxu0 0.0
  %4934 = vmatprep.subr.mxu0 0.0
  %4935 = vmatpush2.msra.mxu0 0.0
  %4936 = vmatprep.subr.mxu0 0.0
  %4937 = vmatpush2.msra.mxu0 0.0
  %4938 = vmatprep.subr.mxu0 0.0
  %4939 = vmatpush2.msra.mxu0 0.0
  %4940 = vmatprep.subr.mxu0 0.0
  %4941 = vmatpush2.msra.mxu0 0.0
  %4942 = vmatprep.subr.mxu0 0.0
  %4943 = vmatpush2.msra.mxu0 0.0
  %4944 = vmatprep.subr.mxu0 0.0
  %4945 = vmatpush2.msra.mxu0 0.0
  %4946 = vmatprep.subr.mxu0 0.0
  %4947 = vmatpush2.msra.mxu0 0.0
  %4948 = vmatprep.subr.mxu0 %v4776
  %4949 = vmatpush2.msra.mxu0 %v4775
  %4950 = vmatprep.subr.mxu0 %v4768
  %4951 = vmatpush2.msra.mxu0 %v4767
  %4952 = vmatprep.mubr.f32.mxu0 %v4807
  %4953 = vmatmul.mubr.f32.gmra.mxu0 %v4802
  %v4954 = vpop.f32.mrf.mxu0
  %v4955 = vadd.f32 %v4784, %v4954
  %v4956 = vpop.f32.mrf.mxu0
  %v4957 = vadd.f32 %v4784, %v4956
  %4958 = vmatprep.mubr.f32.mxu0 %v4809
  %4959 = vmatmul.mubr.f32.gmra.mxu0 %v4803
  %v4960 = vpop.f32.mrf.mxu0
  %v4961 = vadd.f32 %v4789, %v4960
  %v4962 = vpop.f32.mrf.mxu0
  %v4963 = vadd.f32 %v4789, %v4962
  %4964 = vdwg.mxu0
  %4965 = vmatprep.subr.mxu0 %v4762
  %4966 = vmatpush1.msra.mxu0 %v4761
  %4967 = vmatprep.subr.mxu0 %v4754
  %4968 = vmatpush1.msra.mxu0 %v4753
  %4969 = vmatprep.subr.mxu0 %v4746
  %4970 = vmatpush1.msra.mxu0 %v4745
  %4971 = vmatprep.subr.mxu0 %v4738
  %4972 = vmatpush1.msra.mxu0 %v4737
  %4973 = vmatprep.subr.mxu0 %v4730
  %4974 = vmatpush1.msra.mxu0 %v4729
  %4975 = vmatprep.subr.mxu0 %v4722
  %4976 = vmatpush1.msra.mxu0 %v4721
  %4977 = vmatprep.subr.mxu0 %v4714
  %4978 = vmatpush1.msra.mxu0 %v4713
  %4979 = vmatprep.subr.mxu0 %v4706
  %4980 = vmatpush1.msra.mxu0 %v4705
  %4981 = vmatprep.subr.mxu0 %v4698
  %4982 = vmatpush1.msra.mxu0 %v4697
  %4983 = vmatprep.subr.mxu0 %v4690
  %4984 = vmatpush1.msra.mxu0 %v4689
  %4985 = vmatprep.subr.mxu0 %v4682
  %4986 = vmatpush1.msra.mxu0 %v4681
  %4987 = vmatprep.subr.mxu0 %v4674
  %4988 = vmatpush1.msra.mxu0 %v4673
  %4989 = vmatprep.subr.mxu0 %v4666
  %4990 = vmatpush1.msra.mxu0 %v4665
  %4991 = vmatprep.subr.mxu0 %v4658
  %4992 = vmatpush1.msra.mxu0 %v4657
  %4993 = vmatprep.subr.mxu0 %v4650
  %4994 = vmatpush1.msra.mxu0 %v4649
  %4995 = vmatprep.subr.mxu0 %v4642
  %4996 = vmatpush1.msra.mxu0 %v4641
  %4997 = vmatprep.subr.mxu0 0.0
  %4998 = vmatpush2.msra.mxu0 0.0
  %4999 = vmatprep.subr.mxu0 0.0
  %5000 = vmatpush2.msra.mxu0 0.0
  %5001 = vmatprep.subr.mxu0 0.0
  %5002 = vmatpush2.msra.mxu0 0.0
  %5003 = vmatprep.subr.mxu0 0.0
  %5004 = vmatpush2.msra.mxu0 0.0
  %5005 = vmatprep.subr.mxu0 0.0
  %5006 = vmatpush2.msra.mxu0 0.0
  %5007 = vmatprep.subr.mxu0 0.0
  %5008 = vmatpush2.msra.mxu0 0.0
  %5009 = vmatprep.subr.mxu0 0.0
  %5010 = vmatpush2.msra.mxu0 0.0
  %5011 = vmatprep.subr.mxu0 0.0
  %5012 = vmatpush2.msra.mxu0 0.0
  %5013 = vmatprep.subr.mxu0 0.0
  %5014 = vmatpush2.msra.mxu0 0.0
  %5015 = vmatprep.subr.mxu0 0.0
  %5016 = vmatpush2.msra.mxu0 0.0
  %5017 = vmatprep.subr.mxu0 0.0
  %5018 = vmatpush2.msra.mxu0 0.0
  %5019 = vmatprep.subr.mxu0 0.0
  %5020 = vmatpush2.msra.mxu0 0.0
  %5021 = vmatprep.subr.mxu0 0.0
  %5022 = vmatpush2.msra.mxu0 0.0
  %5023 = vmatprep.subr.mxu0 0.0
  %5024 = vmatpush2.msra.mxu0 0.0
  %5025 = vmatprep.subr.mxu0 %v4778
  %5026 = vmatpush2.msra.mxu0 %v4777
  %5027 = vmatprep.subr.mxu0 %v4770
  %5028 = vmatpush2.msra.mxu0 %v4769
  %5029 = vmatprep.mubr.f32.mxu0 %v4807
  %5030 = vmatmul.mubr.f32.gmra.mxu0 %v4802
  %v5031 = vpop.f32.mrf.mxu0
  %v5032 = vadd.f32 %v4784, %v5031
  %v5033 = vpop.f32.mrf.mxu0
  %v5034 = vadd.f32 %v4784, %v5033
  %5035 = vmatprep.mubr.f32.mxu0 %v4809
  %5036 = vmatmul.mubr.f32.gmra.mxu0 %v4803
  %v5037 = vpop.f32.mrf.mxu0
  %v5038 = vadd.f32 %v4789, %v5037
  %v5039 = vpop.f32.mrf.mxu0
  %v5040 = vadd.f32 %v4789, %v5039
  %5041 = vdwg.mxu0
  %5042 = vmatprep.subr.mxu0 %v4764
  %5043 = vmatpush1.msra.mxu0 %v4763
  %5044 = vmatprep.subr.mxu0 %v4756
  %5045 = vmatpush1.msra.mxu0 %v4755
  %5046 = vmatprep.subr.mxu0 %v4748
  %5047 = vmatpush1.msra.mxu0 %v4747
  %5048 = vmatprep.subr.mxu0 %v4740
  %5049 = vmatpush1.msra.mxu0 %v4739
  %5050 = vmatprep.subr.mxu0 %v4732
  %5051 = vmatpush1.msra.mxu0 %v4731
  %5052 = vmatprep.subr.mxu0 %v4724
  %5053 = vmatpush1.msra.mxu0 %v4723
  %5054 = vmatprep.subr.mxu0 %v4716
  %5055 = vmatpush1.msra.mxu0 %v4715
  %5056 = vmatprep.subr.mxu0 %v4708
  %5057 = vmatpush1.msra.mxu0 %v4707
  %5058 = vmatprep.subr.mxu0 %v4700
  %5059 = vmatpush1.msra.mxu0 %v4699
  %5060 = vmatprep.subr.mxu0 %v4692
  %5061 = vmatpush1.msra.mxu0 %v4691
  %5062 = vmatprep.subr.mxu0 %v4684
  %5063 = vmatpush1.msra.mxu0 %v4683
  %5064 = vmatprep.subr.mxu0 %v4676
  %5065 = vmatpush1.msra.mxu0 %v4675
  %5066 = vmatprep.subr.mxu0 %v4668
  %5067 = vmatpush1.msra.mxu0 %v4667
  %5068 = vmatprep.subr.mxu0 %v4660
  %5069 = vmatpush1.msra.mxu0 %v4659
  %5070 = vmatprep.subr.mxu0 %v4652
  %5071 = vmatpush1.msra.mxu0 %v4651
  %5072 = vmatprep.subr.mxu0 %v4644
  %5073 = vmatpush1.msra.mxu0 %v4643
  %5074 = vmatprep.subr.mxu0 0.0
  %5075 = vmatpush2.msra.mxu0 0.0
  %5076 = vmatprep.subr.mxu0 0.0
  %5077 = vmatpush2.msra.mxu0 0.0
  %5078 = vmatprep.subr.mxu0 0.0
  %5079 = vmatpush2.msra.mxu0 0.0
  %5080 = vmatprep.subr.mxu0 0.0
  %5081 = vmatpush2.msra.mxu0 0.0
  %5082 = vmatprep.subr.mxu0 0.0
  %5083 = vmatpush2.msra.mxu0 0.0
  %5084 = vmatprep.subr.mxu0 0.0
  %5085 = vmatpush2.msra.mxu0 0.0
  %5086 = vmatprep.subr.mxu0 0.0
  %5087 = vmatpush2.msra.mxu0 0.0
  %5088 = vmatprep.subr.mxu0 0.0
  %5089 = vmatpush2.msra.mxu0 0.0
  %5090 = vmatprep.subr.mxu0 0.0
  %5091 = vmatpush2.msra.mxu0 0.0
  %5092 = vmatprep.subr.mxu0 0.0
  %5093 = vmatpush2.msra.mxu0 0.0
  %5094 = vmatprep.subr.mxu0 0.0
  %5095 = vmatpush2.msra.mxu0 0.0
  %5096 = vmatprep.subr.mxu0 0.0
  %5097 = vmatpush2.msra.mxu0 0.0
  %5098 = vmatprep.subr.mxu0 0.0
  %5099 = vmatpush2.msra.mxu0 0.0
  %5100 = vmatprep.subr.mxu0 0.0
  %5101 = vmatpush2.msra.mxu0 0.0
  %5102 = vmatprep.subr.mxu0 %v4780
  %5103 = vmatpush2.msra.mxu0 %v4779
  %5104 = vmatprep.subr.mxu0 %v4772
  %5105 = vmatpush2.msra.mxu0 %v4771
  %5106 = vmatprep.mubr.f32.mxu0 %v4807
  %5107 = vmatmul.mubr.f32.gmra.mxu0 %v4802
  %v5108 = vpop.f32.mrf.mxu0
  %v5109 = vadd.f32 %v4784, %v5108
  %v5110 = vpop.f32.mrf.mxu0
  %v5111 = vadd.f32 %v4784, %v5110
  %5112 = vmatprep.mubr.f32.mxu0 %v4809
  %5113 = vmatmul.mubr.f32.gmra.mxu0 %v4803
  %v5114 = vpop.f32.mrf.mxu0
  %v5115 = vadd.f32 %v4789, %v5114
  %v5116 = vpop.f32.mrf.mxu0
  %v5117 = vadd.f32 %v4789, %v5116
  %5118 = vdwg.mxu0
  %v5119 = vmax.f32 %v4878, 0.0
  %v5120 = vmax.f32 %v4880, 0.0
  %v5121 = vmax.f32 %v4955, 0.0
  %v5122 = vmax.f32 %v4957, 0.0
  %v5123 = vmax.f32 %v5032, 0.0
  %v5124 = vmax.f32 %v5034, 0.0
  %v5125 = vmax.f32 %v5109, 0.0
  %v5126 = vmax.f32 %v5111, 0.0
  %v5127 = vmax.f32 %v4884, 0.0
  %v5128 = vmax.f32 %v4886, 0.0
  %v5129 = vmax.f32 %v4961, 0.0
  %v5130 = vmax.f32 %v4963, 0.0
  %v5131 = vmax.f32 %v5038, 0.0
  %v5132 = vmax.f32 %v5040, 0.0
  %v5133 = vmax.f32 %v5115, 0.0
  %v5134 = vmax.f32 %v5117, 0.0
  %5135 = vst [vmem:[%s2] sm:$0xff] %v5119
  %5136 = vst [vmem:[%s2 + $0x8] sm:$0xff] %v5120
  %5137 = vst [vmem:[%s2 + $0x10] sm:$0xff] %v5121
  %5138 = vst [vmem:[%s2 + $0x18] sm:$0xff] %v5122
  %5139 = vst [vmem:[%s2 + $0x20] sm:$0xff] %v5123
  %5140 = vst [vmem:[%s2 + $0x28] sm:$0xff] %v5124
  %5141 = vst [vmem:[%s2 + $0x30] sm:$0xff] %v5125
  %5142 = vst [vmem:[%s2 + $0x38] sm:$0xff] %v5126
  %5143 = vst [vmem:[%s2 + $0x40] sm:$0xff] %v5127
  %5144 = vst [vmem:[%s2 + $0x48] sm:$0xff] %v5128
  %5145 = vst [vmem:[%s2 + $0x50] sm:$0xff] %v5129
  %5146 = vst [vmem:[%s2 + $0x58] sm:$0xff] %v5130
  %5147 = vst [vmem:[%s2 + $0x60] sm:$0xff] %v5131
  %5148 = vst [vmem:[%s2 + $0x68] sm:$0xff] %v5132
  %5149 = vst [vmem:[%s2 + $0x70] sm:$0xff] %v5133
  %5150 = vst [vmem:[%s2 + $0x78] sm:$0xff] %v5134
  // Predicated region
  $region10: #{model_forward.1} parent=0 // pred_check
    _
  $region11: #{model_forward.1} parent=0 // pred_check_branch
    %5152 = sbr.rel (0) target = $region13
  $region12: #{model_forward.1} parent=0 // pred_region
    _
  $region13: #{model_forward.1} parent=0 // pred_fallthru
    _
  // Predicated region
  $region14: #{model_forward.1} parent=0 // pred_check
    _
  $region15: #{model_forward.1} parent=0 // pred_check_branch
    %5154 = sbr.rel (0) target = $region17
  $region16: #{model_forward.1} parent=0 // pred_region
    _
  $region17: #{model_forward.1} parent=0 // pred_fallthru
    _

</llo_original>
